<compile_context>
chip_gen: v6e
topology: v6e:2x2x1
jax: 0.10.0
libtpu: 0.0.40
codegen_flags: <defaults>
</compile_context>

<pallas_src>
import functools
import math

import jax
import jax.numpy as jnp
from jax import lax
from jax.experimental import pallas as pl
from jax.experimental.pallas import tpu as pltpu

# ----------------------------- config (small, BERT-like) -----------------------------
VOCAB_SIZE = 100
TYPE_VOCAB_SIZE = 2
MAX_POSITIONS = 64
HIDDEN = 32
NUM_HEADS = 4
HEAD_DIM = HIDDEN // NUM_HEADS
INTERMEDIATE = 64
NUM_LAYERS = 2
NUM_LABELS = 3
LN_EPS = 1e-12
BATCH = 2
MAX_S = 8
TOTAL_TOKENS = BATCH * MAX_S
CLS_PAD = 128              # lane-dense padded classifier output width
GELU_TANH_APPROX = True    # EUP tanh path (v6e/v7x); False -> exact-erf torch parity

# ----------------------------- packed-slab layout constants -----------------------------
# weight slab: per layer [qkv_w | attn_out_w | inter_w | ffn_out_w], then classifier weight
W_ROWS_PER_LAYER = HIDDEN + HIDDEN + HIDDEN + INTERMEDIATE   # 32+32+32+64 = 160
W_QKV_OFF = 0
W_AO_OFF = HIDDEN
W_IN_OFF = 2 * HIDDEN
W_OUT_OFF = 3 * HIDDEN
W_CLS_ROW = NUM_LAYERS * W_ROWS_PER_LAYER
W_SLAB_ROWS = W_CLS_ROW + HIDDEN                             # 352

# vector slab (LN gammas/betas + biases), one 128-lane row each
V_EMB_G, V_EMB_B = 0, 1
V_LAYER_BASE = 2
V_ROWS_PER_LAYER = 8
(V_QKV_B, V_AO_B, V_A_LN_G, V_A_LN_B,
 V_IN_B, V_OUT_B, V_O_LN_G, V_O_LN_B) = range(8)
V_CLS_B_ROW = V_LAYER_BASE + NUM_LAYERS * V_ROWS_PER_LAYER   # 18
V_SLAB_ROWS = V_CLS_B_ROW + 1                                # 19

# embedding table slab row offsets (word | position | type, concatenated along rows)
WORD_OFF = 0
POS_OFF = VOCAB_SIZE
TYPE_OFF = VOCAB_SIZE + MAX_POSITIONS


# ----------------------------- fused whole-model Pallas kernel -----------------------------
def _fused_bert_kernel(
    input_ids_ref, token_type_ids_ref, position_ids_ref, cu_ref,   # SMEM
    tables_ref, w_ref, v_ref,                                      # VMEM slabs
    out_ref,                                                       # VMEM output [T, 128]
    h_scratch,                                                     # VMEM scratch [T, H]
    *, total_tokens, num_seqs, num_layers, num_heads, head_dim, eps, approx_gelu,
):
    hidden = num_heads * head_dim
    T = total_tokens

    def vrow(r, width):
        # one [1, width] row of the vector slab (static slice -> zero-cost view)
        return v_ref[r:r + 1, 0:width]

    def layer_norm(x, g, b):
        mean = jnp.mean(x, axis=-1, keepdims=True)
        c = x - mean
        var = jnp.mean(c * c, axis=-1, keepdims=True)
        return c * lax.rsqrt(var + eps) * g + b

    # ---- in-kernel embedding gather: word + position + type rows summed per token ----
    def gather_row(i, carry):
        w_row = tables_ref[pl.ds(WORD_OFF + input_ids_ref[i], 1), :]
        p_row = tables_ref[pl.ds(POS_OFF + position_ids_ref[i], 1), :]
        t_row = tables_ref[pl.ds(TYPE_OFF + token_type_ids_ref[i], 1), :]
        h_scratch[pl.ds(i, 1), :] = w_row + p_row + t_row
        return carry

    lax.fori_loop(0, T, gather_row, 0, unroll=True)

    # embeddings LayerNorm
    h = layer_norm(h_scratch[...], vrow(V_EMB_G, hidden), vrow(V_EMB_B, hidden))

    # ---- block-diagonal additive attention mask from cu_seqlens (SMEM scalars) ----
    # seq_id[t] = #{j >= 1 : t >= cu_seqlens[j]}  (matches searchsorted(..., 'right') - 1)
    row_tok = lax.broadcasted_iota(jnp.int32, (T, 1), 0)
    col_tok = lax.broadcasted_iota(jnp.int32, (1, T), 1)
    row_seq = jnp.zeros((T, 1), jnp.int32)
    col_seq = jnp.zeros((1, T), jnp.int32)
    for b in range(1, num_seqs + 1):                       # static unroll (num_seqs small)
        c = cu_ref[b]
        row_seq = row_seq + (row_tok >= c).astype(jnp.int32)
        col_seq = col_seq + (col_tok >= c).astype(jnp.int32)
    mask_bias = jnp.where(row_seq == col_seq, 0.0, -1e30).astype(jnp.float32)  # [T, T]

    # ---- encoder layers (static unroll) ----
    for l in range(num_layers):
        wb = l * W_ROWS_PER_LAYER
        vb = V_LAYER_BASE + l * V_ROWS_PER_LAYER

        # fused QKV projection (Q slice pre-scaled by 1/sqrt(head_dim) at pack time)
        qkv_w = w_ref[wb + W_QKV_OFF: wb + W_QKV_OFF + hidden, 0:3 * hidden]
        qkv = (jnp.dot(h, qkv_w, preferred_element_type=jnp.float32)
               + vrow(vb + V_QKV_B, 3 * hidden))

        # per-head attention; output projection accumulated per head (no concatenate)
        ao = None
        for hd in range(num_heads):                        # static unroll over heads
            q = qkv[:, hd * head_dim:(hd + 1) * head_dim]
            k = qkv[:, hidden + hd * head_dim: hidden + (hd + 1) * head_dim]
            v = qkv[:, 2 * hidden + hd * head_dim: 2 * hidden + (hd + 1) * head_dim]
            # contract last dims directly -> no in-kernel transpose of k
            s = lax.dot_general(q, k, (((1,), (1,)), ((), ())),
                                preferred_element_type=jnp.float32)
            s = s + mask_bias                              # restrict attention to own sequence
            s = s - jnp.max(s, axis=-1, keepdims=True)
            p = jnp.exp(s)
            # approx reciprocal (EUP slot); ~2^-12 rel. error vs exact divide
            p = p * pl.reciprocal(jnp.sum(p, axis=-1, keepdims=True), approx=True)
            head_out = jnp.dot(p, v, preferred_element_type=jnp.float32)     # [T, head_dim]
            ao_w_h = w_ref[wb + W_AO_OFF + hd * head_dim:
                           wb + W_AO_OFF + (hd + 1) * head_dim, 0:hidden]    # [head_dim, H]
            contrib = jnp.dot(head_out, ao_w_h, preferred_element_type=jnp.float32)
            ao = contrib if ao is None else ao + contrib

        ao = ao + vrow(vb + V_AO_B, hidden)
        h = layer_norm(ao + h, vrow(vb + V_A_LN_G, hidden), vrow(vb + V_A_LN_B, hidden))

        # FFN: intermediate (GELU) -> output + residual + LayerNorm
        in_w = w_ref[wb + W_IN_OFF: wb + W_IN_OFF + hidden, 0:INTERMEDIATE]
        inter = (jnp.dot(h, in_w, preferred_element_type=jnp.float32)
                 + vrow(vb + V_IN_B, INTERMEDIATE))
        inter = jax.nn.gelu(inter, approximate=approx_gelu)
        o_w = w_ref[wb + W_OUT_OFF: wb + W_OUT_OFF + INTERMEDIATE, 0:hidden]
        ffn = (jnp.dot(inter, o_w, preferred_element_type=jnp.float32)
               + vrow(vb + V_OUT_B, hidden))
        h = layer_norm(ffn + h, vrow(vb + V_O_LN_G, hidden), vrow(vb + V_O_LN_B, hidden))

    # classifier into a lane-dense 128-wide padded slab (only HBM store of the kernel)
    cls_w = w_ref[W_CLS_ROW: W_CLS_ROW + hidden, 0:CLS_PAD]
    logits = jnp.dot(h, cls_w, preferred_element_type=jnp.float32) + vrow(V_CLS_B_ROW, CLS_PAD)
    out_ref[...] = logits.astype(out_ref.dtype)


def fused_bert_forward(packed, input_ids, token_type_ids, position_ids, cu_seqlens):
    total_tokens = input_ids.shape[0]
    num_seqs = cu_seqlens.shape[0] - 1
    kernel = functools.partial(
        _fused_bert_kernel,
        total_tokens=total_tokens,
        num_seqs=num_seqs,
        num_layers=NUM_LAYERS,
        num_heads=NUM_HEADS,
        head_dim=HEAD_DIM,
        eps=LN_EPS,
        approx_gelu=GELU_TANH_APPROX,
    )
    smem = pl.BlockSpec(memory_space=pltpu.MemorySpace.SMEM)
    vmem = pl.BlockSpec(memory_space=pltpu.MemorySpace.VMEM)
    return pl.pallas_call(
        kernel,
        out_shape=jax.ShapeDtypeStruct((total_tokens, CLS_PAD), jnp.float32),
        in_specs=[smem, smem, smem, smem, vmem, vmem, vmem],
        out_specs=vmem,
        scratch_shapes=[pltpu.VMEM((total_tokens, HIDDEN), jnp.float32)],
    )(input_ids, token_type_ids, position_ids, cu_seqlens,
      packed["tables"], packed["w_slab"], packed["v_slab"])


# ----------------------------- parameter initialization / one-time packing -----------------------------
def init_params(key):
    def nrm(k, shape, scale=0.02):
        return (scale * jax.random.normal(k, shape)).astype(jnp.float32)

    keys = iter(jax.random.split(key, 64))
    params = {
        "word_emb": nrm(next(keys), (VOCAB_SIZE, HIDDEN)),
        "pos_emb": nrm(next(keys), (MAX_POSITIONS, HIDDEN)),
        "type_emb": nrm(next(keys), (TYPE_VOCAB_SIZE, HIDDEN)),
        "emb_ln_g": jnp.ones((1, HIDDEN), jnp.float32),
        "emb_ln_b": jnp.zeros((1, HIDDEN), jnp.float32),
        "layers": [],
        # torch layout [num_labels, hidden]; stored pre-transposed [hidden, num_labels]
        "cls_w": nrm(next(keys), (HIDDEN, NUM_LABELS)),
        "cls_b": jnp.zeros((1, NUM_LABELS), jnp.float32),
    }
    for _ in range(NUM_LAYERS):
        params["layers"].append({
            # query_key_value: torch [3H, H] -> pre-transposed [H, 3H]
            "qkv_w": nrm(next(keys), (HIDDEN, 3 * HIDDEN)),
            "qkv_b": nrm(next(keys), (1, 3 * HIDDEN)),
            "attn_out_w": nrm(next(keys), (HIDDEN, HIDDEN)),
            "attn_out_b": nrm(next(keys), (1, HIDDEN)),
            "attn_ln_g": jnp.ones((1, HIDDEN), jnp.float32),
            "attn_ln_b": jnp.zeros((1, HIDDEN), jnp.float32),
            "inter_w": nrm(next(keys), (HIDDEN, INTERMEDIATE)),
            "inter_b": nrm(next(keys), (1, INTERMEDIATE)),
            "out_w": nrm(next(keys), (INTERMEDIATE, HIDDEN)),
            "out_b": nrm(next(keys), (1, HIDDEN)),
            "out_ln_g": jnp.ones((1, HIDDEN), jnp.float32),
            "out_ln_b": jnp.zeros((1, HIDDEN), jnp.float32),
        })
    return params


def pack_params(params):
    """One-time (init-time) packing: concatenate embedding tables, stack all matmul weights
    into a single 128-lane slab, stack all LN/bias vectors into a second slab, fold the
    1/sqrt(head_dim) attention scale into the Q slice, and pad the classifier to 128 lanes.
    Runs OUTSIDE the jitted forward so no per-call re-stacking XLA ops are emitted."""
    H, I = HIDDEN, INTERMEDIATE
    scale = 1.0 / math.sqrt(HEAD_DIM)

    tables = jnp.concatenate(
        [params["word_emb"], params["pos_emb"], params["type_emb"]], axis=0)  # [166, 32]

    w_slab = jnp.zeros((W_SLAB_ROWS, 128), jnp.float32)
    v_slab = jnp.zeros((V_SLAB_ROWS, 128), jnp.float32)

    v_slab = v_slab.at[V_EMB_G, :H].set(params["emb_ln_g"][0])
    v_slab = v_slab.at[V_EMB_B, :H].set(params["emb_ln_b"][0])

    for l, lyr in enumerate(params["layers"]):
        wb = l * W_ROWS_PER_LAYER
        vb = V_LAYER_BASE + l * V_ROWS_PER_LAYER
        qkv_w = lyr["qkv_w"].at[:, :H].multiply(scale)   # fold attention scale into Q
        qkv_b = lyr["qkv_b"].at[:, :H].multiply(scale)
        w_slab = w_slab.at[wb + W_QKV_OFF: wb + W_QKV_OFF + H, :3 * H].set(qkv_w)
        w_slab = w_slab.at[wb + W_AO_OFF: wb + W_AO_OFF + H, :H].set(lyr["attn_out_w"])
        w_slab = w_slab.at[wb + W_IN_OFF: wb + W_IN_OFF + H, :I].set(lyr["inter_w"])
        w_slab = w_slab.at[wb + W_OUT_OFF: wb + W_OUT_OFF + I, :H].set(lyr["out_w"])
        v_slab = v_slab.at[vb + V_QKV_B, :3 * H].set(qkv_b[0])
        v_slab = v_slab.at[vb + V_AO_B, :H].set(lyr["attn_out_b"][0])
        v_slab = v_slab.at[vb + V_A_LN_G, :H].set(lyr["attn_ln_g"][0])
        v_slab = v_slab.at[vb + V_A_LN_B, :H].set(lyr["attn_ln_b"][0])
        v_slab = v_slab.at[vb + V_IN_B, :I].set(lyr["inter_b"][0])
        v_slab = v_slab.at[vb + V_OUT_B, :H].set(lyr["out_b"][0])
        v_slab = v_slab.at[vb + V_O_LN_G, :H].set(lyr["out_ln_g"][0])
        v_slab = v_slab.at[vb + V_O_LN_B, :H].set(lyr["out_ln_b"][0])

    w_slab = w_slab.at[W_CLS_ROW: W_CLS_ROW + H, :NUM_LABELS].set(params["cls_w"])
    v_slab = v_slab.at[V_CLS_B_ROW, :NUM_LABELS].set(params["cls_b"][0])

    # TODO(synk): for real-BERT sizes, store the matmul slab in bf16 (MXU-native on v6e/v7x,
    # halves weight DMA) and add a token-tiled 'parallel' grid axis for v7x's two TensorCores.
    return {"tables": tables, "w_slab": w_slab, "v_slab": v_slab}


# ----------------------------- model forward -----------------------------
@functools.partial(jax.jit, static_argnames=("max_s",))
def flash_bert_classification_forward(packed, input_ids, token_type_ids,
                                      position_ids, cu_seqlens, max_s):
    logits_pad = fused_bert_forward(packed, input_ids, token_type_ids,
                                    position_ids, cu_seqlens)          # [T, 128]
    batch_size = input_ids.shape[0] // max_s
    # TODO(synk): like the torch module, the final reshape assumes equal-length sequences.
    return logits_pad[:, :NUM_LABELS].reshape(batch_size, max_s, NUM_LABELS)


# ----------------------------- main -----------------------------
if __name__ == "__main__":
    key = jax.random.PRNGKey(0)
    pkey, ikey, tkey = jax.random.split(key, 3)
    params = init_params(pkey)
    packed = pack_params(params)   # one-time packing at init, NOT inside the jitted forward

    input_ids = jax.random.randint(ikey, (TOTAL_TOKENS,), 0, VOCAB_SIZE, dtype=jnp.int32)
    token_type_ids = jax.random.randint(tkey, (TOTAL_TOKENS,), 0, TYPE_VOCAB_SIZE, dtype=jnp.int32)
    position_ids = jnp.tile(jnp.arange(MAX_S, dtype=jnp.int32), BATCH)
    cu_seqlens = jnp.arange(BATCH + 1, dtype=jnp.int32) * MAX_S  # equal-length packed sequences

    logits = flash_bert_classification_forward(
        packed, input_ids, token_type_ids, position_ids, cu_seqlens, MAX_S)
    jax.block_until_ready(logits)
    assert logits.shape == (BATCH, MAX_S, NUM_LABELS)
    assert bool(jnp.all(jnp.isfinite(logits)))
    print("KERNEL_OK")
</pallas_src>

<mosaic_0001>
module attributes {stable_mosaic.version = 11 : i64} {
  func.func @_fused_bert_kernel(%arg0: memref<16xi32, #tpu.memory_space<smem>>, %arg1: memref<16xi32, #tpu.memory_space<smem>>, %arg2: memref<16xi32, #tpu.memory_space<smem>>, %arg3: memref<3xi32, #tpu.memory_space<smem>>, %arg4: memref<166x32xf32, #tpu.memory_space<vmem>>, %arg5: memref<352x128xf32, #tpu.memory_space<vmem>>, %arg6: memref<19x128xf32, #tpu.memory_space<vmem>>, %arg7: memref<16x128xf32, #tpu.memory_space<vmem>>, %arg8: memref<16x32xf32, #tpu.memory_space<vmem>>) attributes {dimension_semantics = [], scalar_prefetch = 0 : i64, scratch_operands = 1 : i64, tpu.core_type = #tpu.core_type<tc>} {
    %c0_i32 = arith.constant 0 : i32
    %0 = arith.index_cast %c0_i32 : i32 to index
    %1 = memref.load %arg0[%0] : memref<16xi32, #tpu.memory_space<smem>>
    %c0_i32_0 = arith.constant 0 : i32
    %2 = arith.addi %c0_i32_0, %1 : i32
    %3 = arith.index_cast %2 : i32 to index
    %c0 = arith.constant 0 : index
    %4 = vector.load %arg4[%3, %c0] : memref<166x32xf32, #tpu.memory_space<vmem>>, vector<1x32xf32>
    %5 = arith.index_cast %c0_i32 : i32 to index
    %6 = memref.load %arg2[%5] : memref<16xi32, #tpu.memory_space<smem>>
    %c100_i32 = arith.constant 100 : i32
    %7 = arith.addi %c100_i32, %6 : i32
    %8 = arith.index_cast %7 : i32 to index
    %c0_1 = arith.constant 0 : index
    %9 = vector.load %arg4[%8, %c0_1] : memref<166x32xf32, #tpu.memory_space<vmem>>, vector<1x32xf32>
    %10 = arith.index_cast %c0_i32 : i32 to index
    %11 = memref.load %arg1[%10] : memref<16xi32, #tpu.memory_space<smem>>
    %c164_i32 = arith.constant 164 : i32
    %12 = arith.addi %c164_i32, %11 : i32
    %13 = arith.index_cast %12 : i32 to index
    %c0_2 = arith.constant 0 : index
    %14 = vector.load %arg4[%13, %c0_2] : memref<166x32xf32, #tpu.memory_space<vmem>>, vector<1x32xf32>
    %15 = arith.addf %4, %9 : vector<1x32xf32>
    %16 = arith.addf %15, %14 : vector<1x32xf32>
    %17 = arith.index_cast %c0_i32 : i32 to index
    %c0_3 = arith.constant 0 : index
    %18 = vector.load %arg8[%17, %c0_3] : memref<16x32xf32, #tpu.memory_space<vmem>>, vector<1x32xf32>
    tpu.vector_store %arg8[%17, %c0_3], %16 {strides = array<i32>} : memref<16x32xf32, #tpu.memory_space<vmem>>, vector<1x32xf32>,
    %c1_i32 = arith.constant 1 : i32
    %19 = arith.index_cast %c1_i32 : i32 to index
    %20 = memref.load %arg0[%19] : memref<16xi32, #tpu.memory_space<smem>>
    %c0_i32_4 = arith.constant 0 : i32
    %21 = arith.addi %c0_i32_4, %20 : i32
    %22 = arith.index_cast %21 : i32 to index
    %c0_5 = arith.constant 0 : index
    %23 = vector.load %arg4[%22, %c0_5] : memref<166x32xf32, #tpu.memory_space<vmem>>, vector<1x32xf32>
    %24 = arith.index_cast %c1_i32 : i32 to index
    %25 = memref.load %arg2[%24] : memref<16xi32, #tpu.memory_space<smem>>
    %c100_i32_6 = arith.constant 100 : i32
    %26 = arith.addi %c100_i32_6, %25 : i32
    %27 = arith.index_cast %26 : i32 to index
    %c0_7 = arith.constant 0 : index
    %28 = vector.load %arg4[%27, %c0_7] : memref<166x32xf32, #tpu.memory_space<vmem>>, vector<1x32xf32>
    %29 = arith.index_cast %c1_i32 : i32 to index
    %30 = memref.load %arg1[%29] : memref<16xi32, #tpu.memory_space<smem>>
    %c164_i32_8 = arith.constant 164 : i32
    %31 = arith.addi %c164_i32_8, %30 : i32
    %32 = arith.index_cast %31 : i32 to index
    %c0_9 = arith.constant 0 : index
    %33 = vector.load %arg4[%32, %c0_9] : memref<166x32xf32, #tpu.memory_space<vmem>>, vector<1x32xf32>
    %34 = arith.addf %23, %28 : vector<1x32xf32>
    %35 = arith.addf %34, %33 : vector<1x32xf32>
    %36 = arith.index_cast %c1_i32 : i32 to index
    %c0_10 = arith.constant 0 : index
    %37 = vector.load %arg8[%36, %c0_10] : memref<16x32xf32, #tpu.memory_space<vmem>>, vector<1x32xf32>
    tpu.vector_store %arg8[%36, %c0_10], %35 {strides = array<i32>} : memref<16x32xf32, #tpu.memory_space<vmem>>, vector<1x32xf32>,
    %c2_i32 = arith.constant 2 : i32
    %38 = arith.index_cast %c2_i32 : i32 to index
    %39 = memref.load %arg0[%38] : memref<16xi32, #tpu.memory_space<smem>>
    %c0_i32_11 = arith.constant 0 : i32
    %40 = arith.addi %c0_i32_11, %39 : i32
    %41 = arith.index_cast %40 : i32 to index
    %c0_12 = arith.constant 0 : index
    %42 = vector.load %arg4[%41, %c0_12] : memref<166x32xf32, #tpu.memory_space<vmem>>, vector<1x32xf32>
    %43 = arith.index_cast %c2_i32 : i32 to index
    %44 = memref.load %arg2[%43] : memref<16xi32, #tpu.memory_space<smem>>
    %c100_i32_13 = arith.constant 100 : i32
    %45 = arith.addi %c100_i32_13, %44 : i32
    %46 = arith.index_cast %45 : i32 to index
    %c0_14 = arith.constant 0 : index
    %47 = vector.load %arg4[%46, %c0_14] : memref<166x32xf32, #tpu.memory_space<vmem>>, vector<1x32xf32>
    %48 = arith.index_cast %c2_i32 : i32 to index
    %49 = memref.load %arg1[%48] : memref<16xi32, #tpu.memory_space<smem>>
    %c164_i32_15 = arith.constant 164 : i32
    %50 = arith.addi %c164_i32_15, %49 : i32
    %51 = arith.index_cast %50 : i32 to index
    %c0_16 = arith.constant 0 : index
    %52 = vector.load %arg4[%51, %c0_16] : memref<166x32xf32, #tpu.memory_space<vmem>>, vector<1x32xf32>
    %53 = arith.addf %42, %47 : vector<1x32xf32>
    %54 = arith.addf %53, %52 : vector<1x32xf32>
    %55 = arith.index_cast %c2_i32 : i32 to index
    %c0_17 = arith.constant 0 : index
    %56 = vector.load %arg8[%55, %c0_17] : memref<16x32xf32, #tpu.memory_space<vmem>>, vector<1x32xf32>
    tpu.vector_store %arg8[%55, %c0_17], %54 {strides = array<i32>} : memref<16x32xf32, #tpu.memory_space<vmem>>, vector<1x32xf32>,
    %c3_i32 = arith.constant 3 : i32
    %57 = arith.index_cast %c3_i32 : i32 to index
    %58 = memref.load %arg0[%57] : memref<16xi32, #tpu.memory_space<smem>>
    %c0_i32_18 = arith.constant 0 : i32
    %59 = arith.addi %c0_i32_18, %58 : i32
    %60 = arith.index_cast %59 : i32 to index
    %c0_19 = arith.constant 0 : index
    %61 = vector.load %arg4[%60, %c0_19] : memref<166x32xf32, #tpu.memory_space<vmem>>, vector<1x32xf32>
    %62 = arith.index_cast %c3_i32 : i32 to index
    %63 = memref.load %arg2[%62] : memref<16xi32, #tpu.memory_space<smem>>
    %c100_i32_20 = arith.constant 100 : i32
    %64 = arith.addi %c100_i32_20, %63 : i32
    %65 = arith.index_cast %64 : i32 to index
    %c0_21 = arith.constant 0 : index
    %66 = vector.load %arg4[%65, %c0_21] : memref<166x32xf32, #tpu.memory_space<vmem>>, vector<1x32xf32>
    %67 = arith.index_cast %c3_i32 : i32 to index
    %68 = memref.load %arg1[%67] : memref<16xi32, #tpu.memory_space<smem>>
    %c164_i32_22 = arith.constant 164 : i32
    %69 = arith.addi %c164_i32_22, %68 : i32
    %70 = arith.index_cast %69 : i32 to index
    %c0_23 = arith.constant 0 : index
    %71 = vector.load %arg4[%70, %c0_23] : memref<166x32xf32, #tpu.memory_space<vmem>>, vector<1x32xf32>
    %72 = arith.addf %61, %66 : vector<1x32xf32>
    %73 = arith.addf %72, %71 : vector<1x32xf32>
    %74 = arith.index_cast %c3_i32 : i32 to index
    %c0_24 = arith.constant 0 : index
    %75 = vector.load %arg8[%74, %c0_24] : memref<16x32xf32, #tpu.memory_space<vmem>>, vector<1x32xf32>
    tpu.vector_store %arg8[%74, %c0_24], %73 {strides = array<i32>} : memref<16x32xf32, #tpu.memory_space<vmem>>, vector<1x32xf32>,
    %c4_i32 = arith.constant 4 : i32
    %76 = arith.index_cast %c4_i32 : i32 to index
    %77 = memref.load %arg0[%76] : memref<16xi32, #tpu.memory_space<smem>>
    %c0_i32_25 = arith.constant 0 : i32
    %78 = arith.addi %c0_i32_25, %77 : i32
    %79 = arith.index_cast %78 : i32 to index
    %c0_26 = arith.constant 0 : index
    %80 = vector.load %arg4[%79, %c0_26] : memref<166x32xf32, #tpu.memory_space<vmem>>, vector<1x32xf32>
    %81 = arith.index_cast %c4_i32 : i32 to index
    %82 = memref.load %arg2[%81] : memref<16xi32, #tpu.memory_space<smem>>
    %c100_i32_27 = arith.constant 100 : i32
    %83 = arith.addi %c100_i32_27, %82 : i32
    %84 = arith.index_cast %83 : i32 to index
    %c0_28 = arith.constant 0 : index
    %85 = vector.load %arg4[%84, %c0_28] : memref<166x32xf32, #tpu.memory_space<vmem>>, vector<1x32xf32>
    %86 = arith.index_cast %c4_i32 : i32 to index
    %87 = memref.load %arg1[%86] : memref<16xi32, #tpu.memory_space<smem>>
    %c164_i32_29 = arith.constant 164 : i32
    %88 = arith.addi %c164_i32_29, %87 : i32
    %89 = arith.index_cast %88 : i32 to index
    %c0_30 = arith.constant 0 : index
    %90 = vector.load %arg4[%89, %c0_30] : memref<166x32xf32, #tpu.memory_space<vmem>>, vector<1x32xf32>
    %91 = arith.addf %80, %85 : vector<1x32xf32>
    %92 = arith.addf %91, %90 : vector<1x32xf32>
    %93 = arith.index_cast %c4_i32 : i32 to index
    %c0_31 = arith.constant 0 : index
    %94 = vector.load %arg8[%93, %c0_31] : memref<16x32xf32, #tpu.memory_space<vmem>>, vector<1x32xf32>
    tpu.vector_store %arg8[%93, %c0_31], %92 {strides = array<i32>} : memref<16x32xf32, #tpu.memory_space<vmem>>, vector<1x32xf32>,
    %c5_i32 = arith.constant 5 : i32
    %95 = arith.index_cast %c5_i32 : i32 to index
    %96 = memref.load %arg0[%95] : memref<16xi32, #tpu.memory_space<smem>>
    %c0_i32_32 = arith.constant 0 : i32
    %97 = arith.addi %c0_i32_32, %96 : i32
    %98 = arith.index_cast %97 : i32 to index
    %c0_33 = arith.constant 0 : index
    %99 = vector.load %arg4[%98, %c0_33] : memref<166x32xf32, #tpu.memory_space<vmem>>, vector<1x32xf32>
    %100 = arith.index_cast %c5_i32 : i32 to index
    %101 = memref.load %arg2[%100] : memref<16xi32, #tpu.memory_space<smem>>
    %c100_i32_34 = arith.constant 100 : i32
    %102 = arith.addi %c100_i32_34, %101 : i32
    %103 = arith.index_cast %102 : i32 to index
    %c0_35 = arith.constant 0 : index
    %104 = vector.load %arg4[%103, %c0_35] : memref<166x32xf32, #tpu.memory_space<vmem>>, vector<1x32xf32>
    %105 = arith.index_cast %c5_i32 : i32 to index
    %106 = memref.load %arg1[%105] : memref<16xi32, #tpu.memory_space<smem>>
    %c164_i32_36 = arith.constant 164 : i32
    %107 = arith.addi %c164_i32_36, %106 : i32
    %108 = arith.index_cast %107 : i32 to index
    %c0_37 = arith.constant 0 : index
    %109 = vector.load %arg4[%108, %c0_37] : memref<166x32xf32, #tpu.memory_space<vmem>>, vector<1x32xf32>
    %110 = arith.addf %99, %104 : vector<1x32xf32>
    %111 = arith.addf %110, %109 : vector<1x32xf32>
    %112 = arith.index_cast %c5_i32 : i32 to index
    %c0_38 = arith.constant 0 : index
    %113 = vector.load %arg8[%112, %c0_38] : memref<16x32xf32, #tpu.memory_space<vmem>>, vector<1x32xf32>
    tpu.vector_store %arg8[%112, %c0_38], %111 {strides = array<i32>} : memref<16x32xf32, #tpu.memory_space<vmem>>, vector<1x32xf32>,
    %c6_i32 = arith.constant 6 : i32
    %114 = arith.index_cast %c6_i32 : i32 to index
    %115 = memref.load %arg0[%114] : memref<16xi32, #tpu.memory_space<smem>>
    %c0_i32_39 = arith.constant 0 : i32
    %116 = arith.addi %c0_i32_39, %115 : i32
    %117 = arith.index_cast %116 : i32 to index
    %c0_40 = arith.constant 0 : index
    %118 = vector.load %arg4[%117, %c0_40] : memref<166x32xf32, #tpu.memory_space<vmem>>, vector<1x32xf32>
    %119 = arith.index_cast %c6_i32 : i32 to index
    %120 = memref.load %arg2[%119] : memref<16xi32, #tpu.memory_space<smem>>
    %c100_i32_41 = arith.constant 100 : i32
    %121 = arith.addi %c100_i32_41, %120 : i32
    %122 = arith.index_cast %121 : i32 to index
    %c0_42 = arith.constant 0 : index
    %123 = vector.load %arg4[%122, %c0_42] : memref<166x32xf32, #tpu.memory_space<vmem>>, vector<1x32xf32>
    %124 = arith.index_cast %c6_i32 : i32 to index
    %125 = memref.load %arg1[%124] : memref<16xi32, #tpu.memory_space<smem>>
    %c164_i32_43 = arith.constant 164 : i32
    %126 = arith.addi %c164_i32_43, %125 : i32
    %127 = arith.index_cast %126 : i32 to index
    %c0_44 = arith.constant 0 : index
    %128 = vector.load %arg4[%127, %c0_44] : memref<166x32xf32, #tpu.memory_space<vmem>>, vector<1x32xf32>
    %129 = arith.addf %118, %123 : vector<1x32xf32>
    %130 = arith.addf %129, %128 : vector<1x32xf32>
    %131 = arith.index_cast %c6_i32 : i32 to index
    %c0_45 = arith.constant 0 : index
    %132 = vector.load %arg8[%131, %c0_45] : memref<16x32xf32, #tpu.memory_space<vmem>>, vector<1x32xf32>
    tpu.vector_store %arg8[%131, %c0_45], %130 {strides = array<i32>} : memref<16x32xf32, #tpu.memory_space<vmem>>, vector<1x32xf32>,
    %c7_i32 = arith.constant 7 : i32
    %133 = arith.index_cast %c7_i32 : i32 to index
    %134 = memref.load %arg0[%133] : memref<16xi32, #tpu.memory_space<smem>>
    %c0_i32_46 = arith.constant 0 : i32
    %135 = arith.addi %c0_i32_46, %134 : i32
    %136 = arith.index_cast %135 : i32 to index
    %c0_47 = arith.constant 0 : index
    %137 = vector.load %arg4[%136, %c0_47] : memref<166x32xf32, #tpu.memory_space<vmem>>, vector<1x32xf32>
    %138 = arith.index_cast %c7_i32 : i32 to index
    %139 = memref.load %arg2[%138] : memref<16xi32, #tpu.memory_space<smem>>
    %c100_i32_48 = arith.constant 100 : i32
    %140 = arith.addi %c100_i32_48, %139 : i32
    %141 = arith.index_cast %140 : i32 to index
    %c0_49 = arith.constant 0 : index
    %142 = vector.load %arg4[%141, %c0_49] : memref<166x32xf32, #tpu.memory_space<vmem>>, vector<1x32xf32>
    %143 = arith.index_cast %c7_i32 : i32 to index
    %144 = memref.load %arg1[%143] : memref<16xi32, #tpu.memory_space<smem>>
    %c164_i32_50 = arith.constant 164 : i32
    %145 = arith.addi %c164_i32_50, %144 : i32
    %146 = arith.index_cast %145 : i32 to index
    %c0_51 = arith.constant 0 : index
    %147 = vector.load %arg4[%146, %c0_51] : memref<166x32xf32, #tpu.memory_space<vmem>>, vector<1x32xf32>
    %148 = arith.addf %137, %142 : vector<1x32xf32>
    %149 = arith.addf %148, %147 : vector<1x32xf32>
    %150 = arith.index_cast %c7_i32 : i32 to index
    %c0_52 = arith.constant 0 : index
    %151 = vector.load %arg8[%150, %c0_52] : memref<16x32xf32, #tpu.memory_space<vmem>>, vector<1x32xf32>
    tpu.vector_store %arg8[%150, %c0_52], %149 {strides = array<i32>} : memref<16x32xf32, #tpu.memory_space<vmem>>, vector<1x32xf32>,
    %c8_i32 = arith.constant 8 : i32
    %152 = arith.index_cast %c8_i32 : i32 to index
    %153 = memref.load %arg0[%152] : memref<16xi32, #tpu.memory_space<smem>>
    %c0_i32_53 = arith.constant 0 : i32
    %154 = arith.addi %c0_i32_53, %153 : i32
    %155 = arith.index_cast %154 : i32 to index
    %c0_54 = arith.constant 0 : index
    %156 = vector.load %arg4[%155, %c0_54] : memref<166x32xf32, #tpu.memory_space<vmem>>, vector<1x32xf32>
    %157 = arith.index_cast %c8_i32 : i32 to index
    %158 = memref.load %arg2[%157] : memref<16xi32, #tpu.memory_space<smem>>
    %c100_i32_55 = arith.constant 100 : i32
    %159 = arith.addi %c100_i32_55, %158 : i32
    %160 = arith.index_cast %159 : i32 to index
    %c0_56 = arith.constant 0 : index
    %161 = vector.load %arg4[%160, %c0_56] : memref<166x32xf32, #tpu.memory_space<vmem>>, vector<1x32xf32>
    %162 = arith.index_cast %c8_i32 : i32 to index
    %163 = memref.load %arg1[%162] : memref<16xi32, #tpu.memory_space<smem>>
    %c164_i32_57 = arith.constant 164 : i32
    %164 = arith.addi %c164_i32_57, %163 : i32
    %165 = arith.index_cast %164 : i32 to index
    %c0_58 = arith.constant 0 : index
    %166 = vector.load %arg4[%165, %c0_58] : memref<166x32xf32, #tpu.memory_space<vmem>>, vector<1x32xf32>
    %167 = arith.addf %156, %161 : vector<1x32xf32>
    %168 = arith.addf %167, %166 : vector<1x32xf32>
    %169 = arith.index_cast %c8_i32 : i32 to index
    %c0_59 = arith.constant 0 : index
    %170 = vector.load %arg8[%169, %c0_59] : memref<16x32xf32, #tpu.memory_space<vmem>>, vector<1x32xf32>
    tpu.vector_store %arg8[%169, %c0_59], %168 {strides = array<i32>} : memref<16x32xf32, #tpu.memory_space<vmem>>, vector<1x32xf32>,
    %c9_i32 = arith.constant 9 : i32
    %171 = arith.index_cast %c9_i32 : i32 to index
    %172 = memref.load %arg0[%171] : memref<16xi32, #tpu.memory_space<smem>>
    %c0_i32_60 = arith.constant 0 : i32
    %173 = arith.addi %c0_i32_60, %172 : i32
    %174 = arith.index_cast %173 : i32 to index
    %c0_61 = arith.constant 0 : index
    %175 = vector.load %arg4[%174, %c0_61] : memref<166x32xf32, #tpu.memory_space<vmem>>, vector<1x32xf32>
    %176 = arith.index_cast %c9_i32 : i32 to index
    %177 = memref.load %arg2[%176] : memref<16xi32, #tpu.memory_space<smem>>
    %c100_i32_62 = arith.constant 100 : i32
    %178 = arith.addi %c100_i32_62, %177 : i32
    %179 = arith.index_cast %178 : i32 to index
    %c0_63 = arith.constant 0 : index
    %180 = vector.load %arg4[%179, %c0_63] : memref<166x32xf32, #tpu.memory_space<vmem>>, vector<1x32xf32>
    %181 = arith.index_cast %c9_i32 : i32 to index
    %182 = memref.load %arg1[%181] : memref<16xi32, #tpu.memory_space<smem>>
    %c164_i32_64 = arith.constant 164 : i32
    %183 = arith.addi %c164_i32_64, %182 : i32
    %184 = arith.index_cast %183 : i32 to index
    %c0_65 = arith.constant 0 : index
    %185 = vector.load %arg4[%184, %c0_65] : memref<166x32xf32, #tpu.memory_space<vmem>>, vector<1x32xf32>
    %186 = arith.addf %175, %180 : vector<1x32xf32>
    %187 = arith.addf %186, %185 : vector<1x32xf32>
    %188 = arith.index_cast %c9_i32 : i32 to index
    %c0_66 = arith.constant 0 : index
    %189 = vector.load %arg8[%188, %c0_66] : memref<16x32xf32, #tpu.memory_space<vmem>>, vector<1x32xf32>
    tpu.vector_store %arg8[%188, %c0_66], %187 {strides = array<i32>} : memref<16x32xf32, #tpu.memory_space<vmem>>, vector<1x32xf32>,
    %c10_i32 = arith.constant 10 : i32
    %190 = arith.index_cast %c10_i32 : i32 to index
    %191 = memref.load %arg0[%190] : memref<16xi32, #tpu.memory_space<smem>>
    %c0_i32_67 = arith.constant 0 : i32
    %192 = arith.addi %c0_i32_67, %191 : i32
    %193 = arith.index_cast %192 : i32 to index
    %c0_68 = arith.constant 0 : index
    %194 = vector.load %arg4[%193, %c0_68] : memref<166x32xf32, #tpu.memory_space<vmem>>, vector<1x32xf32>
    %195 = arith.index_cast %c10_i32 : i32 to index
    %196 = memref.load %arg2[%195] : memref<16xi32, #tpu.memory_space<smem>>
    %c100_i32_69 = arith.constant 100 : i32
    %197 = arith.addi %c100_i32_69, %196 : i32
    %198 = arith.index_cast %197 : i32 to index
    %c0_70 = arith.constant 0 : index
    %199 = vector.load %arg4[%198, %c0_70] : memref<166x32xf32, #tpu.memory_space<vmem>>, vector<1x32xf32>
    %200 = arith.index_cast %c10_i32 : i32 to index
    %201 = memref.load %arg1[%200] : memref<16xi32, #tpu.memory_space<smem>>
    %c164_i32_71 = arith.constant 164 : i32
    %202 = arith.addi %c164_i32_71, %201 : i32
    %203 = arith.index_cast %202 : i32 to index
    %c0_72 = arith.constant 0 : index
    %204 = vector.load %arg4[%203, %c0_72] : memref<166x32xf32, #tpu.memory_space<vmem>>, vector<1x32xf32>
    %205 = arith.addf %194, %199 : vector<1x32xf32>
    %206 = arith.addf %205, %204 : vector<1x32xf32>
    %207 = arith.index_cast %c10_i32 : i32 to index
    %c0_73 = arith.constant 0 : index
    %208 = vector.load %arg8[%207, %c0_73] : memref<16x32xf32, #tpu.memory_space<vmem>>, vector<1x32xf32>
    tpu.vector_store %arg8[%207, %c0_73], %206 {strides = array<i32>} : memref<16x32xf32, #tpu.memory_space<vmem>>, vector<1x32xf32>,
    %c11_i32 = arith.constant 11 : i32
    %209 = arith.index_cast %c11_i32 : i32 to index
    %210 = memref.load %arg0[%209] : memref<16xi32, #tpu.memory_space<smem>>
    %c0_i32_74 = arith.constant 0 : i32
    %211 = arith.addi %c0_i32_74, %210 : i32
    %212 = arith.index_cast %211 : i32 to index
    %c0_75 = arith.constant 0 : index
    %213 = vector.load %arg4[%212, %c0_75] : memref<166x32xf32, #tpu.memory_space<vmem>>, vector<1x32xf32>
    %214 = arith.index_cast %c11_i32 : i32 to index
    %215 = memref.load %arg2[%214] : memref<16xi32, #tpu.memory_space<smem>>
    %c100_i32_76 = arith.constant 100 : i32
    %216 = arith.addi %c100_i32_76, %215 : i32
    %217 = arith.index_cast %216 : i32 to index
    %c0_77 = arith.constant 0 : index
    %218 = vector.load %arg4[%217, %c0_77] : memref<166x32xf32, #tpu.memory_space<vmem>>, vector<1x32xf32>
    %219 = arith.index_cast %c11_i32 : i32 to index
    %220 = memref.load %arg1[%219] : memref<16xi32, #tpu.memory_space<smem>>
    %c164_i32_78 = arith.constant 164 : i32
    %221 = arith.addi %c164_i32_78, %220 : i32
    %222 = arith.index_cast %221 : i32 to index
    %c0_79 = arith.constant 0 : index
    %223 = vector.load %arg4[%222, %c0_79] : memref<166x32xf32, #tpu.memory_space<vmem>>, vector<1x32xf32>
    %224 = arith.addf %213, %218 : vector<1x32xf32>
    %225 = arith.addf %224, %223 : vector<1x32xf32>
    %226 = arith.index_cast %c11_i32 : i32 to index
    %c0_80 = arith.constant 0 : index
    %227 = vector.load %arg8[%226, %c0_80] : memref<16x32xf32, #tpu.memory_space<vmem>>, vector<1x32xf32>
    tpu.vector_store %arg8[%226, %c0_80], %225 {strides = array<i32>} : memref<16x32xf32, #tpu.memory_space<vmem>>, vector<1x32xf32>,
    %c12_i32 = arith.constant 12 : i32
    %228 = arith.index_cast %c12_i32 : i32 to index
    %229 = memref.load %arg0[%228] : memref<16xi32, #tpu.memory_space<smem>>
    %c0_i32_81 = arith.constant 0 : i32
    %230 = arith.addi %c0_i32_81, %229 : i32
    %231 = arith.index_cast %230 : i32 to index
    %c0_82 = arith.constant 0 : index
    %232 = vector.load %arg4[%231, %c0_82] : memref<166x32xf32, #tpu.memory_space<vmem>>, vector<1x32xf32>
    %233 = arith.index_cast %c12_i32 : i32 to index
    %234 = memref.load %arg2[%233] : memref<16xi32, #tpu.memory_space<smem>>
    %c100_i32_83 = arith.constant 100 : i32
    %235 = arith.addi %c100_i32_83, %234 : i32
    %236 = arith.index_cast %235 : i32 to index
    %c0_84 = arith.constant 0 : index
    %237 = vector.load %arg4[%236, %c0_84] : memref<166x32xf32, #tpu.memory_space<vmem>>, vector<1x32xf32>
    %238 = arith.index_cast %c12_i32 : i32 to index
    %239 = memref.load %arg1[%238] : memref<16xi32, #tpu.memory_space<smem>>
    %c164_i32_85 = arith.constant 164 : i32
    %240 = arith.addi %c164_i32_85, %239 : i32
    %241 = arith.index_cast %240 : i32 to index
    %c0_86 = arith.constant 0 : index
    %242 = vector.load %arg4[%241, %c0_86] : memref<166x32xf32, #tpu.memory_space<vmem>>, vector<1x32xf32>
    %243 = arith.addf %232, %237 : vector<1x32xf32>
    %244 = arith.addf %243, %242 : vector<1x32xf32>
    %245 = arith.index_cast %c12_i32 : i32 to index
    %c0_87 = arith.constant 0 : index
    %246 = vector.load %arg8[%245, %c0_87] : memref<16x32xf32, #tpu.memory_space<vmem>>, vector<1x32xf32>
    tpu.vector_store %arg8[%245, %c0_87], %244 {strides = array<i32>} : memref<16x32xf32, #tpu.memory_space<vmem>>, vector<1x32xf32>,
    %c13_i32 = arith.constant 13 : i32
    %247 = arith.index_cast %c13_i32 : i32 to index
    %248 = memref.load %arg0[%247] : memref<16xi32, #tpu.memory_space<smem>>
    %c0_i32_88 = arith.constant 0 : i32
    %249 = arith.addi %c0_i32_88, %248 : i32
    %250 = arith.index_cast %249 : i32 to index
    %c0_89 = arith.constant 0 : index
    %251 = vector.load %arg4[%250, %c0_89] : memref<166x32xf32, #tpu.memory_space<vmem>>, vector<1x32xf32>
    %252 = arith.index_cast %c13_i32 : i32 to index
    %253 = memref.load %arg2[%252] : memref<16xi32, #tpu.memory_space<smem>>
    %c100_i32_90 = arith.constant 100 : i32
    %254 = arith.addi %c100_i32_90, %253 : i32
    %255 = arith.index_cast %254 : i32 to index
    %c0_91 = arith.constant 0 : index
    %256 = vector.load %arg4[%255, %c0_91] : memref<166x32xf32, #tpu.memory_space<vmem>>, vector<1x32xf32>
    %257 = arith.index_cast %c13_i32 : i32 to index
    %258 = memref.load %arg1[%257] : memref<16xi32, #tpu.memory_space<smem>>
    %c164_i32_92 = arith.constant 164 : i32
    %259 = arith.addi %c164_i32_92, %258 : i32
    %260 = arith.index_cast %259 : i32 to index
    %c0_93 = arith.constant 0 : index
    %261 = vector.load %arg4[%260, %c0_93] : memref<166x32xf32, #tpu.memory_space<vmem>>, vector<1x32xf32>
    %262 = arith.addf %251, %256 : vector<1x32xf32>
    %263 = arith.addf %262, %261 : vector<1x32xf32>
    %264 = arith.index_cast %c13_i32 : i32 to index
    %c0_94 = arith.constant 0 : index
    %265 = vector.load %arg8[%264, %c0_94] : memref<16x32xf32, #tpu.memory_space<vmem>>, vector<1x32xf32>
    tpu.vector_store %arg8[%264, %c0_94], %263 {strides = array<i32>} : memref<16x32xf32, #tpu.memory_space<vmem>>, vector<1x32xf32>,
    %c14_i32 = arith.constant 14 : i32
    %266 = arith.index_cast %c14_i32 : i32 to index
    %267 = memref.load %arg0[%266] : memref<16xi32, #tpu.memory_space<smem>>
    %c0_i32_95 = arith.constant 0 : i32
    %268 = arith.addi %c0_i32_95, %267 : i32
    %269 = arith.index_cast %268 : i32 to index
    %c0_96 = arith.constant 0 : index
    %270 = vector.load %arg4[%269, %c0_96] : memref<166x32xf32, #tpu.memory_space<vmem>>, vector<1x32xf32>
    %271 = arith.index_cast %c14_i32 : i32 to index
    %272 = memref.load %arg2[%271] : memref<16xi32, #tpu.memory_space<smem>>
    %c100_i32_97 = arith.constant 100 : i32
    %273 = arith.addi %c100_i32_97, %272 : i32
    %274 = arith.index_cast %273 : i32 to index
    %c0_98 = arith.constant 0 : index
    %275 = vector.load %arg4[%274, %c0_98] : memref<166x32xf32, #tpu.memory_space<vmem>>, vector<1x32xf32>
    %276 = arith.index_cast %c14_i32 : i32 to index
    %277 = memref.load %arg1[%276] : memref<16xi32, #tpu.memory_space<smem>>
    %c164_i32_99 = arith.constant 164 : i32
    %278 = arith.addi %c164_i32_99, %277 : i32
    %279 = arith.index_cast %278 : i32 to index
    %c0_100 = arith.constant 0 : index
    %280 = vector.load %arg4[%279, %c0_100] : memref<166x32xf32, #tpu.memory_space<vmem>>, vector<1x32xf32>
    %281 = arith.addf %270, %275 : vector<1x32xf32>
    %282 = arith.addf %281, %280 : vector<1x32xf32>
    %283 = arith.index_cast %c14_i32 : i32 to index
    %c0_101 = arith.constant 0 : index
    %284 = vector.load %arg8[%283, %c0_101] : memref<16x32xf32, #tpu.memory_space<vmem>>, vector<1x32xf32>
    tpu.vector_store %arg8[%283, %c0_101], %282 {strides = array<i32>} : memref<16x32xf32, #tpu.memory_space<vmem>>, vector<1x32xf32>,
    %c15_i32 = arith.constant 15 : i32
    %285 = arith.index_cast %c15_i32 : i32 to index
    %286 = memref.load %arg0[%285] : memref<16xi32, #tpu.memory_space<smem>>
    %c0_i32_102 = arith.constant 0 : i32
    %287 = arith.addi %c0_i32_102, %286 : i32
    %288 = arith.index_cast %287 : i32 to index
    %c0_103 = arith.constant 0 : index
    %289 = vector.load %arg4[%288, %c0_103] : memref<166x32xf32, #tpu.memory_space<vmem>>, vector<1x32xf32>
    %290 = arith.index_cast %c15_i32 : i32 to index
    %291 = memref.load %arg2[%290] : memref<16xi32, #tpu.memory_space<smem>>
    %c100_i32_104 = arith.constant 100 : i32
    %292 = arith.addi %c100_i32_104, %291 : i32
    %293 = arith.index_cast %292 : i32 to index
    %c0_105 = arith.constant 0 : index
    %294 = vector.load %arg4[%293, %c0_105] : memref<166x32xf32, #tpu.memory_space<vmem>>, vector<1x32xf32>
    %295 = arith.index_cast %c15_i32 : i32 to index
    %296 = memref.load %arg1[%295] : memref<16xi32, #tpu.memory_space<smem>>
    %c164_i32_106 = arith.constant 164 : i32
    %297 = arith.addi %c164_i32_106, %296 : i32
    %298 = arith.index_cast %297 : i32 to index
    %c0_107 = arith.constant 0 : index
    %299 = vector.load %arg4[%298, %c0_107] : memref<166x32xf32, #tpu.memory_space<vmem>>, vector<1x32xf32>
    %300 = arith.addf %289, %294 : vector<1x32xf32>
    %301 = arith.addf %300, %299 : vector<1x32xf32>
    %302 = arith.index_cast %c15_i32 : i32 to index
    %c0_108 = arith.constant 0 : index
    %303 = vector.load %arg8[%302, %c0_108] : memref<16x32xf32, #tpu.memory_space<vmem>>, vector<1x32xf32>
    tpu.vector_store %arg8[%302, %c0_108], %301 {strides = array<i32>} : memref<16x32xf32, #tpu.memory_space<vmem>>, vector<1x32xf32>,
    %c16_i32 = arith.constant 16 : i32
    %c0_109 = arith.constant 0 : index
    %c0_110 = arith.constant 0 : index
    %304 = vector.load %arg8[%c0_109, %c0_110] : memref<16x32xf32, #tpu.memory_space<vmem>>, vector<16x32xf32>
    %c0_111 = arith.constant 0 : index
    %c0_112 = arith.constant 0 : index
    %305 = vector.load %arg6[%c0_111, %c0_112] : memref<19x128xf32, #tpu.memory_space<vmem>>, vector<1x32xf32>
    %c1 = arith.constant 1 : index
    %c0_113 = arith.constant 0 : index
    %306 = vector.load %arg6[%c1, %c0_113] : memref<19x128xf32, #tpu.memory_space<vmem>>, vector<1x32xf32>
    %cst = arith.constant dense<0.000000e+00> : vector<16xf32>
    %307 = vector.multi_reduction <add>, %304, %cst [1] : vector<16x32xf32> to vector<16xf32>
    %308 = vector.shape_cast %307 : vector<16xf32> to vector<16x1xf32>
    %cst_114 = arith.constant 3.200000e+01 : f32
    %309 = vector.broadcast %cst_114 : f32 to vector<16x1xf32>
    %310 = arith.divf %308, %309 : vector<16x1xf32>
    %311 = vector.broadcast %310 : vector<16x1xf32> to vector<16x32xf32>
    %312 = arith.subf %304, %311 : vector<16x32xf32>
    %313 = arith.mulf %312, %312 : vector<16x32xf32>
    %cst_115 = arith.constant dense<0.000000e+00> : vector<16xf32>
    %314 = vector.multi_reduction <add>, %313, %cst_115 [1] : vector<16x32xf32> to vector<16xf32>
    %315 = vector.shape_cast %314 : vector<16xf32> to vector<16x1xf32>
    %cst_116 = arith.constant 3.200000e+01 : f32
    %316 = vector.broadcast %cst_116 : f32 to vector<16x1xf32>
    %317 = arith.divf %315, %316 : vector<16x1xf32>
    %cst_117 = arith.constant 9.99999996E-13 : f32
    %318 = vector.broadcast %cst_117 : f32 to vector<16x1xf32>
    %319 = arith.addf %317, %318 : vector<16x1xf32>
    %320 = math.rsqrt %319 : vector<16x1xf32>
    %321 = vector.broadcast %320 : vector<16x1xf32> to vector<16x32xf32>
    %322 = arith.mulf %312, %321 : vector<16x32xf32>
    %323 = vector.broadcast %305 : vector<1x32xf32> to vector<16x32xf32>
    %324 = arith.mulf %322, %323 : vector<16x32xf32>
    %325 = vector.broadcast %306 : vector<1x32xf32> to vector<16x32xf32>
    %326 = arith.addf %324, %325 : vector<16x32xf32>
    %327 = tpu.iota {dimensions = array<i32: 0>} : vector<16x1xi32>
    %328 = tpu.iota {dimensions = array<i32: 1>} : vector<1x16xi32>
    %c0_i32_118 = arith.constant 0 : i32
    %329 = vector.broadcast %c0_i32_118 : i32 to vector<16x1xi32>
    %c0_i32_119 = arith.constant 0 : i32
    %330 = vector.broadcast %c0_i32_119 : i32 to vector<1x16xi32>
    %c1_120 = arith.constant 1 : index
    %331 = memref.load %arg3[%c1_120] : memref<3xi32, #tpu.memory_space<smem>>
    %332 = vector.broadcast %331 : i32 to vector<16x1xi32>
    %333 = arith.cmpi sge, %327, %332 : vector<16x1xi32>
    %334 = arith.extui %333 : vector<16x1xi1> to vector<16x1xi32>
    %335 = arith.addi %329, %334 : vector<16x1xi32>
    %336 = vector.broadcast %331 : i32 to vector<1x16xi32>
    %337 = arith.cmpi sge, %328, %336 : vector<1x16xi32>
    %338 = arith.extui %337 : vector<1x16xi1> to vector<1x16xi32>
    %339 = arith.addi %330, %338 : vector<1x16xi32>
    %c2 = arith.constant 2 : index
    %340 = memref.load %arg3[%c2] : memref<3xi32, #tpu.memory_space<smem>>
    %341 = vector.broadcast %340 : i32 to vector<16x1xi32>
    %342 = arith.cmpi sge, %327, %341 : vector<16x1xi32>
    %343 = arith.extui %342 : vector<16x1xi1> to vector<16x1xi32>
    %344 = arith.addi %335, %343 : vector<16x1xi32>
    %345 = vector.broadcast %340 : i32 to vector<1x16xi32>
    %346 = arith.cmpi sge, %328, %345 : vector<1x16xi32>
    %347 = arith.extui %346 : vector<1x16xi1> to vector<1x16xi32>
    %348 = arith.addi %339, %347 : vector<1x16xi32>
    %349 = vector.broadcast %344 : vector<16x1xi32> to vector<16x16xi32>
    %350 = vector.broadcast %348 : vector<1x16xi32> to vector<16x16xi32>
    %351 = arith.cmpi eq, %349, %350 : vector<16x16xi32>
    %cst_121 = arith.constant 0.000000e+00 : f32
    %cst_122 = arith.constant -1.000000e+30 : f32
    %352 = vector.broadcast %cst_121 : f32 to vector<16x16xf32>
    %353 = vector.broadcast %cst_122 : f32 to vector<16x16xf32>
    %354 = arith.select %351, %352, %353 : vector<16x16xi1>, vector<16x16xf32>
    %c0_123 = arith.constant 0 : index
    %c0_124 = arith.constant 0 : index
    %355 = vector.load %arg5[%c0_123, %c0_124] : memref<352x128xf32, #tpu.memory_space<vmem>>, vector<32x96xf32>
    %cst_125 = arith.constant dense<0.000000e+00> : vector<16x96xf32>
    %356 = tpu.matmul %326, %355, %cst_125 {dimension_numbers = #tpu.dot_dimension_numbers<[1], [0], [0], [1], [0, 0, 1, 1], [], []>} : vector<16x32xf32>, vector<32x96xf32>, vector<16x96xf32> -> vector<16x96xf32>
    %c2_126 = arith.constant 2 : index
    %c0_127 = arith.constant 0 : index
    %357 = vector.load %arg6[%c2_126, %c0_127] : memref<19x128xf32, #tpu.memory_space<vmem>>, vector<1x96xf32>
    %358 = vector.broadcast %357 : vector<1x96xf32> to vector<16x96xf32>
    %359 = arith.addf %356, %358 : vector<16x96xf32>
    %360 = vector.extract_strided_slice %359 {offsets = [0, 0], sizes = [16, 8], strides = [1, 1]} : vector<16x96xf32> to vector<16x8xf32>
    %361 = vector.extract_strided_slice %359 {offsets = [0, 32], sizes = [16, 8], strides = [1, 1]} : vector<16x96xf32> to vector<16x8xf32>
    %362 = vector.extract_strided_slice %359 {offsets = [0, 64], sizes = [16, 8], strides = [1, 1]} : vector<16x96xf32> to vector<16x8xf32>
    %cst_128 = arith.constant dense<0.000000e+00> : vector<16x16xf32>
    %363 = tpu.matmul %360, %361, %cst_128 {dimension_numbers = #tpu.dot_dimension_numbers<[1], [1], [0], [0], [0, 0, 1, 0], [], []>} : vector<16x8xf32>, vector<16x8xf32>, vector<16x16xf32> -> vector<16x16xf32>
    %364 = arith.addf %363, %354 : vector<16x16xf32>
    %cst_129 = arith.constant dense<0xFF800000> : vector<16xf32>
    %365 = vector.multi_reduction <maximumf>, %364, %cst_129 [1] : vector<16x16xf32> to vector<16xf32>
    %366 = vector.shape_cast %365 : vector<16xf32> to vector<16x1xf32>
    %367 = vector.broadcast %366 : vector<16x1xf32> to vector<16x16xf32>
    %368 = arith.subf %364, %367 : vector<16x16xf32>
    %369 = math.exp %368 : vector<16x16xf32>
    %cst_130 = arith.constant dense<0.000000e+00> : vector<16xf32>
    %370 = vector.multi_reduction <add>, %369, %cst_130 [1] : vector<16x16xf32> to vector<16xf32>
    %371 = vector.shape_cast %370 : vector<16xf32> to vector<16x1xf32>
    %372 = tpu.reciprocal %371 {approx = true} : vector<16x1xf32> -> vector<16x1xf32>
    %373 = vector.broadcast %372 : vector<16x1xf32> to vector<16x16xf32>
    %374 = arith.mulf %369, %373 : vector<16x16xf32>
    %cst_131 = arith.constant dense<0.000000e+00> : vector<16x8xf32>
    %375 = tpu.matmul %374, %362, %cst_131 {dimension_numbers = #tpu.dot_dimension_numbers<[1], [0], [0], [1], [0, 0, 1, 1], [], []>} : vector<16x16xf32>, vector<16x8xf32>, vector<16x8xf32> -> vector<16x8xf32>
    %c32 = arith.constant 32 : index
    %c0_132 = arith.constant 0 : index
    %376 = vector.load %arg5[%c32, %c0_132] : memref<352x128xf32, #tpu.memory_space<vmem>>, vector<8x32xf32>
    %cst_133 = arith.constant dense<0.000000e+00> : vector<16x32xf32>
    %377 = tpu.matmul %375, %376, %cst_133 {dimension_numbers = #tpu.dot_dimension_numbers<[1], [0], [0], [1], [0, 0, 1, 1], [], []>} : vector<16x8xf32>, vector<8x32xf32>, vector<16x32xf32> -> vector<16x32xf32>
    %378 = vector.extract_strided_slice %359 {offsets = [0, 8], sizes = [16, 8], strides = [1, 1]} : vector<16x96xf32> to vector<16x8xf32>
    %379 = vector.extract_strided_slice %359 {offsets = [0, 40], sizes = [16, 8], strides = [1, 1]} : vector<16x96xf32> to vector<16x8xf32>
    %380 = vector.extract_strided_slice %359 {offsets = [0, 72], sizes = [16, 8], strides = [1, 1]} : vector<16x96xf32> to vector<16x8xf32>
    %cst_134 = arith.constant dense<0.000000e+00> : vector<16x16xf32>
    %381 = tpu.matmul %378, %379, %cst_134 {dimension_numbers = #tpu.dot_dimension_numbers<[1], [1], [0], [0], [0, 0, 1, 0], [], []>} : vector<16x8xf32>, vector<16x8xf32>, vector<16x16xf32> -> vector<16x16xf32>
    %382 = arith.addf %381, %354 : vector<16x16xf32>
    %cst_135 = arith.constant dense<0xFF800000> : vector<16xf32>
    %383 = vector.multi_reduction <maximumf>, %382, %cst_135 [1] : vector<16x16xf32> to vector<16xf32>
    %384 = vector.shape_cast %383 : vector<16xf32> to vector<16x1xf32>
    %385 = vector.broadcast %384 : vector<16x1xf32> to vector<16x16xf32>
    %386 = arith.subf %382, %385 : vector<16x16xf32>
    %387 = math.exp %386 : vector<16x16xf32>
    %cst_136 = arith.constant dense<0.000000e+00> : vector<16xf32>
    %388 = vector.multi_reduction <add>, %387, %cst_136 [1] : vector<16x16xf32> to vector<16xf32>
    %389 = vector.shape_cast %388 : vector<16xf32> to vector<16x1xf32>
    %390 = tpu.reciprocal %389 {approx = true} : vector<16x1xf32> -> vector<16x1xf32>
    %391 = vector.broadcast %390 : vector<16x1xf32> to vector<16x16xf32>
    %392 = arith.mulf %387, %391 : vector<16x16xf32>
    %cst_137 = arith.constant dense<0.000000e+00> : vector<16x8xf32>
    %393 = tpu.matmul %392, %380, %cst_137 {dimension_numbers = #tpu.dot_dimension_numbers<[1], [0], [0], [1], [0, 0, 1, 1], [], []>} : vector<16x16xf32>, vector<16x8xf32>, vector<16x8xf32> -> vector<16x8xf32>
    %c40 = arith.constant 40 : index
    %c0_138 = arith.constant 0 : index
    %394 = vector.load %arg5[%c40, %c0_138] : memref<352x128xf32, #tpu.memory_space<vmem>>, vector<8x32xf32>
    %cst_139 = arith.constant dense<0.000000e+00> : vector<16x32xf32>
    %395 = tpu.matmul %393, %394, %cst_139 {dimension_numbers = #tpu.dot_dimension_numbers<[1], [0], [0], [1], [0, 0, 1, 1], [], []>} : vector<16x8xf32>, vector<8x32xf32>, vector<16x32xf32> -> vector<16x32xf32>
    %396 = arith.addf %377, %395 : vector<16x32xf32>
    %397 = vector.extract_strided_slice %359 {offsets = [0, 16], sizes = [16, 8], strides = [1, 1]} : vector<16x96xf32> to vector<16x8xf32>
    %398 = vector.extract_strided_slice %359 {offsets = [0, 48], sizes = [16, 8], strides = [1, 1]} : vector<16x96xf32> to vector<16x8xf32>
    %399 = vector.extract_strided_slice %359 {offsets = [0, 80], sizes = [16, 8], strides = [1, 1]} : vector<16x96xf32> to vector<16x8xf32>
    %cst_140 = arith.constant dense<0.000000e+00> : vector<16x16xf32>
    %400 = tpu.matmul %397, %398, %cst_140 {dimension_numbers = #tpu.dot_dimension_numbers<[1], [1], [0], [0], [0, 0, 1, 0], [], []>} : vector<16x8xf32>, vector<16x8xf32>, vector<16x16xf32> -> vector<16x16xf32>
    %401 = arith.addf %400, %354 : vector<16x16xf32>
    %cst_141 = arith.constant dense<0xFF800000> : vector<16xf32>
    %402 = vector.multi_reduction <maximumf>, %401, %cst_141 [1] : vector<16x16xf32> to vector<16xf32>
    %403 = vector.shape_cast %402 : vector<16xf32> to vector<16x1xf32>
    %404 = vector.broadcast %403 : vector<16x1xf32> to vector<16x16xf32>
    %405 = arith.subf %401, %404 : vector<16x16xf32>
    %406 = math.exp %405 : vector<16x16xf32>
    %cst_142 = arith.constant dense<0.000000e+00> : vector<16xf32>
    %407 = vector.multi_reduction <add>, %406, %cst_142 [1] : vector<16x16xf32> to vector<16xf32>
    %408 = vector.shape_cast %407 : vector<16xf32> to vector<16x1xf32>
    %409 = tpu.reciprocal %408 {approx = true} : vector<16x1xf32> -> vector<16x1xf32>
    %410 = vector.broadcast %409 : vector<16x1xf32> to vector<16x16xf32>
    %411 = arith.mulf %406, %410 : vector<16x16xf32>
    %cst_143 = arith.constant dense<0.000000e+00> : vector<16x8xf32>
    %412 = tpu.matmul %411, %399, %cst_143 {dimension_numbers = #tpu.dot_dimension_numbers<[1], [0], [0], [1], [0, 0, 1, 1], [], []>} : vector<16x16xf32>, vector<16x8xf32>, vector<16x8xf32> -> vector<16x8xf32>
    %c48 = arith.constant 48 : index
    %c0_144 = arith.constant 0 : index
    %413 = vector.load %arg5[%c48, %c0_144] : memref<352x128xf32, #tpu.memory_space<vmem>>, vector<8x32xf32>
    %cst_145 = arith.constant dense<0.000000e+00> : vector<16x32xf32>
    %414 = tpu.matmul %412, %413, %cst_145 {dimension_numbers = #tpu.dot_dimension_numbers<[1], [0], [0], [1], [0, 0, 1, 1], [], []>} : vector<16x8xf32>, vector<8x32xf32>, vector<16x32xf32> -> vector<16x32xf32>
    %415 = arith.addf %396, %414 : vector<16x32xf32>
    %416 = vector.extract_strided_slice %359 {offsets = [0, 24], sizes = [16, 8], strides = [1, 1]} : vector<16x96xf32> to vector<16x8xf32>
    %417 = vector.extract_strided_slice %359 {offsets = [0, 56], sizes = [16, 8], strides = [1, 1]} : vector<16x96xf32> to vector<16x8xf32>
    %418 = vector.extract_strided_slice %359 {offsets = [0, 88], sizes = [16, 8], strides = [1, 1]} : vector<16x96xf32> to vector<16x8xf32>
    %cst_146 = arith.constant dense<0.000000e+00> : vector<16x16xf32>
    %419 = tpu.matmul %416, %417, %cst_146 {dimension_numbers = #tpu.dot_dimension_numbers<[1], [1], [0], [0], [0, 0, 1, 0], [], []>} : vector<16x8xf32>, vector<16x8xf32>, vector<16x16xf32> -> vector<16x16xf32>
    %420 = arith.addf %419, %354 : vector<16x16xf32>
    %cst_147 = arith.constant dense<0xFF800000> : vector<16xf32>
    %421 = vector.multi_reduction <maximumf>, %420, %cst_147 [1] : vector<16x16xf32> to vector<16xf32>
    %422 = vector.shape_cast %421 : vector<16xf32> to vector<16x1xf32>
    %423 = vector.broadcast %422 : vector<16x1xf32> to vector<16x16xf32>
    %424 = arith.subf %420, %423 : vector<16x16xf32>
    %425 = math.exp %424 : vector<16x16xf32>
    %cst_148 = arith.constant dense<0.000000e+00> : vector<16xf32>
    %426 = vector.multi_reduction <add>, %425, %cst_148 [1] : vector<16x16xf32> to vector<16xf32>
    %427 = vector.shape_cast %426 : vector<16xf32> to vector<16x1xf32>
    %428 = tpu.reciprocal %427 {approx = true} : vector<16x1xf32> -> vector<16x1xf32>
    %429 = vector.broadcast %428 : vector<16x1xf32> to vector<16x16xf32>
    %430 = arith.mulf %425, %429 : vector<16x16xf32>
    %cst_149 = arith.constant dense<0.000000e+00> : vector<16x8xf32>
    %431 = tpu.matmul %430, %418, %cst_149 {dimension_numbers = #tpu.dot_dimension_numbers<[1], [0], [0], [1], [0, 0, 1, 1], [], []>} : vector<16x16xf32>, vector<16x8xf32>, vector<16x8xf32> -> vector<16x8xf32>
    %c56 = arith.constant 56 : index
    %c0_150 = arith.constant 0 : index
    %432 = vector.load %arg5[%c56, %c0_150] : memref<352x128xf32, #tpu.memory_space<vmem>>, vector<8x32xf32>
    %cst_151 = arith.constant dense<0.000000e+00> : vector<16x32xf32>
    %433 = tpu.matmul %431, %432, %cst_151 {dimension_numbers = #tpu.dot_dimension_numbers<[1], [0], [0], [1], [0, 0, 1, 1], [], []>} : vector<16x8xf32>, vector<8x32xf32>, vector<16x32xf32> -> vector<16x32xf32>
    %434 = arith.addf %415, %433 : vector<16x32xf32>
    %c3 = arith.constant 3 : index
    %c0_152 = arith.constant 0 : index
    %435 = vector.load %arg6[%c3, %c0_152] : memref<19x128xf32, #tpu.memory_space<vmem>>, vector<1x32xf32>
    %436 = vector.broadcast %435 : vector<1x32xf32> to vector<16x32xf32>
    %437 = arith.addf %434, %436 : vector<16x32xf32>
    %438 = arith.addf %437, %326 : vector<16x32xf32>
    %c4 = arith.constant 4 : index
    %c0_153 = arith.constant 0 : index
    %439 = vector.load %arg6[%c4, %c0_153] : memref<19x128xf32, #tpu.memory_space<vmem>>, vector<1x32xf32>
    %c5 = arith.constant 5 : index
    %c0_154 = arith.constant 0 : index
    %440 = vector.load %arg6[%c5, %c0_154] : memref<19x128xf32, #tpu.memory_space<vmem>>, vector<1x32xf32>
    %cst_155 = arith.constant dense<0.000000e+00> : vector<16xf32>
    %441 = vector.multi_reduction <add>, %438, %cst_155 [1] : vector<16x32xf32> to vector<16xf32>
    %442 = vector.shape_cast %441 : vector<16xf32> to vector<16x1xf32>
    %cst_156 = arith.constant 3.200000e+01 : f32
    %443 = vector.broadcast %cst_156 : f32 to vector<16x1xf32>
    %444 = arith.divf %442, %443 : vector<16x1xf32>
    %445 = vector.broadcast %444 : vector<16x1xf32> to vector<16x32xf32>
    %446 = arith.subf %438, %445 : vector<16x32xf32>
    %447 = arith.mulf %446, %446 : vector<16x32xf32>
    %cst_157 = arith.constant dense<0.000000e+00> : vector<16xf32>
    %448 = vector.multi_reduction <add>, %447, %cst_157 [1] : vector<16x32xf32> to vector<16xf32>
    %449 = vector.shape_cast %448 : vector<16xf32> to vector<16x1xf32>
    %cst_158 = arith.constant 3.200000e+01 : f32
    %450 = vector.broadcast %cst_158 : f32 to vector<16x1xf32>
    %451 = arith.divf %449, %450 : vector<16x1xf32>
    %cst_159 = arith.constant 9.99999996E-13 : f32
    %452 = vector.broadcast %cst_159 : f32 to vector<16x1xf32>
    %453 = arith.addf %451, %452 : vector<16x1xf32>
    %454 = math.rsqrt %453 : vector<16x1xf32>
    %455 = vector.broadcast %454 : vector<16x1xf32> to vector<16x32xf32>
    %456 = arith.mulf %446, %455 : vector<16x32xf32>
    %457 = vector.broadcast %439 : vector<1x32xf32> to vector<16x32xf32>
    %458 = arith.mulf %456, %457 : vector<16x32xf32>
    %459 = vector.broadcast %440 : vector<1x32xf32> to vector<16x32xf32>
    %460 = arith.addf %458, %459 : vector<16x32xf32>
    %c64 = arith.constant 64 : index
    %c0_160 = arith.constant 0 : index
    %461 = vector.load %arg5[%c64, %c0_160] : memref<352x128xf32, #tpu.memory_space<vmem>>, vector<32x64xf32>
    %cst_161 = arith.constant dense<0.000000e+00> : vector<16x64xf32>
    %462 = tpu.matmul %460, %461, %cst_161 {dimension_numbers = #tpu.dot_dimension_numbers<[1], [0], [0], [1], [0, 0, 1, 1], [], []>} : vector<16x32xf32>, vector<32x64xf32>, vector<16x64xf32> -> vector<16x64xf32>
    %c6 = arith.constant 6 : index
    %c0_162 = arith.constant 0 : index
    %463 = vector.load %arg6[%c6, %c0_162] : memref<19x128xf32, #tpu.memory_space<vmem>>, vector<1x64xf32>
    %464 = vector.broadcast %463 : vector<1x64xf32> to vector<16x64xf32>
    %465 = arith.addf %462, %464 : vector<16x64xf32>
    %466 = arith.mulf %465, %465 : vector<16x64xf32>
    %467 = arith.mulf %465, %466 : vector<16x64xf32>
    %cst_163 = arith.constant 4.471500e-02 : f32
    %468 = vector.broadcast %cst_163 : f32 to vector<16x64xf32>
    %469 = arith.mulf %468, %467 : vector<16x64xf32>
    %470 = arith.addf %465, %469 : vector<16x64xf32>
    %cst_164 = arith.constant 0.797884583 : f32
    %471 = vector.broadcast %cst_164 : f32 to vector<16x64xf32>
    %472 = arith.mulf %471, %470 : vector<16x64xf32>
    %473 = math.tanh %472 : vector<16x64xf32>
    %cst_165 = arith.constant 1.000000e+00 : f32
    %474 = vector.broadcast %cst_165 : f32 to vector<16x64xf32>
    %475 = arith.addf %474, %473 : vector<16x64xf32>
    %cst_166 = arith.constant 5.000000e-01 : f32
    %476 = vector.broadcast %cst_166 : f32 to vector<16x64xf32>
    %477 = arith.mulf %476, %475 : vector<16x64xf32>
    %478 = arith.mulf %465, %477 : vector<16x64xf32>
    %c96 = arith.constant 96 : index
    %c0_167 = arith.constant 0 : index
    %479 = vector.load %arg5[%c96, %c0_167] : memref<352x128xf32, #tpu.memory_space<vmem>>, vector<64x32xf32>
    %cst_168 = arith.constant dense<0.000000e+00> : vector<16x32xf32>
    %480 = tpu.matmul %478, %479, %cst_168 {dimension_numbers = #tpu.dot_dimension_numbers<[1], [0], [0], [1], [0, 0, 1, 1], [], []>} : vector<16x64xf32>, vector<64x32xf32>, vector<16x32xf32> -> vector<16x32xf32>
    %c7 = arith.constant 7 : index
    %c0_169 = arith.constant 0 : index
    %481 = vector.load %arg6[%c7, %c0_169] : memref<19x128xf32, #tpu.memory_space<vmem>>, vector<1x32xf32>
    %482 = vector.broadcast %481 : vector<1x32xf32> to vector<16x32xf32>
    %483 = arith.addf %480, %482 : vector<16x32xf32>
    %484 = arith.addf %483, %460 : vector<16x32xf32>
    %c8 = arith.constant 8 : index
    %c0_170 = arith.constant 0 : index
    %485 = vector.load %arg6[%c8, %c0_170] : memref<19x128xf32, #tpu.memory_space<vmem>>, vector<1x32xf32>
    %c9 = arith.constant 9 : index
    %c0_171 = arith.constant 0 : index
    %486 = vector.load %arg6[%c9, %c0_171] : memref<19x128xf32, #tpu.memory_space<vmem>>, vector<1x32xf32>
    %cst_172 = arith.constant dense<0.000000e+00> : vector<16xf32>
    %487 = vector.multi_reduction <add>, %484, %cst_172 [1] : vector<16x32xf32> to vector<16xf32>
    %488 = vector.shape_cast %487 : vector<16xf32> to vector<16x1xf32>
    %cst_173 = arith.constant 3.200000e+01 : f32
    %489 = vector.broadcast %cst_173 : f32 to vector<16x1xf32>
    %490 = arith.divf %488, %489 : vector<16x1xf32>
    %491 = vector.broadcast %490 : vector<16x1xf32> to vector<16x32xf32>
    %492 = arith.subf %484, %491 : vector<16x32xf32>
    %493 = arith.mulf %492, %492 : vector<16x32xf32>
    %cst_174 = arith.constant dense<0.000000e+00> : vector<16xf32>
    %494 = vector.multi_reduction <add>, %493, %cst_174 [1] : vector<16x32xf32> to vector<16xf32>
    %495 = vector.shape_cast %494 : vector<16xf32> to vector<16x1xf32>
    %cst_175 = arith.constant 3.200000e+01 : f32
    %496 = vector.broadcast %cst_175 : f32 to vector<16x1xf32>
    %497 = arith.divf %495, %496 : vector<16x1xf32>
    %cst_176 = arith.constant 9.99999996E-13 : f32
    %498 = vector.broadcast %cst_176 : f32 to vector<16x1xf32>
    %499 = arith.addf %497, %498 : vector<16x1xf32>
    %500 = math.rsqrt %499 : vector<16x1xf32>
    %501 = vector.broadcast %500 : vector<16x1xf32> to vector<16x32xf32>
    %502 = arith.mulf %492, %501 : vector<16x32xf32>
    %503 = vector.broadcast %485 : vector<1x32xf32> to vector<16x32xf32>
    %504 = arith.mulf %502, %503 : vector<16x32xf32>
    %505 = vector.broadcast %486 : vector<1x32xf32> to vector<16x32xf32>
    %506 = arith.addf %504, %505 : vector<16x32xf32>
    %c160 = arith.constant 160 : index
    %c0_177 = arith.constant 0 : index
    %507 = vector.load %arg5[%c160, %c0_177] : memref<352x128xf32, #tpu.memory_space<vmem>>, vector<32x96xf32>
    %cst_178 = arith.constant dense<0.000000e+00> : vector<16x96xf32>
    %508 = tpu.matmul %506, %507, %cst_178 {dimension_numbers = #tpu.dot_dimension_numbers<[1], [0], [0], [1], [0, 0, 1, 1], [], []>} : vector<16x32xf32>, vector<32x96xf32>, vector<16x96xf32> -> vector<16x96xf32>
    %c10 = arith.constant 10 : index
    %c0_179 = arith.constant 0 : index
    %509 = vector.load %arg6[%c10, %c0_179] : memref<19x128xf32, #tpu.memory_space<vmem>>, vector<1x96xf32>
    %510 = vector.broadcast %509 : vector<1x96xf32> to vector<16x96xf32>
    %511 = arith.addf %508, %510 : vector<16x96xf32>
    %512 = vector.extract_strided_slice %511 {offsets = [0, 0], sizes = [16, 8], strides = [1, 1]} : vector<16x96xf32> to vector<16x8xf32>
    %513 = vector.extract_strided_slice %511 {offsets = [0, 32], sizes = [16, 8], strides = [1, 1]} : vector<16x96xf32> to vector<16x8xf32>
    %514 = vector.extract_strided_slice %511 {offsets = [0, 64], sizes = [16, 8], strides = [1, 1]} : vector<16x96xf32> to vector<16x8xf32>
    %cst_180 = arith.constant dense<0.000000e+00> : vector<16x16xf32>
    %515 = tpu.matmul %512, %513, %cst_180 {dimension_numbers = #tpu.dot_dimension_numbers<[1], [1], [0], [0], [0, 0, 1, 0], [], []>} : vector<16x8xf32>, vector<16x8xf32>, vector<16x16xf32> -> vector<16x16xf32>
    %516 = arith.addf %515, %354 : vector<16x16xf32>
    %cst_181 = arith.constant dense<0xFF800000> : vector<16xf32>
    %517 = vector.multi_reduction <maximumf>, %516, %cst_181 [1] : vector<16x16xf32> to vector<16xf32>
    %518 = vector.shape_cast %517 : vector<16xf32> to vector<16x1xf32>
    %519 = vector.broadcast %518 : vector<16x1xf32> to vector<16x16xf32>
    %520 = arith.subf %516, %519 : vector<16x16xf32>
    %521 = math.exp %520 : vector<16x16xf32>
    %cst_182 = arith.constant dense<0.000000e+00> : vector<16xf32>
    %522 = vector.multi_reduction <add>, %521, %cst_182 [1] : vector<16x16xf32> to vector<16xf32>
    %523 = vector.shape_cast %522 : vector<16xf32> to vector<16x1xf32>
    %524 = tpu.reciprocal %523 {approx = true} : vector<16x1xf32> -> vector<16x1xf32>
    %525 = vector.broadcast %524 : vector<16x1xf32> to vector<16x16xf32>
    %526 = arith.mulf %521, %525 : vector<16x16xf32>
    %cst_183 = arith.constant dense<0.000000e+00> : vector<16x8xf32>
    %527 = tpu.matmul %526, %514, %cst_183 {dimension_numbers = #tpu.dot_dimension_numbers<[1], [0], [0], [1], [0, 0, 1, 1], [], []>} : vector<16x16xf32>, vector<16x8xf32>, vector<16x8xf32> -> vector<16x8xf32>
    %c192 = arith.constant 192 : index
    %c0_184 = arith.constant 0 : index
    %528 = vector.load %arg5[%c192, %c0_184] : memref<352x128xf32, #tpu.memory_space<vmem>>, vector<8x32xf32>
    %cst_185 = arith.constant dense<0.000000e+00> : vector<16x32xf32>
    %529 = tpu.matmul %527, %528, %cst_185 {dimension_numbers = #tpu.dot_dimension_numbers<[1], [0], [0], [1], [0, 0, 1, 1], [], []>} : vector<16x8xf32>, vector<8x32xf32>, vector<16x32xf32> -> vector<16x32xf32>
    %530 = vector.extract_strided_slice %511 {offsets = [0, 8], sizes = [16, 8], strides = [1, 1]} : vector<16x96xf32> to vector<16x8xf32>
    %531 = vector.extract_strided_slice %511 {offsets = [0, 40], sizes = [16, 8], strides = [1, 1]} : vector<16x96xf32> to vector<16x8xf32>
    %532 = vector.extract_strided_slice %511 {offsets = [0, 72], sizes = [16, 8], strides = [1, 1]} : vector<16x96xf32> to vector<16x8xf32>
    %cst_186 = arith.constant dense<0.000000e+00> : vector<16x16xf32>
    %533 = tpu.matmul %530, %531, %cst_186 {dimension_numbers = #tpu.dot_dimension_numbers<[1], [1], [0], [0], [0, 0, 1, 0], [], []>} : vector<16x8xf32>, vector<16x8xf32>, vector<16x16xf32> -> vector<16x16xf32>
    %534 = arith.addf %533, %354 : vector<16x16xf32>
    %cst_187 = arith.constant dense<0xFF800000> : vector<16xf32>
    %535 = vector.multi_reduction <maximumf>, %534, %cst_187 [1] : vector<16x16xf32> to vector<16xf32>
    %536 = vector.shape_cast %535 : vector<16xf32> to vector<16x1xf32>
    %537 = vector.broadcast %536 : vector<16x1xf32> to vector<16x16xf32>
    %538 = arith.subf %534, %537 : vector<16x16xf32>
    %539 = math.exp %538 : vector<16x16xf32>
    %cst_188 = arith.constant dense<0.000000e+00> : vector<16xf32>
    %540 = vector.multi_reduction <add>, %539, %cst_188 [1] : vector<16x16xf32> to vector<16xf32>
    %541 = vector.shape_cast %540 : vector<16xf32> to vector<16x1xf32>
    %542 = tpu.reciprocal %541 {approx = true} : vector<16x1xf32> -> vector<16x1xf32>
    %543 = vector.broadcast %542 : vector<16x1xf32> to vector<16x16xf32>
    %544 = arith.mulf %539, %543 : vector<16x16xf32>
    %cst_189 = arith.constant dense<0.000000e+00> : vector<16x8xf32>
    %545 = tpu.matmul %544, %532, %cst_189 {dimension_numbers = #tpu.dot_dimension_numbers<[1], [0], [0], [1], [0, 0, 1, 1], [], []>} : vector<16x16xf32>, vector<16x8xf32>, vector<16x8xf32> -> vector<16x8xf32>
    %c200 = arith.constant 200 : index
    %c0_190 = arith.constant 0 : index
    %546 = vector.load %arg5[%c200, %c0_190] : memref<352x128xf32, #tpu.memory_space<vmem>>, vector<8x32xf32>
    %cst_191 = arith.constant dense<0.000000e+00> : vector<16x32xf32>
    %547 = tpu.matmul %545, %546, %cst_191 {dimension_numbers = #tpu.dot_dimension_numbers<[1], [0], [0], [1], [0, 0, 1, 1], [], []>} : vector<16x8xf32>, vector<8x32xf32>, vector<16x32xf32> -> vector<16x32xf32>
    %548 = arith.addf %529, %547 : vector<16x32xf32>
    %549 = vector.extract_strided_slice %511 {offsets = [0, 16], sizes = [16, 8], strides = [1, 1]} : vector<16x96xf32> to vector<16x8xf32>
    %550 = vector.extract_strided_slice %511 {offsets = [0, 48], sizes = [16, 8], strides = [1, 1]} : vector<16x96xf32> to vector<16x8xf32>
    %551 = vector.extract_strided_slice %511 {offsets = [0, 80], sizes = [16, 8], strides = [1, 1]} : vector<16x96xf32> to vector<16x8xf32>
    %cst_192 = arith.constant dense<0.000000e+00> : vector<16x16xf32>
    %552 = tpu.matmul %549, %550, %cst_192 {dimension_numbers = #tpu.dot_dimension_numbers<[1], [1], [0], [0], [0, 0, 1, 0], [], []>} : vector<16x8xf32>, vector<16x8xf32>, vector<16x16xf32> -> vector<16x16xf32>
    %553 = arith.addf %552, %354 : vector<16x16xf32>
    %cst_193 = arith.constant dense<0xFF800000> : vector<16xf32>
    %554 = vector.multi_reduction <maximumf>, %553, %cst_193 [1] : vector<16x16xf32> to vector<16xf32>
    %555 = vector.shape_cast %554 : vector<16xf32> to vector<16x1xf32>
    %556 = vector.broadcast %555 : vector<16x1xf32> to vector<16x16xf32>
    %557 = arith.subf %553, %556 : vector<16x16xf32>
    %558 = math.exp %557 : vector<16x16xf32>
    %cst_194 = arith.constant dense<0.000000e+00> : vector<16xf32>
    %559 = vector.multi_reduction <add>, %558, %cst_194 [1] : vector<16x16xf32> to vector<16xf32>
    %560 = vector.shape_cast %559 : vector<16xf32> to vector<16x1xf32>
    %561 = tpu.reciprocal %560 {approx = true} : vector<16x1xf32> -> vector<16x1xf32>
    %562 = vector.broadcast %561 : vector<16x1xf32> to vector<16x16xf32>
    %563 = arith.mulf %558, %562 : vector<16x16xf32>
    %cst_195 = arith.constant dense<0.000000e+00> : vector<16x8xf32>
    %564 = tpu.matmul %563, %551, %cst_195 {dimension_numbers = #tpu.dot_dimension_numbers<[1], [0], [0], [1], [0, 0, 1, 1], [], []>} : vector<16x16xf32>, vector<16x8xf32>, vector<16x8xf32> -> vector<16x8xf32>
    %c208 = arith.constant 208 : index
    %c0_196 = arith.constant 0 : index
    %565 = vector.load %arg5[%c208, %c0_196] : memref<352x128xf32, #tpu.memory_space<vmem>>, vector<8x32xf32>
    %cst_197 = arith.constant dense<0.000000e+00> : vector<16x32xf32>
    %566 = tpu.matmul %564, %565, %cst_197 {dimension_numbers = #tpu.dot_dimension_numbers<[1], [0], [0], [1], [0, 0, 1, 1], [], []>} : vector<16x8xf32>, vector<8x32xf32>, vector<16x32xf32> -> vector<16x32xf32>
    %567 = arith.addf %548, %566 : vector<16x32xf32>
    %568 = vector.extract_strided_slice %511 {offsets = [0, 24], sizes = [16, 8], strides = [1, 1]} : vector<16x96xf32> to vector<16x8xf32>
    %569 = vector.extract_strided_slice %511 {offsets = [0, 56], sizes = [16, 8], strides = [1, 1]} : vector<16x96xf32> to vector<16x8xf32>
    %570 = vector.extract_strided_slice %511 {offsets = [0, 88], sizes = [16, 8], strides = [1, 1]} : vector<16x96xf32> to vector<16x8xf32>
    %cst_198 = arith.constant dense<0.000000e+00> : vector<16x16xf32>
    %571 = tpu.matmul %568, %569, %cst_198 {dimension_numbers = #tpu.dot_dimension_numbers<[1], [1], [0], [0], [0, 0, 1, 0], [], []>} : vector<16x8xf32>, vector<16x8xf32>, vector<16x16xf32> -> vector<16x16xf32>
    %572 = arith.addf %571, %354 : vector<16x16xf32>
    %cst_199 = arith.constant dense<0xFF800000> : vector<16xf32>
    %573 = vector.multi_reduction <maximumf>, %572, %cst_199 [1] : vector<16x16xf32> to vector<16xf32>
    %574 = vector.shape_cast %573 : vector<16xf32> to vector<16x1xf32>
    %575 = vector.broadcast %574 : vector<16x1xf32> to vector<16x16xf32>
    %576 = arith.subf %572, %575 : vector<16x16xf32>
    %577 = math.exp %576 : vector<16x16xf32>
    %cst_200 = arith.constant dense<0.000000e+00> : vector<16xf32>
    %578 = vector.multi_reduction <add>, %577, %cst_200 [1] : vector<16x16xf32> to vector<16xf32>
    %579 = vector.shape_cast %578 : vector<16xf32> to vector<16x1xf32>
    %580 = tpu.reciprocal %579 {approx = true} : vector<16x1xf32> -> vector<16x1xf32>
    %581 = vector.broadcast %580 : vector<16x1xf32> to vector<16x16xf32>
    %582 = arith.mulf %577, %581 : vector<16x16xf32>
    %cst_201 = arith.constant dense<0.000000e+00> : vector<16x8xf32>
    %583 = tpu.matmul %582, %570, %cst_201 {dimension_numbers = #tpu.dot_dimension_numbers<[1], [0], [0], [1], [0, 0, 1, 1], [], []>} : vector<16x16xf32>, vector<16x8xf32>, vector<16x8xf32> -> vector<16x8xf32>
    %c216 = arith.constant 216 : index
    %c0_202 = arith.constant 0 : index
    %584 = vector.load %arg5[%c216, %c0_202] : memref<352x128xf32, #tpu.memory_space<vmem>>, vector<8x32xf32>
    %cst_203 = arith.constant dense<0.000000e+00> : vector<16x32xf32>
    %585 = tpu.matmul %583, %584, %cst_203 {dimension_numbers = #tpu.dot_dimension_numbers<[1], [0], [0], [1], [0, 0, 1, 1], [], []>} : vector<16x8xf32>, vector<8x32xf32>, vector<16x32xf32> -> vector<16x32xf32>
    %586 = arith.addf %567, %585 : vector<16x32xf32>
    %c11 = arith.constant 11 : index
    %c0_204 = arith.constant 0 : index
    %587 = vector.load %arg6[%c11, %c0_204] : memref<19x128xf32, #tpu.memory_space<vmem>>, vector<1x32xf32>
    %588 = vector.broadcast %587 : vector<1x32xf32> to vector<16x32xf32>
    %589 = arith.addf %586, %588 : vector<16x32xf32>
    %590 = arith.addf %589, %506 : vector<16x32xf32>
    %c12 = arith.constant 12 : index
    %c0_205 = arith.constant 0 : index
    %591 = vector.load %arg6[%c12, %c0_205] : memref<19x128xf32, #tpu.memory_space<vmem>>, vector<1x32xf32>
    %c13 = arith.constant 13 : index
    %c0_206 = arith.constant 0 : index
    %592 = vector.load %arg6[%c13, %c0_206] : memref<19x128xf32, #tpu.memory_space<vmem>>, vector<1x32xf32>
    %cst_207 = arith.constant dense<0.000000e+00> : vector<16xf32>
    %593 = vector.multi_reduction <add>, %590, %cst_207 [1] : vector<16x32xf32> to vector<16xf32>
    %594 = vector.shape_cast %593 : vector<16xf32> to vector<16x1xf32>
    %cst_208 = arith.constant 3.200000e+01 : f32
    %595 = vector.broadcast %cst_208 : f32 to vector<16x1xf32>
    %596 = arith.divf %594, %595 : vector<16x1xf32>
    %597 = vector.broadcast %596 : vector<16x1xf32> to vector<16x32xf32>
    %598 = arith.subf %590, %597 : vector<16x32xf32>
    %599 = arith.mulf %598, %598 : vector<16x32xf32>
    %cst_209 = arith.constant dense<0.000000e+00> : vector<16xf32>
    %600 = vector.multi_reduction <add>, %599, %cst_209 [1] : vector<16x32xf32> to vector<16xf32>
    %601 = vector.shape_cast %600 : vector<16xf32> to vector<16x1xf32>
    %cst_210 = arith.constant 3.200000e+01 : f32
    %602 = vector.broadcast %cst_210 : f32 to vector<16x1xf32>
    %603 = arith.divf %601, %602 : vector<16x1xf32>
    %cst_211 = arith.constant 9.99999996E-13 : f32
    %604 = vector.broadcast %cst_211 : f32 to vector<16x1xf32>
    %605 = arith.addf %603, %604 : vector<16x1xf32>
    %606 = math.rsqrt %605 : vector<16x1xf32>
    %607 = vector.broadcast %606 : vector<16x1xf32> to vector<16x32xf32>
    %608 = arith.mulf %598, %607 : vector<16x32xf32>
    %609 = vector.broadcast %591 : vector<1x32xf32> to vector<16x32xf32>
    %610 = arith.mulf %608, %609 : vector<16x32xf32>
    %611 = vector.broadcast %592 : vector<1x32xf32> to vector<16x32xf32>
    %612 = arith.addf %610, %611 : vector<16x32xf32>
    %c224 = arith.constant 224 : index
    %c0_212 = arith.constant 0 : index
    %613 = vector.load %arg5[%c224, %c0_212] : memref<352x128xf32, #tpu.memory_space<vmem>>, vector<32x64xf32>
    %cst_213 = arith.constant dense<0.000000e+00> : vector<16x64xf32>
    %614 = tpu.matmul %612, %613, %cst_213 {dimension_numbers = #tpu.dot_dimension_numbers<[1], [0], [0], [1], [0, 0, 1, 1], [], []>} : vector<16x32xf32>, vector<32x64xf32>, vector<16x64xf32> -> vector<16x64xf32>
    %c14 = arith.constant 14 : index
    %c0_214 = arith.constant 0 : index
    %615 = vector.load %arg6[%c14, %c0_214] : memref<19x128xf32, #tpu.memory_space<vmem>>, vector<1x64xf32>
    %616 = vector.broadcast %615 : vector<1x64xf32> to vector<16x64xf32>
    %617 = arith.addf %614, %616 : vector<16x64xf32>
    %618 = arith.mulf %617, %617 : vector<16x64xf32>
    %619 = arith.mulf %617, %618 : vector<16x64xf32>
    %cst_215 = arith.constant 4.471500e-02 : f32
    %620 = vector.broadcast %cst_215 : f32 to vector<16x64xf32>
    %621 = arith.mulf %620, %619 : vector<16x64xf32>
    %622 = arith.addf %617, %621 : vector<16x64xf32>
    %cst_216 = arith.constant 0.797884583 : f32
    %623 = vector.broadcast %cst_216 : f32 to vector<16x64xf32>
    %624 = arith.mulf %623, %622 : vector<16x64xf32>
    %625 = math.tanh %624 : vector<16x64xf32>
    %cst_217 = arith.constant 1.000000e+00 : f32
    %626 = vector.broadcast %cst_217 : f32 to vector<16x64xf32>
    %627 = arith.addf %626, %625 : vector<16x64xf32>
    %cst_218 = arith.constant 5.000000e-01 : f32
    %628 = vector.broadcast %cst_218 : f32 to vector<16x64xf32>
    %629 = arith.mulf %628, %627 : vector<16x64xf32>
    %630 = arith.mulf %617, %629 : vector<16x64xf32>
    %c256 = arith.constant 256 : index
    %c0_219 = arith.constant 0 : index
    %631 = vector.load %arg5[%c256, %c0_219] : memref<352x128xf32, #tpu.memory_space<vmem>>, vector<64x32xf32>
    %cst_220 = arith.constant dense<0.000000e+00> : vector<16x32xf32>
    %632 = tpu.matmul %630, %631, %cst_220 {dimension_numbers = #tpu.dot_dimension_numbers<[1], [0], [0], [1], [0, 0, 1, 1], [], []>} : vector<16x64xf32>, vector<64x32xf32>, vector<16x32xf32> -> vector<16x32xf32>
    %c15 = arith.constant 15 : index
    %c0_221 = arith.constant 0 : index
    %633 = vector.load %arg6[%c15, %c0_221] : memref<19x128xf32, #tpu.memory_space<vmem>>, vector<1x32xf32>
    %634 = vector.broadcast %633 : vector<1x32xf32> to vector<16x32xf32>
    %635 = arith.addf %632, %634 : vector<16x32xf32>
    %636 = arith.addf %635, %612 : vector<16x32xf32>
    %c16 = arith.constant 16 : index
    %c0_222 = arith.constant 0 : index
    %637 = vector.load %arg6[%c16, %c0_222] : memref<19x128xf32, #tpu.memory_space<vmem>>, vector<1x32xf32>
    %c17 = arith.constant 17 : index
    %c0_223 = arith.constant 0 : index
    %638 = vector.load %arg6[%c17, %c0_223] : memref<19x128xf32, #tpu.memory_space<vmem>>, vector<1x32xf32>
    %cst_224 = arith.constant dense<0.000000e+00> : vector<16xf32>
    %639 = vector.multi_reduction <add>, %636, %cst_224 [1] : vector<16x32xf32> to vector<16xf32>
    %640 = vector.shape_cast %639 : vector<16xf32> to vector<16x1xf32>
    %cst_225 = arith.constant 3.200000e+01 : f32
    %641 = vector.broadcast %cst_225 : f32 to vector<16x1xf32>
    %642 = arith.divf %640, %641 : vector<16x1xf32>
    %643 = vector.broadcast %642 : vector<16x1xf32> to vector<16x32xf32>
    %644 = arith.subf %636, %643 : vector<16x32xf32>
    %645 = arith.mulf %644, %644 : vector<16x32xf32>
    %cst_226 = arith.constant dense<0.000000e+00> : vector<16xf32>
    %646 = vector.multi_reduction <add>, %645, %cst_226 [1] : vector<16x32xf32> to vector<16xf32>
    %647 = vector.shape_cast %646 : vector<16xf32> to vector<16x1xf32>
    %cst_227 = arith.constant 3.200000e+01 : f32
    %648 = vector.broadcast %cst_227 : f32 to vector<16x1xf32>
    %649 = arith.divf %647, %648 : vector<16x1xf32>
    %cst_228 = arith.constant 9.99999996E-13 : f32
    %650 = vector.broadcast %cst_228 : f32 to vector<16x1xf32>
    %651 = arith.addf %649, %650 : vector<16x1xf32>
    %652 = math.rsqrt %651 : vector<16x1xf32>
    %653 = vector.broadcast %652 : vector<16x1xf32> to vector<16x32xf32>
    %654 = arith.mulf %644, %653 : vector<16x32xf32>
    %655 = vector.broadcast %637 : vector<1x32xf32> to vector<16x32xf32>
    %656 = arith.mulf %654, %655 : vector<16x32xf32>
    %657 = vector.broadcast %638 : vector<1x32xf32> to vector<16x32xf32>
    %658 = arith.addf %656, %657 : vector<16x32xf32>
    %c320 = arith.constant 320 : index
    %c0_229 = arith.constant 0 : index
    %659 = vector.load %arg5[%c320, %c0_229] : memref<352x128xf32, #tpu.memory_space<vmem>>, vector<32x128xf32>
    %cst_230 = arith.constant dense<0.000000e+00> : vector<16x128xf32>
    %660 = tpu.matmul %658, %659, %cst_230 {dimension_numbers = #tpu.dot_dimension_numbers<[1], [0], [0], [1], [0, 0, 1, 1], [], []>} : vector<16x32xf32>, vector<32x128xf32>, vector<16x128xf32> -> vector<16x128xf32>
    %c18 = arith.constant 18 : index
    %c0_231 = arith.constant 0 : index
    %661 = vector.load %arg6[%c18, %c0_231] : memref<19x128xf32, #tpu.memory_space<vmem>>, vector<1x128xf32>
    %662 = vector.broadcast %661 : vector<1x128xf32> to vector<16x128xf32>
    %663 = arith.addf %660, %662 : vector<16x128xf32>
    %c0_232 = arith.constant 0 : index
    %c0_233 = arith.constant 0 : index
    %664 = vector.load %arg7[%c0_232, %c0_233] : memref<16x128xf32, #tpu.memory_space<vmem>>, vector<16x128xf32>
    tpu.vector_store %arg7[%c0_232, %c0_233], %663 {strides = array<i32>} : memref<16x128xf32, #tpu.memory_space<vmem>>, vector<16x128xf32>,
    return
  }
}

</mosaic_0001>

<llo_original>
// kernel: flash_bert_classification_forward.1
$region0: #{flash_bert_classification_forward.1}
  #allocation0 [shape = 'u32[]', space=smem, size = 0x4, offset = 0x4, fixed_abs, tag = 'smem constant byte address 0x4 - core index']
  #allocation1 [shape = 'u32[144,128]{1,0:T(1,128)}', space=vmem, size = 0x12000, scoped, tag = 'internal scratch']
  #allocation2 [shape = 'f32[16,32]{1,0:T(8,128)}', space=vmem, size = 0x2000, scoped, tag = 'scratch operand']
  %s0 = inlined_call_operand.vmem [shape: s32[16], index: 0, kind: input, shape index: {}]
  %s1 = inlined_call_operand.vmem [shape: s32[16], index: 1, kind: input, shape index: {}]
  %s2 = inlined_call_operand.vmem [shape: s32[16], index: 2, kind: input, shape index: {}]
  %s3 = inlined_call_operand.vmem [shape: s32[3], index: 3, kind: input, shape index: {}]
  %s4 = inlined_call_operand.vmem [shape: f32[166,32], index: 4, kind: input, shape index: {}]
  %s5 = inlined_call_operand.hbm [shape: f32[352,128], index: 5, kind: input, shape index: {}]
  %s6 = inlined_call_operand.vmem [shape: f32[19,128], index: 6, kind: input, shape index: {}]
  %s7 = inlined_call_operand.vmem [shape: f32[16,128], index: 7, kind: output, shape index: {}]
  %s8 = sld [smem:[#allocation0]]
  $region58: #{flash_bert_classification_forward.1} parent=0
    _
  %s10 = ssub.s32 1, %s8
  %s11 = scalar_select 0, %s10, %s8
  $region1: #{flash_bert_classification_forward.1} parent=0
    #allocation3 [shape = 'u8[512]{0}', space=smem, size = 0x200, scoped, tag = 'input window, operand 0, single buffered']
    #allocation4 [shape = 's32[1]{0}', space=sflag, size = 0x4, scoped, tag = 'scoped memory for flash_bert_classification_forward.1']
    #allocation5 [shape = 's32[1]{0}', space=sflag, size = 0x4, scoped, tag = 'scoped memory for flash_bert_classification_forward.1']
    #allocation6 [shape = 'u8[512]{0}', space=smem, size = 0x200, scoped, tag = 'input window, operand 1, single buffered']
    #allocation7 [shape = 's32[1]{0}', space=sflag, size = 0x4, scoped, tag = 'scoped memory for flash_bert_classification_forward.1']
    #allocation8 [shape = 'u8[512]{0}', space=smem, size = 0x200, scoped, tag = 'input window, operand 2, single buffered']
    #allocation9 [shape = 'u8[512]{0}', space=smem, size = 0x200, scoped, tag = 'input window, operand 3, single buffered']
    #allocation10 [shape = 's32[1]{0}', space=sflag, size = 0x4, scoped, tag = 'scoped memory for flash_bert_classification_forward.1']
    #allocation11 [shape = 'u8[180224]{0}', space=vmem, size = 0x2c000, scoped, tag = 'input window, operand 5, single buffered']
    %12 = vsyncpa [#allocation5], 0
    %13 = vsyncpa [#allocation7], 0
    %14 = vsyncpa [#allocation10], 0
    %15 = vsyncpa [#allocation4], 0
    // Predicated region
    $region2: #{flash_bert_classification_forward.1} parent=1 // pred_check
      _
    $region3: #{flash_bert_classification_forward.1} parent=1 // pred_check_branch
      %17 = sbr.rel (0) target = $region5
    $region4: #{flash_bert_classification_forward.1} parent=1 // pred_region
      %s19 = ssub.s32 16, 16
      %20 = vsyncadd [#allocation5], %s19
      %s22 = sshll.u32 %s0, 4
      %s23 = int_to_ptr.vmem [resolvable:$true] %s22
      %25 = dma.vmem_to_smem %s23, 16, [#allocation3], [#allocation5]
    $region5: #{flash_bert_classification_forward.1} parent=1 // pred_fallthru
      _
    // Predicated region
    $region6: #{flash_bert_classification_forward.1} parent=1 // pred_check
      _
    $region7: #{flash_bert_classification_forward.1} parent=1 // pred_check_branch
      %27 = sbr.rel (0) target = $region9
    $region8: #{flash_bert_classification_forward.1} parent=1 // pred_region
      %s29 = ssub.s32 16, 16
      %30 = vsyncadd [#allocation7], %s29
      %s32 = sshll.u32 %s1, 4
      %s33 = int_to_ptr.vmem [resolvable:$true] %s32
      %35 = dma.vmem_to_smem %s33, 16, [#allocation6], [#allocation7]
    $region9: #{flash_bert_classification_forward.1} parent=1 // pred_fallthru
      _
    // Predicated region
    $region10: #{flash_bert_classification_forward.1} parent=1 // pred_check
      _
    $region11: #{flash_bert_classification_forward.1} parent=1 // pred_check_branch
      %37 = sbr.rel (0) target = $region13
    $region12: #{flash_bert_classification_forward.1} parent=1 // pred_region
      %s39 = ssub.s32 16, 16
      %40 = vsyncadd [#allocation7], %s39
      %s42 = sshll.u32 %s2, 4
      %s43 = int_to_ptr.vmem [resolvable:$true] %s42
      %45 = dma.vmem_to_smem %s43, 16, [#allocation8], [#allocation7]
    $region13: #{flash_bert_classification_forward.1} parent=1 // pred_fallthru
      _
    // Predicated region
    $region14: #{flash_bert_classification_forward.1} parent=1 // pred_check
      _
    $region15: #{flash_bert_classification_forward.1} parent=1 // pred_check_branch
      %47 = sbr.rel (0) target = $region17
    $region16: #{flash_bert_classification_forward.1} parent=1 // pred_region
      %s49 = ssub.s32 16, 16
      %50 = vsyncadd [#allocation10], %s49
      %s52 = sshll.u32 %s3, 4
      %s53 = int_to_ptr.vmem [resolvable:$true] %s52
      %55 = dma.vmem_to_smem %s53, 16, [#allocation9], [#allocation10]
    $region17: #{flash_bert_classification_forward.1} parent=1 // pred_fallthru
      _
    // Predicated region
    $region18: #{flash_bert_classification_forward.1} parent=1 // pred_check
      _
    $region19: #{flash_bert_classification_forward.1} parent=1 // pred_check_branch
      %57 = sbr.rel (0) target = $region21
    $region20: #{flash_bert_classification_forward.1} parent=1 // pred_region
      _
    $region21: #{flash_bert_classification_forward.1} parent=1 // pred_fallthru
      _
    // Predicated region
    $region22: #{flash_bert_classification_forward.1} parent=1 // pred_check
      _
    $region23: #{flash_bert_classification_forward.1} parent=1 // pred_check_branch
      %59 = sbr.rel (0) target = $region25
    $region24: #{flash_bert_classification_forward.1} parent=1 // pred_region
      %s61 = ssub.s32 5632, 5632
      %62 = vsyncadd [#allocation4], %s61
      %s63 = sshll.u32 [#allocation11], 4
      %s64 = int_to_ptr.vmem [resolvable:$true] %s63
      %69 = dma.hbm_to_vmem [thread:$0]  %s5, 5632, %s64, [#allocation4], 128, 128, 8
    $region25: #{flash_bert_classification_forward.1} parent=1 // pred_fallthru
      _
    // Predicated region
    $region26: #{flash_bert_classification_forward.1} parent=1 // pred_check
      _
    $region27: #{flash_bert_classification_forward.1} parent=1 // pred_check_branch
      %71 = sbr.rel (0) target = $region29
    $region28: #{flash_bert_classification_forward.1} parent=1 // pred_region
      _
    $region29: #{flash_bert_classification_forward.1} parent=1 // pred_fallthru
      _
    // Predicated region
    $region30: #{flash_bert_classification_forward.1} parent=1 // pred_check
      _
    $region31: #{flash_bert_classification_forward.1} parent=1 // pred_check_branch
      %73 = sbr.rel (0) target = $region33
    $region32: #{flash_bert_classification_forward.1} parent=1 // pred_region
      %74 = dma.done [#allocation5], 16
    $region33: #{flash_bert_classification_forward.1} parent=1 // pred_fallthru
      _
    // Predicated region
    $region34: #{flash_bert_classification_forward.1} parent=1 // pred_check
      _
    $region35: #{flash_bert_classification_forward.1} parent=1 // pred_check_branch
      %76 = sbr.rel (0) target = $region37
    $region36: #{flash_bert_classification_forward.1} parent=1 // pred_region
      %77 = dma.done [#allocation7], 16
    $region37: #{flash_bert_classification_forward.1} parent=1 // pred_fallthru
      _
    // Predicated region
    $region38: #{flash_bert_classification_forward.1} parent=1 // pred_check
      _
    $region39: #{flash_bert_classification_forward.1} parent=1 // pred_check_branch
      %79 = sbr.rel (0) target = $region41
    $region40: #{flash_bert_classification_forward.1} parent=1 // pred_region
      %80 = dma.done [#allocation7], 16
    $region41: #{flash_bert_classification_forward.1} parent=1 // pred_fallthru
      _
    // Predicated region
    $region42: #{flash_bert_classification_forward.1} parent=1 // pred_check
      _
    $region43: #{flash_bert_classification_forward.1} parent=1 // pred_check_branch
      %82 = sbr.rel (0) target = $region45
    $region44: #{flash_bert_classification_forward.1} parent=1 // pred_region
      %83 = dma.done [#allocation10], 16
    $region45: #{flash_bert_classification_forward.1} parent=1 // pred_fallthru
      _
    // Predicated region
    $region46: #{flash_bert_classification_forward.1} parent=1 // pred_check
      _
    $region47: #{flash_bert_classification_forward.1} parent=1 // pred_check_branch
      %85 = sbr.rel (0) target = $region49
    $region48: #{flash_bert_classification_forward.1} parent=1 // pred_region
      %86 = dma.done [#allocation4], 5632
    $region49: #{flash_bert_classification_forward.1} parent=1 // pred_fallthru
      _
    %87 = sfence
    %s88 = sld [smem:[#allocation3]]
    %s89 = scalar_lea.vmem %s4, %s88
    %v90 = vld [vmem:[%s89] sm:$0x1]
    %s91 = sld [smem:[#allocation8]]
    %s92 = sadd.s32 %s91, 100
    %s93 = scalar_lea.vmem %s4, %s92
    %v94 = vld [vmem:[%s93] sm:$0x1]
    %s95 = sld [smem:[#allocation6]]
    %s96 = sadd.s32 %s95, 164
    %s97 = scalar_lea.vmem %s4, %s96
    %v98 = vld [vmem:[%s97] sm:$0x1]
    %v99 = vadd.f32 %v90, %v94
    %v100 = vadd.f32 %v99, %v98
    %vm101 = vcmask 253952
    %102 = vst.msk [vmem:[#allocation2] sm:$0x1] %vm101, %v100
    %s103 = sld [smem:[#allocation3 + $0x1]]
    %s104 = scalar_lea.vmem %s4, %s103
    %v105 = vld [vmem:[%s104] sm:$0x1]
    %s106 = sld [smem:[#allocation8 + $0x1]]
    %s107 = sadd.s32 %s106, 100
    %s108 = scalar_lea.vmem %s4, %s107
    %v109 = vld [vmem:[%s108] sm:$0x1]
    %s110 = sld [smem:[#allocation6 + $0x1]]
    %s111 = sadd.s32 %s110, 164
    %s112 = scalar_lea.vmem %s4, %s111
    %v113 = vld [vmem:[%s112] sm:$0x1]
    %v114 = vadd.f32 %v105, %v109
    %v115 = vadd.f32 %v114, %v113
    %116 = vst.msk [vmem:[#allocation2 + $0x1] sm:$0x1] %vm101, %v115
    %s117 = sld [smem:[#allocation3 + $0x2]]
    %s118 = scalar_lea.vmem %s4, %s117
    %v119 = vld [vmem:[%s118] sm:$0x1]
    %s120 = sld [smem:[#allocation8 + $0x2]]
    %s121 = sadd.s32 %s120, 100
    %s122 = scalar_lea.vmem %s4, %s121
    %v123 = vld [vmem:[%s122] sm:$0x1]
    %s124 = sld [smem:[#allocation6 + $0x2]]
    %s125 = sadd.s32 %s124, 164
    %s126 = scalar_lea.vmem %s4, %s125
    %v127 = vld [vmem:[%s126] sm:$0x1]
    %v128 = vadd.f32 %v119, %v123
    %v129 = vadd.f32 %v128, %v127
    %130 = vst.msk [vmem:[#allocation2 + $0x2] sm:$0x1] %vm101, %v129
    %s131 = sld [smem:[#allocation3 + $0x3]]
    %s132 = scalar_lea.vmem %s4, %s131
    %v133 = vld [vmem:[%s132] sm:$0x1]
    %s134 = sld [smem:[#allocation8 + $0x3]]
    %s135 = sadd.s32 %s134, 100
    %s136 = scalar_lea.vmem %s4, %s135
    %v137 = vld [vmem:[%s136] sm:$0x1]
    %s138 = sld [smem:[#allocation6 + $0x3]]
    %s139 = sadd.s32 %s138, 164
    %s140 = scalar_lea.vmem %s4, %s139
    %v141 = vld [vmem:[%s140] sm:$0x1]
    %v142 = vadd.f32 %v133, %v137
    %v143 = vadd.f32 %v142, %v141
    %144 = vst.msk [vmem:[#allocation2 + $0x3] sm:$0x1] %vm101, %v143
    %s145 = sld [smem:[#allocation3 + $0x4]]
    %s146 = scalar_lea.vmem %s4, %s145
    %v147 = vld [vmem:[%s146] sm:$0x1]
    %s148 = sld [smem:[#allocation8 + $0x4]]
    %s149 = sadd.s32 %s148, 100
    %s150 = scalar_lea.vmem %s4, %s149
    %v151 = vld [vmem:[%s150] sm:$0x1]
    %s152 = sld [smem:[#allocation6 + $0x4]]
    %s153 = sadd.s32 %s152, 164
    %s154 = scalar_lea.vmem %s4, %s153
    %v155 = vld [vmem:[%s154] sm:$0x1]
    %v156 = vadd.f32 %v147, %v151
    %v157 = vadd.f32 %v156, %v155
    %158 = vst.msk [vmem:[#allocation2 + $0x4] sm:$0x1] %vm101, %v157
    %s159 = sld [smem:[#allocation3 + $0x5]]
    %s160 = scalar_lea.vmem %s4, %s159
    %v161 = vld [vmem:[%s160] sm:$0x1]
    %s162 = sld [smem:[#allocation8 + $0x5]]
    %s163 = sadd.s32 %s162, 100
    %s164 = scalar_lea.vmem %s4, %s163
    %v165 = vld [vmem:[%s164] sm:$0x1]
    %s166 = sld [smem:[#allocation6 + $0x5]]
    %s167 = sadd.s32 %s166, 164
    %s168 = scalar_lea.vmem %s4, %s167
    %v169 = vld [vmem:[%s168] sm:$0x1]
    %v170 = vadd.f32 %v161, %v165
    %v171 = vadd.f32 %v170, %v169
    %172 = vst.msk [vmem:[#allocation2 + $0x5] sm:$0x1] %vm101, %v171
    %s173 = sld [smem:[#allocation3 + $0x6]]
    %s174 = scalar_lea.vmem %s4, %s173
    %v175 = vld [vmem:[%s174] sm:$0x1]
    %s176 = sld [smem:[#allocation8 + $0x6]]
    %s177 = sadd.s32 %s176, 100
    %s178 = scalar_lea.vmem %s4, %s177
    %v179 = vld [vmem:[%s178] sm:$0x1]
    %s180 = sld [smem:[#allocation6 + $0x6]]
    %s181 = sadd.s32 %s180, 164
    %s182 = scalar_lea.vmem %s4, %s181
    %v183 = vld [vmem:[%s182] sm:$0x1]
    %v184 = vadd.f32 %v175, %v179
    %v185 = vadd.f32 %v184, %v183
    %186 = vst.msk [vmem:[#allocation2 + $0x6] sm:$0x1] %vm101, %v185
    %s187 = sld [smem:[#allocation3 + $0x7]]
    %s188 = scalar_lea.vmem %s4, %s187
    %v189 = vld [vmem:[%s188] sm:$0x1]
    %s190 = sld [smem:[#allocation8 + $0x7]]
    %s191 = sadd.s32 %s190, 100
    %s192 = scalar_lea.vmem %s4, %s191
    %v193 = vld [vmem:[%s192] sm:$0x1]
    %s194 = sld [smem:[#allocation6 + $0x7]]
    %s195 = sadd.s32 %s194, 164
    %s196 = scalar_lea.vmem %s4, %s195
    %v197 = vld [vmem:[%s196] sm:$0x1]
    %v198 = vadd.f32 %v189, %v193
    %v199 = vadd.f32 %v198, %v197
    %200 = vst.msk [vmem:[#allocation2 + $0x7] sm:$0x1] %vm101, %v199
    %s201 = sld [smem:[#allocation3 + $0x8]]
    %s202 = scalar_lea.vmem %s4, %s201
    %v203 = vld [vmem:[%s202] sm:$0x1]
    %s204 = sld [smem:[#allocation8 + $0x8]]
    %s205 = sadd.s32 %s204, 100
    %s206 = scalar_lea.vmem %s4, %s205
    %v207 = vld [vmem:[%s206] sm:$0x1]
    %s208 = sld [smem:[#allocation6 + $0x8]]
    %s209 = sadd.s32 %s208, 164
    %s210 = scalar_lea.vmem %s4, %s209
    %v211 = vld [vmem:[%s210] sm:$0x1]
    %v212 = vadd.f32 %v203, %v207
    %v213 = vadd.f32 %v212, %v211
    %214 = vst.msk [vmem:[#allocation2 + $0x8] sm:$0x1] %vm101, %v213
    %s215 = sld [smem:[#allocation3 + $0x9]]
    %s216 = scalar_lea.vmem %s4, %s215
    %v217 = vld [vmem:[%s216] sm:$0x1]
    %s218 = sld [smem:[#allocation8 + $0x9]]
    %s219 = sadd.s32 %s218, 100
    %s220 = scalar_lea.vmem %s4, %s219
    %v221 = vld [vmem:[%s220] sm:$0x1]
    %s222 = sld [smem:[#allocation6 + $0x9]]
    %s223 = sadd.s32 %s222, 164
    %s224 = scalar_lea.vmem %s4, %s223
    %v225 = vld [vmem:[%s224] sm:$0x1]
    %v226 = vadd.f32 %v217, %v221
    %v227 = vadd.f32 %v226, %v225
    %228 = vst.msk [vmem:[#allocation2 + $0x9] sm:$0x1] %vm101, %v227
    %s229 = sld [smem:[#allocation3 + $0xa]]
    %s230 = scalar_lea.vmem %s4, %s229
    %v231 = vld [vmem:[%s230] sm:$0x1]
    %s232 = sld [smem:[#allocation8 + $0xa]]
    %s233 = sadd.s32 %s232, 100
    %s234 = scalar_lea.vmem %s4, %s233
    %v235 = vld [vmem:[%s234] sm:$0x1]
    %s236 = sld [smem:[#allocation6 + $0xa]]
    %s237 = sadd.s32 %s236, 164
    %s238 = scalar_lea.vmem %s4, %s237
    %v239 = vld [vmem:[%s238] sm:$0x1]
    %v240 = vadd.f32 %v231, %v235
    %v241 = vadd.f32 %v240, %v239
    %242 = vst.msk [vmem:[#allocation2 + $0xa] sm:$0x1] %vm101, %v241
    %s243 = sld [smem:[#allocation3 + $0xb]]
    %s244 = scalar_lea.vmem %s4, %s243
    %v245 = vld [vmem:[%s244] sm:$0x1]
    %s246 = sld [smem:[#allocation8 + $0xb]]
    %s247 = sadd.s32 %s246, 100
    %s248 = scalar_lea.vmem %s4, %s247
    %v249 = vld [vmem:[%s248] sm:$0x1]
    %s250 = sld [smem:[#allocation6 + $0xb]]
    %s251 = sadd.s32 %s250, 164
    %s252 = scalar_lea.vmem %s4, %s251
    %v253 = vld [vmem:[%s252] sm:$0x1]
    %v254 = vadd.f32 %v245, %v249
    %v255 = vadd.f32 %v254, %v253
    %256 = vst.msk [vmem:[#allocation2 + $0xb] sm:$0x1] %vm101, %v255
    %s257 = sld [smem:[#allocation3 + $0xc]]
    %s258 = scalar_lea.vmem %s4, %s257
    %v259 = vld [vmem:[%s258] sm:$0x1]
    %s260 = sld [smem:[#allocation8 + $0xc]]
    %s261 = sadd.s32 %s260, 100
    %s262 = scalar_lea.vmem %s4, %s261
    %v263 = vld [vmem:[%s262] sm:$0x1]
    %s264 = sld [smem:[#allocation6 + $0xc]]
    %s265 = sadd.s32 %s264, 164
    %s266 = scalar_lea.vmem %s4, %s265
    %v267 = vld [vmem:[%s266] sm:$0x1]
    %v268 = vadd.f32 %v259, %v263
    %v269 = vadd.f32 %v268, %v267
    %270 = vst.msk [vmem:[#allocation2 + $0xc] sm:$0x1] %vm101, %v269
    %s271 = sld [smem:[#allocation3 + $0xd]]
    %s272 = scalar_lea.vmem %s4, %s271
    %v273 = vld [vmem:[%s272] sm:$0x1]
    %s274 = sld [smem:[#allocation8 + $0xd]]
    %s275 = sadd.s32 %s274, 100
    %s276 = scalar_lea.vmem %s4, %s275
    %v277 = vld [vmem:[%s276] sm:$0x1]
    %s278 = sld [smem:[#allocation6 + $0xd]]
    %s279 = sadd.s32 %s278, 164
    %s280 = scalar_lea.vmem %s4, %s279
    %v281 = vld [vmem:[%s280] sm:$0x1]
    %v282 = vadd.f32 %v273, %v277
    %v283 = vadd.f32 %v282, %v281
    %284 = vst.msk [vmem:[#allocation2 + $0xd] sm:$0x1] %vm101, %v283
    %s285 = sld [smem:[#allocation3 + $0xe]]
    %s286 = scalar_lea.vmem %s4, %s285
    %v287 = vld [vmem:[%s286] sm:$0x1]
    %s288 = sld [smem:[#allocation8 + $0xe]]
    %s289 = sadd.s32 %s288, 100
    %s290 = scalar_lea.vmem %s4, %s289
    %v291 = vld [vmem:[%s290] sm:$0x1]
    %s292 = sld [smem:[#allocation6 + $0xe]]
    %s293 = sadd.s32 %s292, 164
    %s294 = scalar_lea.vmem %s4, %s293
    %v295 = vld [vmem:[%s294] sm:$0x1]
    %v296 = vadd.f32 %v287, %v291
    %v297 = vadd.f32 %v296, %v295
    %298 = vst.msk [vmem:[#allocation2 + $0xe] sm:$0x1] %vm101, %v297
    %s299 = sld [smem:[#allocation3 + $0xf]]
    %s300 = scalar_lea.vmem %s4, %s299
    %v301 = vld [vmem:[%s300] sm:$0x1]
    %s302 = sld [smem:[#allocation8 + $0xf]]
    %s303 = sadd.s32 %s302, 100
    %s304 = scalar_lea.vmem %s4, %s303
    %v305 = vld [vmem:[%s304] sm:$0x1]
    %s306 = sld [smem:[#allocation6 + $0xf]]
    %s307 = sadd.s32 %s306, 164
    %s308 = scalar_lea.vmem %s4, %s307
    %v309 = vld [vmem:[%s308] sm:$0x1]
    %v310 = vadd.f32 %v301, %v305
    %v311 = vadd.f32 %v310, %v309
    %312 = vst.msk [vmem:[#allocation2 + $0xf] sm:$0x1] %vm101, %v311
    %v313 = vld [vmem:[#allocation2] sm:$0xff]
    %v314 = vld [vmem:[#allocation2 + $0x8] sm:$0xff]
    %v315 = vld [vmem:[%s6] sm:$0x1]
    %v316 = vld [vmem:[%s6 + $0x1] sm:$0x1]
    %vm317 = vcmask 261120
    %v318 = vsel %vm317, %v313, 0.0
    %319 = vadd.xlane.f32.xlu0 %v318
    %v320 = vpop.xlane.xlu0 %319
    %v321 = vsel %vm317, %v314, 0.0
    %322 = vadd.xlane.f32.xlu0 %v321
    %v323 = vpop.xlane.xlu0 %322
    %v324 = vrcp.pop 32.0
    %v325 = vmul.f32 %v320, %v324
    %v326 = vmul.f32 %v323, %v324
    %v327 = vsub.f32 %v313, %v325
    %v328 = vsub.f32 %v314, %v326
    %v329 = vmul.f32 %v327, %v327
    %v330 = vmul.f32 %v328, %v328
    %v331 = vsel %vm317, %v329, 0.0
    %332 = vadd.xlane.f32.xlu0 %v331
    %v333 = vpop.xlane.xlu0 %332
    %v334 = vsel %vm317, %v330, 0.0
    %335 = vadd.xlane.f32.xlu0 %v334
    %v336 = vpop.xlane.xlu0 %335
    %v337 = vmul.f32 %v333, %v324
    %v338 = vmul.f32 %v336, %v324
    %v339 = vadd.f32 %v337, 1e-12
    %v340 = vadd.f32 %v338, 1e-12
    %v341 = vrsqrt.pop %v339
    %v342 = vrsqrt.pop %v340
    %v343 = vmul.f32 %v327, %v341
    %v344 = vmul.f32 %v328, %v342
    %v345 = vlaneseq
    %v346 = vshrl.u32 %v345, 7
    %v347 = vsub.s32 0, %v346
    %v348 = vrot.slane %v315, %v347
    %v349 = vmul.f32 %v343, %v348
    %v350 = vmul.f32 %v344, %v348
    %v351 = vlaneseq
    %v352 = vshrl.u32 %v351, 7
    %v353 = vsub.s32 0, %v352
    %v354 = vrot.slane %v316, %v353
    %v355 = vadd.f32 %v349, %v354
    %v356 = vadd.f32 %v350, %v354
    %v357 = vlaneseq
    %v358 = vshrl.u32 %v357, 7
    %v359 = vadd.s32 %v358, 8
    %v360 = vlaneseq
    %v361 = vand.u32 %v360, 127
    %s362 = sld [smem:[#allocation9 + $0x1]]
    %v363 = vstv %s362
    %vm364 = vcmp.ge.s32.totalorder %v358, %v363
    %vm365 = vcmp.ge.s32.totalorder %v359, %v363
    %v366 = vsel %vm364, 1, 0
    %v367 = vsel %vm365, 1, 0
    %vm368 = vcmp.ge.s32.totalorder %v361, %v363
    %v369 = vsel %vm368, 1, 0
    %s370 = sld [smem:[#allocation9 + $0x2]]
    %v371 = vstv %s370
    %vm372 = vcmp.ge.s32.totalorder %v358, %v371
    %vm373 = vcmp.ge.s32.totalorder %v359, %v371
    %v374 = vsel %vm372, 1, 0
    %v375 = vsel %vm373, 1, 0
    %v376 = vadd.s32 %v366, %v374
    %v377 = vadd.s32 %v367, %v375
    %vm378 = vcmp.ge.s32.totalorder %v361, %v371
    %v379 = vsel %vm378, 1, 0
    %v380 = vadd.s32 %v369, %v379
    %vm381 = vcmp.eq.s32.totalorder %v376, %v380
    %vm382 = vcmp.eq.s32.totalorder %v377, %v380
    %v383 = vsel %vm381, 0.0, -1e+30
    %v384 = vsel %vm382, 0.0, -1e+30
    %v385 = vld [vmem:[#allocation11] sm:$0xff]
    %v386 = vld [vmem:[#allocation11 + $0x8] sm:$0xff]
    %v387 = vld [vmem:[#allocation11 + $0x10] sm:$0xff]
    %v388 = vld [vmem:[#allocation11 + $0x18] sm:$0xff]
    %v389 = vld [vmem:[%s6 + $0x2] sm:$0x1]
    %v390 = vlaneseq
    %v391 = vshrl.u32 %v390, 7
    %v392 = vsub.s32 0, %v391
    %v393 = vrot.slane %v389, %v392
    %v395 = vsel %vm317, %v355, 0
    %v398 = vsel %vm317, %v356, 0
    %400 = vmatprep.subr.mxu0 0.0
    %401 = vmatpush1.msra.mxu0 0.0
    %402 = vmatprep.subr.mxu0 0.0
    %403 = vmatpush1.msra.mxu0 0.0
    %404 = vmatprep.subr.mxu0 0.0
    %405 = vmatpush1.msra.mxu0 0.0
    %406 = vmatprep.subr.mxu0 0.0
    %407 = vmatpush1.msra.mxu0 0.0
    %408 = vmatprep.subr.mxu0 0.0
    %409 = vmatpush1.msra.mxu0 0.0
    %410 = vmatprep.subr.mxu0 0.0
    %411 = vmatpush1.msra.mxu0 0.0
    %412 = vmatprep.subr.mxu0 0.0
    %413 = vmatpush1.msra.mxu0 0.0
    %414 = vmatprep.subr.mxu0 0.0
    %415 = vmatpush1.msra.mxu0 0.0
    %416 = vmatprep.subr.mxu0 0.0
    %417 = vmatpush1.msra.mxu0 0.0
    %418 = vmatprep.subr.mxu0 0.0
    %419 = vmatpush1.msra.mxu0 0.0
    %420 = vmatprep.subr.mxu0 0.0
    %421 = vmatpush1.msra.mxu0 0.0
    %422 = vmatprep.subr.mxu0 0.0
    %423 = vmatpush1.msra.mxu0 0.0
    %424 = vmatprep.subr.mxu0 0.0
    %425 = vmatpush1.msra.mxu0 %v388
    %426 = vmatprep.subr.mxu0 0.0
    %427 = vmatpush1.msra.mxu0 %v387
    %428 = vmatprep.subr.mxu0 0.0
    %429 = vmatpush1.msra.mxu0 %v386
    %430 = vmatprep.subr.mxu0 0.0
    %431 = vmatpush1.msra.mxu0 %v385
    %432 = vmatprep.subr.mxu0 0.0
    %433 = vmatpush2.msra.mxu0 0.0
    %434 = vmatprep.subr.mxu0 0.0
    %435 = vmatpush2.msra.mxu0 0.0
    %436 = vmatprep.subr.mxu0 0.0
    %437 = vmatpush2.msra.mxu0 0.0
    %438 = vmatprep.subr.mxu0 0.0
    %439 = vmatpush2.msra.mxu0 0.0
    %440 = vmatprep.subr.mxu0 0.0
    %441 = vmatpush2.msra.mxu0 0.0
    %442 = vmatprep.subr.mxu0 0.0
    %443 = vmatpush2.msra.mxu0 0.0
    %444 = vmatprep.subr.mxu0 0.0
    %445 = vmatpush2.msra.mxu0 0.0
    %446 = vmatprep.subr.mxu0 0.0
    %447 = vmatpush2.msra.mxu0 0.0
    %448 = vmatprep.subr.mxu0 0.0
    %449 = vmatpush2.msra.mxu0 0.0
    %450 = vmatprep.subr.mxu0 0.0
    %451 = vmatpush2.msra.mxu0 0.0
    %452 = vmatprep.subr.mxu0 0.0
    %453 = vmatpush2.msra.mxu0 0.0
    %454 = vmatprep.subr.mxu0 0.0
    %455 = vmatpush2.msra.mxu0 0.0
    %456 = vmatprep.subr.mxu0 0.0
    %457 = vmatpush2.msra.mxu0 0.0
    %458 = vmatprep.subr.mxu0 0.0
    %459 = vmatpush2.msra.mxu0 0.0
    %460 = vmatprep.subr.mxu0 0.0
    %461 = vmatpush2.msra.mxu0 0.0
    %462 = vmatprep.subr.mxu0 0.0
    %463 = vmatpush2.msra.mxu0 0.0
    %464 = vmatprep.mubr.f32.mxu0 0.0
    %465 = vmatmul.mubr.f32.gmra.mxu0 %v395
    %v466 = vpop.f32.mrf.mxu0
    %v467 = vadd.f32 %v393, %v466
    %v468 = vpop.f32.mrf.mxu0
    %469 = vmatprep.mubr.f32.mxu0 0.0
    %470 = vmatmul.mubr.f32.gmra.mxu0 %v398
    %v471 = vpop.f32.mrf.mxu0
    %v472 = vadd.f32 %v393, %v471
    %v473 = vpop.f32.mrf.mxu0
    %474 = vdwg.mxu0
    %477 = vrot.lane.b32.xlu0 %v467, 96
    %v478 = vpop.permute.xlu0 %477
    %479 = vrot.lane.b32.xlu0 %v472, 96
    %v480 = vpop.permute.xlu0 %479
    %vm481 = vcmask 64512
    %v482 = vsel %vm481, %v467, 0
    %v484 = vsel %vm481, %v472, 0
    %v486 = vsel %vm481, %v478, 0
    %v488 = vsel %vm481, %v480, 0
    %490 = vmatprep.subr.mxu0 0.0
    %491 = vmatpush1.xpose.msra.mxu0 0.0
    %492 = vmatprep.subr.mxu0 0.0
    %493 = vmatpush1.xpose.msra.mxu0 0.0
    %494 = vmatprep.subr.mxu0 0.0
    %495 = vmatpush1.xpose.msra.mxu0 0.0
    %496 = vmatprep.subr.mxu0 0.0
    %497 = vmatpush1.xpose.msra.mxu0 0.0
    %498 = vmatprep.subr.mxu0 0.0
    %499 = vmatpush1.xpose.msra.mxu0 0.0
    %500 = vmatprep.subr.mxu0 0.0
    %501 = vmatpush1.xpose.msra.mxu0 0.0
    %502 = vmatprep.subr.mxu0 0.0
    %503 = vmatpush1.xpose.msra.mxu0 0.0
    %504 = vmatprep.subr.mxu0 0.0
    %505 = vmatpush1.xpose.msra.mxu0 0.0
    %506 = vmatprep.subr.mxu0 0.0
    %507 = vmatpush1.xpose.msra.mxu0 0.0
    %508 = vmatprep.subr.mxu0 0.0
    %509 = vmatpush1.xpose.msra.mxu0 0.0
    %510 = vmatprep.subr.mxu0 0.0
    %511 = vmatpush1.xpose.msra.mxu0 0.0
    %512 = vmatprep.subr.mxu0 0.0
    %513 = vmatpush1.xpose.msra.mxu0 0.0
    %514 = vmatprep.subr.mxu0 0.0
    %515 = vmatpush1.xpose.msra.mxu0 0.0
    %516 = vmatprep.subr.mxu0 0.0
    %517 = vmatpush1.xpose.msra.mxu0 0.0
    %518 = vmatprep.subr.mxu0 0.0
    %519 = vmatpush1.xpose.msra.mxu0 %v488
    %520 = vmatprep.subr.mxu0 0.0
    %521 = vmatpush1.xpose.msra.mxu0 %v486
    %522 = vmatprep.subr.mxu0 0.0
    %523 = vmatpush2.xpose.msra.mxu0 0.0
    %524 = vmatprep.subr.mxu0 0.0
    %525 = vmatpush2.xpose.msra.mxu0 0.0
    %526 = vmatprep.subr.mxu0 0.0
    %527 = vmatpush2.xpose.msra.mxu0 0.0
    %528 = vmatprep.subr.mxu0 0.0
    %529 = vmatpush2.xpose.msra.mxu0 0.0
    %530 = vmatprep.subr.mxu0 0.0
    %531 = vmatpush2.xpose.msra.mxu0 0.0
    %532 = vmatprep.subr.mxu0 0.0
    %533 = vmatpush2.xpose.msra.mxu0 0.0
    %534 = vmatprep.subr.mxu0 0.0
    %535 = vmatpush2.xpose.msra.mxu0 0.0
    %536 = vmatprep.subr.mxu0 0.0
    %537 = vmatpush2.xpose.msra.mxu0 0.0
    %538 = vmatprep.subr.mxu0 0.0
    %539 = vmatpush2.xpose.msra.mxu0 0.0
    %540 = vmatprep.subr.mxu0 0.0
    %541 = vmatpush2.xpose.msra.mxu0 0.0
    %542 = vmatprep.subr.mxu0 0.0
    %543 = vmatpush2.xpose.msra.mxu0 0.0
    %544 = vmatprep.subr.mxu0 0.0
    %545 = vmatpush2.xpose.msra.mxu0 0.0
    %546 = vmatprep.subr.mxu0 0.0
    %547 = vmatpush2.xpose.msra.mxu0 0.0
    %548 = vmatprep.subr.mxu0 0.0
    %549 = vmatpush2.xpose.msra.mxu0 0.0
    %550 = vmatprep.subr.mxu0 0.0
    %551 = vmatpush2.xpose.msra.mxu0 0.0
    %552 = vmatprep.subr.mxu0 0.0
    %553 = vmatpush2.xpose.msra.mxu0 0.0
    %554 = vmatprep.mubr.f32.mxu0 0.0
    %555 = vmatmul.mubr.f32.gmra.mxu0 %v482
    %v556 = vpop.f32.mrf.mxu0
    %v557 = vadd.f32 %v383, %v556
    %v558 = vpop.f32.mrf.mxu0
    %559 = vmatprep.mubr.f32.mxu0 0.0
    %560 = vmatmul.mubr.f32.gmra.mxu0 %v484
    %v561 = vpop.f32.mrf.mxu0
    %v562 = vadd.f32 %v384, %v561
    %v563 = vpop.f32.mrf.mxu0
    %564 = vdwg.mxu0
    %vm565 = vcmask 130048
    %v566 = vsel %vm565, %v557, -inf
    %567 = vmax.xlane.f32.xlu0 %v566
    %v568 = vpop.xlane.xlu0 %567
    %v569 = vsel %vm565, %v562, -inf
    %570 = vmax.xlane.f32.xlu0 %v569
    %v571 = vpop.xlane.xlu0 %570
    %v572 = vsub.f32 %v557, %v568
    %v573 = vsub.f32 %v562, %v571
    %v574 = vmul.f32 %v572, 1.442695
    %v575 = vpow.pop %v574
    %v576 = vmul.f32 %v573, 1.442695
    %v577 = vpow.pop %v576
    %v578 = vsel %vm565, %v575, 0.0
    %579 = vadd.xlane.f32.xlu0 %v578
    %v580 = vpop.xlane.xlu0 %579
    %v581 = vsel %vm565, %v577, 0.0
    %582 = vadd.xlane.f32.xlu0 %v581
    %v583 = vpop.xlane.xlu0 %582
    %v584 = vrcp.pop %v580
    %v585 = vrcp.pop %v583
    %v586 = vmul.f32 %v575, %v584
    %v587 = vmul.f32 %v577, %v585
    %588 = vrot.lane.b32.xlu0 %v467, 64
    %v589 = vpop.permute.xlu0 %588
    %590 = vrot.lane.b32.xlu0 %v472, 64
    %v591 = vpop.permute.xlu0 %590
    %v595 = vsel %vm565, %v586, 0
    %v598 = vsel %vm565, %v587, 0
    %600 = vmatprep.subr.mxu0 0.0
    %601 = vmatpush1.msra.mxu0 0.0
    %602 = vmatprep.subr.mxu0 0.0
    %603 = vmatpush1.msra.mxu0 0.0
    %604 = vmatprep.subr.mxu0 0.0
    %605 = vmatpush1.msra.mxu0 0.0
    %606 = vmatprep.subr.mxu0 0.0
    %607 = vmatpush1.msra.mxu0 0.0
    %608 = vmatprep.subr.mxu0 0.0
    %609 = vmatpush1.msra.mxu0 0.0
    %610 = vmatprep.subr.mxu0 0.0
    %611 = vmatpush1.msra.mxu0 0.0
    %612 = vmatprep.subr.mxu0 0.0
    %613 = vmatpush1.msra.mxu0 0.0
    %614 = vmatprep.subr.mxu0 0.0
    %615 = vmatpush1.msra.mxu0 0.0
    %616 = vmatprep.subr.mxu0 0.0
    %617 = vmatpush1.msra.mxu0 0.0
    %618 = vmatprep.subr.mxu0 0.0
    %619 = vmatpush1.msra.mxu0 0.0
    %620 = vmatprep.subr.mxu0 0.0
    %621 = vmatpush1.msra.mxu0 0.0
    %622 = vmatprep.subr.mxu0 0.0
    %623 = vmatpush1.msra.mxu0 0.0
    %624 = vmatprep.subr.mxu0 0.0
    %625 = vmatpush1.msra.mxu0 0.0
    %626 = vmatprep.subr.mxu0 0.0
    %627 = vmatpush1.msra.mxu0 0.0
    %628 = vmatprep.subr.mxu0 0.0
    %629 = vmatpush1.msra.mxu0 %v591
    %630 = vmatprep.subr.mxu0 0.0
    %631 = vmatpush1.msra.mxu0 %v589
    %632 = vmatprep.subr.mxu0 0.0
    %633 = vmatpush2.msra.mxu0 0.0
    %634 = vmatprep.subr.mxu0 0.0
    %635 = vmatpush2.msra.mxu0 0.0
    %636 = vmatprep.subr.mxu0 0.0
    %637 = vmatpush2.msra.mxu0 0.0
    %638 = vmatprep.subr.mxu0 0.0
    %639 = vmatpush2.msra.mxu0 0.0
    %640 = vmatprep.subr.mxu0 0.0
    %641 = vmatpush2.msra.mxu0 0.0
    %642 = vmatprep.subr.mxu0 0.0
    %643 = vmatpush2.msra.mxu0 0.0
    %644 = vmatprep.subr.mxu0 0.0
    %645 = vmatpush2.msra.mxu0 0.0
    %646 = vmatprep.subr.mxu0 0.0
    %647 = vmatpush2.msra.mxu0 0.0
    %648 = vmatprep.subr.mxu0 0.0
    %649 = vmatpush2.msra.mxu0 0.0
    %650 = vmatprep.subr.mxu0 0.0
    %651 = vmatpush2.msra.mxu0 0.0
    %652 = vmatprep.subr.mxu0 0.0
    %653 = vmatpush2.msra.mxu0 0.0
    %654 = vmatprep.subr.mxu0 0.0
    %655 = vmatpush2.msra.mxu0 0.0
    %656 = vmatprep.subr.mxu0 0.0
    %657 = vmatpush2.msra.mxu0 0.0
    %658 = vmatprep.subr.mxu0 0.0
    %659 = vmatpush2.msra.mxu0 0.0
    %660 = vmatprep.subr.mxu0 0.0
    %661 = vmatpush2.msra.mxu0 0.0
    %662 = vmatprep.subr.mxu0 0.0
    %663 = vmatpush2.msra.mxu0 0.0
    %664 = vmatprep.mubr.f32.mxu0 0.0
    %665 = vmatmul.mubr.f32.gmra.mxu0 %v595
    %v666 = vpop.f32.mrf.mxu0
    %v667 = vadd.f32 0.0, %v666
    %v668 = vpop.f32.mrf.mxu0
    %669 = vmatprep.mubr.f32.mxu0 0.0
    %670 = vmatmul.mubr.f32.gmra.mxu0 %v598
    %v671 = vpop.f32.mrf.mxu0
    %v672 = vadd.f32 0.0, %v671
    %v673 = vpop.f32.mrf.mxu0
    %674 = vdwg.mxu0
    %v675 = vld [vmem:[#allocation11 + $0x20] sm:$0xff]
    %676 = vrot.lane.b32.xlu0 %v467, 120
    %v677 = vpop.permute.xlu0 %676
    %678 = vrot.lane.b32.xlu0 %v472, 120
    %v679 = vpop.permute.xlu0 %678
    %680 = vrot.lane.b32.xlu0 %v467, 88
    %v681 = vpop.permute.xlu0 %680
    %682 = vrot.lane.b32.xlu0 %v472, 88
    %v683 = vpop.permute.xlu0 %682
    %v684 = vsel %vm481, %v677, 0
    %v686 = vsel %vm481, %v679, 0
    %v688 = vsel %vm481, %v681, 0
    %v690 = vsel %vm481, %v683, 0
    %692 = vmatprep.subr.mxu0 0.0
    %693 = vmatpush1.xpose.msra.mxu0 0.0
    %694 = vmatprep.subr.mxu0 0.0
    %695 = vmatpush1.xpose.msra.mxu0 0.0
    %696 = vmatprep.subr.mxu0 0.0
    %697 = vmatpush1.xpose.msra.mxu0 0.0
    %698 = vmatprep.subr.mxu0 0.0
    %699 = vmatpush1.xpose.msra.mxu0 0.0
    %700 = vmatprep.subr.mxu0 0.0
    %701 = vmatpush1.xpose.msra.mxu0 0.0
    %702 = vmatprep.subr.mxu0 0.0
    %703 = vmatpush1.xpose.msra.mxu0 0.0
    %704 = vmatprep.subr.mxu0 0.0
    %705 = vmatpush1.xpose.msra.mxu0 0.0
    %706 = vmatprep.subr.mxu0 0.0
    %707 = vmatpush1.xpose.msra.mxu0 0.0
    %708 = vmatprep.subr.mxu0 0.0
    %709 = vmatpush1.xpose.msra.mxu0 0.0
    %710 = vmatprep.subr.mxu0 0.0
    %711 = vmatpush1.xpose.msra.mxu0 0.0
    %712 = vmatprep.subr.mxu0 0.0
    %713 = vmatpush1.xpose.msra.mxu0 0.0
    %714 = vmatprep.subr.mxu0 0.0
    %715 = vmatpush1.xpose.msra.mxu0 0.0
    %716 = vmatprep.subr.mxu0 0.0
    %717 = vmatpush1.xpose.msra.mxu0 0.0
    %718 = vmatprep.subr.mxu0 0.0
    %719 = vmatpush1.xpose.msra.mxu0 0.0
    %720 = vmatprep.subr.mxu0 0.0
    %721 = vmatpush1.xpose.msra.mxu0 %v690
    %722 = vmatprep.subr.mxu0 0.0
    %723 = vmatpush1.xpose.msra.mxu0 %v688
    %724 = vmatprep.subr.mxu0 0.0
    %725 = vmatpush2.xpose.msra.mxu0 0.0
    %726 = vmatprep.subr.mxu0 0.0
    %727 = vmatpush2.xpose.msra.mxu0 0.0
    %728 = vmatprep.subr.mxu0 0.0
    %729 = vmatpush2.xpose.msra.mxu0 0.0
    %730 = vmatprep.subr.mxu0 0.0
    %731 = vmatpush2.xpose.msra.mxu0 0.0
    %732 = vmatprep.subr.mxu0 0.0
    %733 = vmatpush2.xpose.msra.mxu0 0.0
    %734 = vmatprep.subr.mxu0 0.0
    %735 = vmatpush2.xpose.msra.mxu0 0.0
    %736 = vmatprep.subr.mxu0 0.0
    %737 = vmatpush2.xpose.msra.mxu0 0.0
    %738 = vmatprep.subr.mxu0 0.0
    %739 = vmatpush2.xpose.msra.mxu0 0.0
    %740 = vmatprep.subr.mxu0 0.0
    %741 = vmatpush2.xpose.msra.mxu0 0.0
    %742 = vmatprep.subr.mxu0 0.0
    %743 = vmatpush2.xpose.msra.mxu0 0.0
    %744 = vmatprep.subr.mxu0 0.0
    %745 = vmatpush2.xpose.msra.mxu0 0.0
    %746 = vmatprep.subr.mxu0 0.0
    %747 = vmatpush2.xpose.msra.mxu0 0.0
    %748 = vmatprep.subr.mxu0 0.0
    %749 = vmatpush2.xpose.msra.mxu0 0.0
    %750 = vmatprep.subr.mxu0 0.0
    %751 = vmatpush2.xpose.msra.mxu0 0.0
    %752 = vmatprep.subr.mxu0 0.0
    %753 = vmatpush2.xpose.msra.mxu0 0.0
    %754 = vmatprep.subr.mxu0 0.0
    %755 = vmatpush2.xpose.msra.mxu0 0.0
    %756 = vmatprep.mubr.f32.mxu0 0.0
    %757 = vmatmul.mubr.f32.gmra.mxu0 %v684
    %v758 = vpop.f32.mrf.mxu0
    %v759 = vadd.f32 %v383, %v758
    %v760 = vpop.f32.mrf.mxu0
    %761 = vmatprep.mubr.f32.mxu0 0.0
    %762 = vmatmul.mubr.f32.gmra.mxu0 %v686
    %v763 = vpop.f32.mrf.mxu0
    %v764 = vadd.f32 %v384, %v763
    %v765 = vpop.f32.mrf.mxu0
    %766 = vdwg.mxu0
    %v767 = vsel %vm565, %v759, -inf
    %768 = vmax.xlane.f32.xlu0 %v767
    %v769 = vpop.xlane.xlu0 %768
    %v770 = vsel %vm565, %v764, -inf
    %771 = vmax.xlane.f32.xlu0 %v770
    %v772 = vpop.xlane.xlu0 %771
    %v773 = vsub.f32 %v759, %v769
    %v774 = vsub.f32 %v764, %v772
    %v775 = vmul.f32 %v773, 1.442695
    %v776 = vpow.pop %v775
    %v777 = vmul.f32 %v774, 1.442695
    %v778 = vpow.pop %v777
    %v779 = vsel %vm565, %v776, 0.0
    %780 = vadd.xlane.f32.xlu0 %v779
    %v781 = vpop.xlane.xlu0 %780
    %v782 = vsel %vm565, %v778, 0.0
    %783 = vadd.xlane.f32.xlu0 %v782
    %v784 = vpop.xlane.xlu0 %783
    %v785 = vrcp.pop %v781
    %v786 = vrcp.pop %v784
    %v787 = vmul.f32 %v776, %v785
    %v788 = vmul.f32 %v778, %v786
    %789 = vrot.lane.b32.xlu0 %v467, 56
    %v790 = vpop.permute.xlu0 %789
    %791 = vrot.lane.b32.xlu0 %v472, 56
    %v792 = vpop.permute.xlu0 %791
    %v796 = vsel %vm565, %v787, 0
    %v799 = vsel %vm565, %v788, 0
    %801 = vmatprep.subr.mxu0 0.0
    %802 = vmatpush1.msra.mxu0 0.0
    %803 = vmatprep.subr.mxu0 0.0
    %804 = vmatpush1.msra.mxu0 0.0
    %805 = vmatprep.subr.mxu0 0.0
    %806 = vmatpush1.msra.mxu0 0.0
    %807 = vmatprep.subr.mxu0 0.0
    %808 = vmatpush1.msra.mxu0 0.0
    %809 = vmatprep.subr.mxu0 0.0
    %810 = vmatpush1.msra.mxu0 0.0
    %811 = vmatprep.subr.mxu0 0.0
    %812 = vmatpush1.msra.mxu0 0.0
    %813 = vmatprep.subr.mxu0 0.0
    %814 = vmatpush1.msra.mxu0 0.0
    %815 = vmatprep.subr.mxu0 0.0
    %816 = vmatpush1.msra.mxu0 0.0
    %817 = vmatprep.subr.mxu0 0.0
    %818 = vmatpush1.msra.mxu0 0.0
    %819 = vmatprep.subr.mxu0 0.0
    %820 = vmatpush1.msra.mxu0 0.0
    %821 = vmatprep.subr.mxu0 0.0
    %822 = vmatpush1.msra.mxu0 0.0
    %823 = vmatprep.subr.mxu0 0.0
    %824 = vmatpush1.msra.mxu0 0.0
    %825 = vmatprep.subr.mxu0 0.0
    %826 = vmatpush1.msra.mxu0 0.0
    %827 = vmatprep.subr.mxu0 0.0
    %828 = vmatpush1.msra.mxu0 0.0
    %829 = vmatprep.subr.mxu0 0.0
    %830 = vmatpush1.msra.mxu0 %v792
    %831 = vmatprep.subr.mxu0 0.0
    %832 = vmatpush1.msra.mxu0 %v790
    %833 = vmatprep.subr.mxu0 0.0
    %834 = vmatpush2.msra.mxu0 0.0
    %835 = vmatprep.subr.mxu0 0.0
    %836 = vmatpush2.msra.mxu0 0.0
    %837 = vmatprep.subr.mxu0 0.0
    %838 = vmatpush2.msra.mxu0 0.0
    %839 = vmatprep.subr.mxu0 0.0
    %840 = vmatpush2.msra.mxu0 0.0
    %841 = vmatprep.subr.mxu0 0.0
    %842 = vmatpush2.msra.mxu0 0.0
    %843 = vmatprep.subr.mxu0 0.0
    %844 = vmatpush2.msra.mxu0 0.0
    %845 = vmatprep.subr.mxu0 0.0
    %846 = vmatpush2.msra.mxu0 0.0
    %847 = vmatprep.subr.mxu0 0.0
    %848 = vmatpush2.msra.mxu0 0.0
    %849 = vmatprep.subr.mxu0 0.0
    %850 = vmatpush2.msra.mxu0 0.0
    %851 = vmatprep.subr.mxu0 0.0
    %852 = vmatpush2.msra.mxu0 0.0
    %853 = vmatprep.subr.mxu0 0.0
    %854 = vmatpush2.msra.mxu0 0.0
    %855 = vmatprep.subr.mxu0 0.0
    %856 = vmatpush2.msra.mxu0 0.0
    %857 = vmatprep.subr.mxu0 0.0
    %858 = vmatpush2.msra.mxu0 0.0
    %859 = vmatprep.subr.mxu0 0.0
    %860 = vmatpush2.msra.mxu0 0.0
    %861 = vmatprep.subr.mxu0 0.0
    %862 = vmatpush2.msra.mxu0 0.0
    %863 = vmatprep.subr.mxu0 0.0
    %864 = vmatpush2.msra.mxu0 0.0
    %865 = vmatprep.mubr.f32.mxu0 0.0
    %866 = vmatmul.mubr.f32.gmra.mxu0 %v796
    %v867 = vpop.f32.mrf.mxu0
    %v868 = vadd.f32 0.0, %v867
    %v869 = vpop.f32.mrf.mxu0
    %870 = vmatprep.mubr.f32.mxu0 0.0
    %871 = vmatmul.mubr.f32.gmra.mxu0 %v799
    %v872 = vpop.f32.mrf.mxu0
    %v873 = vadd.f32 0.0, %v872
    %v874 = vpop.f32.mrf.mxu0
    %875 = vdwg.mxu0
    %v876 = vld [vmem:[#allocation11 + $0x28] sm:$0xff]
    %v878 = vsel %vm481, %v868, 0
    %v881 = vsel %vm481, %v873, 0
    %883 = vmatprep.subr.mxu0 0.0
    %884 = vmatpush1.msra.mxu0 0.0
    %885 = vmatprep.subr.mxu0 0.0
    %886 = vmatpush1.msra.mxu0 0.0
    %887 = vmatprep.subr.mxu0 0.0
    %888 = vmatpush1.msra.mxu0 0.0
    %889 = vmatprep.subr.mxu0 0.0
    %890 = vmatpush1.msra.mxu0 0.0
    %891 = vmatprep.subr.mxu0 0.0
    %892 = vmatpush1.msra.mxu0 0.0
    %893 = vmatprep.subr.mxu0 0.0
    %894 = vmatpush1.msra.mxu0 0.0
    %895 = vmatprep.subr.mxu0 0.0
    %896 = vmatpush1.msra.mxu0 0.0
    %897 = vmatprep.subr.mxu0 0.0
    %898 = vmatpush1.msra.mxu0 0.0
    %899 = vmatprep.subr.mxu0 0.0
    %900 = vmatpush1.msra.mxu0 0.0
    %901 = vmatprep.subr.mxu0 0.0
    %902 = vmatpush1.msra.mxu0 0.0
    %903 = vmatprep.subr.mxu0 0.0
    %904 = vmatpush1.msra.mxu0 0.0
    %905 = vmatprep.subr.mxu0 0.0
    %906 = vmatpush1.msra.mxu0 0.0
    %907 = vmatprep.subr.mxu0 0.0
    %908 = vmatpush1.msra.mxu0 0.0
    %909 = vmatprep.subr.mxu0 0.0
    %910 = vmatpush1.msra.mxu0 0.0
    %911 = vmatprep.subr.mxu0 0.0
    %912 = vmatpush1.msra.mxu0 0.0
    %913 = vmatprep.subr.mxu0 0.0
    %914 = vmatpush1.msra.mxu0 %v876
    %915 = vmatprep.subr.mxu0 0.0
    %916 = vmatpush2.msra.mxu0 0.0
    %917 = vmatprep.subr.mxu0 0.0
    %918 = vmatpush2.msra.mxu0 0.0
    %919 = vmatprep.subr.mxu0 0.0
    %920 = vmatpush2.msra.mxu0 0.0
    %921 = vmatprep.subr.mxu0 0.0
    %922 = vmatpush2.msra.mxu0 0.0
    %923 = vmatprep.subr.mxu0 0.0
    %924 = vmatpush2.msra.mxu0 0.0
    %925 = vmatprep.subr.mxu0 0.0
    %926 = vmatpush2.msra.mxu0 0.0
    %927 = vmatprep.subr.mxu0 0.0
    %928 = vmatpush2.msra.mxu0 0.0
    %929 = vmatprep.subr.mxu0 0.0
    %930 = vmatpush2.msra.mxu0 0.0
    %931 = vmatprep.subr.mxu0 0.0
    %932 = vmatpush2.msra.mxu0 0.0
    %933 = vmatprep.subr.mxu0 0.0
    %934 = vmatpush2.msra.mxu0 0.0
    %935 = vmatprep.subr.mxu0 0.0
    %936 = vmatpush2.msra.mxu0 0.0
    %937 = vmatprep.subr.mxu0 0.0
    %938 = vmatpush2.msra.mxu0 0.0
    %939 = vmatprep.subr.mxu0 0.0
    %940 = vmatpush2.msra.mxu0 0.0
    %941 = vmatprep.subr.mxu0 0.0
    %942 = vmatpush2.msra.mxu0 0.0
    %943 = vmatprep.subr.mxu0 0.0
    %944 = vmatpush2.msra.mxu0 0.0
    %945 = vmatprep.subr.mxu0 0.0
    %946 = vmatpush2.msra.mxu0 0.0
    %947 = vmatprep.mubr.f32.mxu0 0.0
    %948 = vmatmul.mubr.f32.gmra.mxu0 %v878
    %v949 = vpop.f32.mrf.mxu0
    %v950 = vadd.f32 0.0, %v949
    %v951 = vpop.f32.mrf.mxu0
    %952 = vmatprep.mubr.f32.mxu0 0.0
    %953 = vmatmul.mubr.f32.gmra.mxu0 %v881
    %v954 = vpop.f32.mrf.mxu0
    %v955 = vadd.f32 0.0, %v954
    %v956 = vpop.f32.mrf.mxu0
    %957 = vdwg.mxu0
    %v959 = vsel %vm481, %v667, 0
    %v962 = vsel %vm481, %v672, 0
    %964 = vmatprep.subr.mxu0 0.0
    %965 = vmatpush1.msra.mxu0 0.0
    %966 = vmatprep.subr.mxu0 0.0
    %967 = vmatpush1.msra.mxu0 0.0
    %968 = vmatprep.subr.mxu0 0.0
    %969 = vmatpush1.msra.mxu0 0.0
    %970 = vmatprep.subr.mxu0 0.0
    %971 = vmatpush1.msra.mxu0 0.0
    %972 = vmatprep.subr.mxu0 0.0
    %973 = vmatpush1.msra.mxu0 0.0
    %974 = vmatprep.subr.mxu0 0.0
    %975 = vmatpush1.msra.mxu0 0.0
    %976 = vmatprep.subr.mxu0 0.0
    %977 = vmatpush1.msra.mxu0 0.0
    %978 = vmatprep.subr.mxu0 0.0
    %979 = vmatpush1.msra.mxu0 0.0
    %980 = vmatprep.subr.mxu0 0.0
    %981 = vmatpush1.msra.mxu0 0.0
    %982 = vmatprep.subr.mxu0 0.0
    %983 = vmatpush1.msra.mxu0 0.0
    %984 = vmatprep.subr.mxu0 0.0
    %985 = vmatpush1.msra.mxu0 0.0
    %986 = vmatprep.subr.mxu0 0.0
    %987 = vmatpush1.msra.mxu0 0.0
    %988 = vmatprep.subr.mxu0 0.0
    %989 = vmatpush1.msra.mxu0 0.0
    %990 = vmatprep.subr.mxu0 0.0
    %991 = vmatpush1.msra.mxu0 0.0
    %992 = vmatprep.subr.mxu0 0.0
    %993 = vmatpush1.msra.mxu0 0.0
    %994 = vmatprep.subr.mxu0 0.0
    %995 = vmatpush1.msra.mxu0 %v675
    %996 = vmatprep.subr.mxu0 0.0
    %997 = vmatpush2.msra.mxu0 0.0
    %998 = vmatprep.subr.mxu0 0.0
    %999 = vmatpush2.msra.mxu0 0.0
    %1000 = vmatprep.subr.mxu0 0.0
    %1001 = vmatpush2.msra.mxu0 0.0
    %1002 = vmatprep.subr.mxu0 0.0
    %1003 = vmatpush2.msra.mxu0 0.0
    %1004 = vmatprep.subr.mxu0 0.0
    %1005 = vmatpush2.msra.mxu0 0.0
    %1006 = vmatprep.subr.mxu0 0.0
    %1007 = vmatpush2.msra.mxu0 0.0
    %1008 = vmatprep.subr.mxu0 0.0
    %1009 = vmatpush2.msra.mxu0 0.0
    %1010 = vmatprep.subr.mxu0 0.0
    %1011 = vmatpush2.msra.mxu0 0.0
    %1012 = vmatprep.subr.mxu0 0.0
    %1013 = vmatpush2.msra.mxu0 0.0
    %1014 = vmatprep.subr.mxu0 0.0
    %1015 = vmatpush2.msra.mxu0 0.0
    %1016 = vmatprep.subr.mxu0 0.0
    %1017 = vmatpush2.msra.mxu0 0.0
    %1018 = vmatprep.subr.mxu0 0.0
    %1019 = vmatpush2.msra.mxu0 0.0
    %1020 = vmatprep.subr.mxu0 0.0
    %1021 = vmatpush2.msra.mxu0 0.0
    %1022 = vmatprep.subr.mxu0 0.0
    %1023 = vmatpush2.msra.mxu0 0.0
    %1024 = vmatprep.subr.mxu0 0.0
    %1025 = vmatpush2.msra.mxu0 0.0
    %1026 = vmatprep.subr.mxu0 0.0
    %1027 = vmatpush2.msra.mxu0 0.0
    %1028 = vmatprep.mubr.f32.mxu0 0.0
    %1029 = vmatmul.mubr.f32.gmra.mxu0 %v959
    %v1030 = vpop.f32.mrf.mxu0
    %v1031 = vadd.f32 %v950, %v1030
    %v1032 = vpop.f32.mrf.mxu0
    %1033 = vmatprep.mubr.f32.mxu0 0.0
    %1034 = vmatmul.mubr.f32.gmra.mxu0 %v962
    %v1035 = vpop.f32.mrf.mxu0
    %v1036 = vadd.f32 %v955, %v1035
    %v1037 = vpop.f32.mrf.mxu0
    %1038 = vdwg.mxu0
    %1039 = vrot.lane.b32.xlu0 %v467, 112
    %v1040 = vpop.permute.xlu0 %1039
    %1041 = vrot.lane.b32.xlu0 %v472, 112
    %v1042 = vpop.permute.xlu0 %1041
    %1043 = vrot.lane.b32.xlu0 %v467, 80
    %v1044 = vpop.permute.xlu0 %1043
    %1045 = vrot.lane.b32.xlu0 %v472, 80
    %v1046 = vpop.permute.xlu0 %1045
    %v1047 = vsel %vm481, %v1040, 0
    %v1049 = vsel %vm481, %v1042, 0
    %v1051 = vsel %vm481, %v1044, 0
    %v1053 = vsel %vm481, %v1046, 0
    %1055 = vmatprep.subr.mxu0 0.0
    %1056 = vmatpush1.xpose.msra.mxu0 0.0
    %1057 = vmatprep.subr.mxu0 0.0
    %1058 = vmatpush1.xpose.msra.mxu0 0.0
    %1059 = vmatprep.subr.mxu0 0.0
    %1060 = vmatpush1.xpose.msra.mxu0 0.0
    %1061 = vmatprep.subr.mxu0 0.0
    %1062 = vmatpush1.xpose.msra.mxu0 0.0
    %1063 = vmatprep.subr.mxu0 0.0
    %1064 = vmatpush1.xpose.msra.mxu0 0.0
    %1065 = vmatprep.subr.mxu0 0.0
    %1066 = vmatpush1.xpose.msra.mxu0 0.0
    %1067 = vmatprep.subr.mxu0 0.0
    %1068 = vmatpush1.xpose.msra.mxu0 0.0
    %1069 = vmatprep.subr.mxu0 0.0
    %1070 = vmatpush1.xpose.msra.mxu0 0.0
    %1071 = vmatprep.subr.mxu0 0.0
    %1072 = vmatpush1.xpose.msra.mxu0 0.0
    %1073 = vmatprep.subr.mxu0 0.0
    %1074 = vmatpush1.xpose.msra.mxu0 0.0
    %1075 = vmatprep.subr.mxu0 0.0
    %1076 = vmatpush1.xpose.msra.mxu0 0.0
    %1077 = vmatprep.subr.mxu0 0.0
    %1078 = vmatpush1.xpose.msra.mxu0 0.0
    %1079 = vmatprep.subr.mxu0 0.0
    %1080 = vmatpush1.xpose.msra.mxu0 0.0
    %1081 = vmatprep.subr.mxu0 0.0
    %1082 = vmatpush1.xpose.msra.mxu0 0.0
    %1083 = vmatprep.subr.mxu0 0.0
    %1084 = vmatpush1.xpose.msra.mxu0 %v1053
    %1085 = vmatprep.subr.mxu0 0.0
    %1086 = vmatpush1.xpose.msra.mxu0 %v1051
    %1087 = vmatprep.subr.mxu0 0.0
    %1088 = vmatpush2.xpose.msra.mxu0 0.0
    %1089 = vmatprep.subr.mxu0 0.0
    %1090 = vmatpush2.xpose.msra.mxu0 0.0
    %1091 = vmatprep.subr.mxu0 0.0
    %1092 = vmatpush2.xpose.msra.mxu0 0.0
    %1093 = vmatprep.subr.mxu0 0.0
    %1094 = vmatpush2.xpose.msra.mxu0 0.0
    %1095 = vmatprep.subr.mxu0 0.0
    %1096 = vmatpush2.xpose.msra.mxu0 0.0
    %1097 = vmatprep.subr.mxu0 0.0
    %1098 = vmatpush2.xpose.msra.mxu0 0.0
    %1099 = vmatprep.subr.mxu0 0.0
    %1100 = vmatpush2.xpose.msra.mxu0 0.0
    %1101 = vmatprep.subr.mxu0 0.0
    %1102 = vmatpush2.xpose.msra.mxu0 0.0
    %1103 = vmatprep.subr.mxu0 0.0
    %1104 = vmatpush2.xpose.msra.mxu0 0.0
    %1105 = vmatprep.subr.mxu0 0.0
    %1106 = vmatpush2.xpose.msra.mxu0 0.0
    %1107 = vmatprep.subr.mxu0 0.0
    %1108 = vmatpush2.xpose.msra.mxu0 0.0
    %1109 = vmatprep.subr.mxu0 0.0
    %1110 = vmatpush2.xpose.msra.mxu0 0.0
    %1111 = vmatprep.subr.mxu0 0.0
    %1112 = vmatpush2.xpose.msra.mxu0 0.0
    %1113 = vmatprep.subr.mxu0 0.0
    %1114 = vmatpush2.xpose.msra.mxu0 0.0
    %1115 = vmatprep.subr.mxu0 0.0
    %1116 = vmatpush2.xpose.msra.mxu0 0.0
    %1117 = vmatprep.subr.mxu0 0.0
    %1118 = vmatpush2.xpose.msra.mxu0 0.0
    %1119 = vmatprep.mubr.f32.mxu0 0.0
    %1120 = vmatmul.mubr.f32.gmra.mxu0 %v1047
    %v1121 = vpop.f32.mrf.mxu0
    %v1122 = vadd.f32 %v383, %v1121
    %v1123 = vpop.f32.mrf.mxu0
    %1124 = vmatprep.mubr.f32.mxu0 0.0
    %1125 = vmatmul.mubr.f32.gmra.mxu0 %v1049
    %v1126 = vpop.f32.mrf.mxu0
    %v1127 = vadd.f32 %v384, %v1126
    %v1128 = vpop.f32.mrf.mxu0
    %1129 = vdwg.mxu0
    %v1130 = vsel %vm565, %v1122, -inf
    %1131 = vmax.xlane.f32.xlu0 %v1130
    %v1132 = vpop.xlane.xlu0 %1131
    %v1133 = vsel %vm565, %v1127, -inf
    %1134 = vmax.xlane.f32.xlu0 %v1133
    %v1135 = vpop.xlane.xlu0 %1134
    %v1136 = vsub.f32 %v1122, %v1132
    %v1137 = vsub.f32 %v1127, %v1135
    %v1138 = vmul.f32 %v1136, 1.442695
    %v1139 = vpow.pop %v1138
    %v1140 = vmul.f32 %v1137, 1.442695
    %v1141 = vpow.pop %v1140
    %v1142 = vsel %vm565, %v1139, 0.0
    %1143 = vadd.xlane.f32.xlu0 %v1142
    %v1144 = vpop.xlane.xlu0 %1143
    %v1145 = vsel %vm565, %v1141, 0.0
    %1146 = vadd.xlane.f32.xlu0 %v1145
    %v1147 = vpop.xlane.xlu0 %1146
    %v1148 = vrcp.pop %v1144
    %v1149 = vrcp.pop %v1147
    %v1150 = vmul.f32 %v1139, %v1148
    %v1151 = vmul.f32 %v1141, %v1149
    %1152 = vrot.lane.b32.xlu0 %v467, 48
    %v1153 = vpop.permute.xlu0 %1152
    %1154 = vrot.lane.b32.xlu0 %v472, 48
    %v1155 = vpop.permute.xlu0 %1154
    %v1159 = vsel %vm565, %v1150, 0
    %v1162 = vsel %vm565, %v1151, 0
    %1164 = vmatprep.subr.mxu0 0.0
    %1165 = vmatpush1.msra.mxu0 0.0
    %1166 = vmatprep.subr.mxu0 0.0
    %1167 = vmatpush1.msra.mxu0 0.0
    %1168 = vmatprep.subr.mxu0 0.0
    %1169 = vmatpush1.msra.mxu0 0.0
    %1170 = vmatprep.subr.mxu0 0.0
    %1171 = vmatpush1.msra.mxu0 0.0
    %1172 = vmatprep.subr.mxu0 0.0
    %1173 = vmatpush1.msra.mxu0 0.0
    %1174 = vmatprep.subr.mxu0 0.0
    %1175 = vmatpush1.msra.mxu0 0.0
    %1176 = vmatprep.subr.mxu0 0.0
    %1177 = vmatpush1.msra.mxu0 0.0
    %1178 = vmatprep.subr.mxu0 0.0
    %1179 = vmatpush1.msra.mxu0 0.0
    %1180 = vmatprep.subr.mxu0 0.0
    %1181 = vmatpush1.msra.mxu0 0.0
    %1182 = vmatprep.subr.mxu0 0.0
    %1183 = vmatpush1.msra.mxu0 0.0
    %1184 = vmatprep.subr.mxu0 0.0
    %1185 = vmatpush1.msra.mxu0 0.0
    %1186 = vmatprep.subr.mxu0 0.0
    %1187 = vmatpush1.msra.mxu0 0.0
    %1188 = vmatprep.subr.mxu0 0.0
    %1189 = vmatpush1.msra.mxu0 0.0
    %1190 = vmatprep.subr.mxu0 0.0
    %1191 = vmatpush1.msra.mxu0 0.0
    %1192 = vmatprep.subr.mxu0 0.0
    %1193 = vmatpush1.msra.mxu0 %v1155
    %1194 = vmatprep.subr.mxu0 0.0
    %1195 = vmatpush1.msra.mxu0 %v1153
    %1196 = vmatprep.subr.mxu0 0.0
    %1197 = vmatpush2.msra.mxu0 0.0
    %1198 = vmatprep.subr.mxu0 0.0
    %1199 = vmatpush2.msra.mxu0 0.0
    %1200 = vmatprep.subr.mxu0 0.0
    %1201 = vmatpush2.msra.mxu0 0.0
    %1202 = vmatprep.subr.mxu0 0.0
    %1203 = vmatpush2.msra.mxu0 0.0
    %1204 = vmatprep.subr.mxu0 0.0
    %1205 = vmatpush2.msra.mxu0 0.0
    %1206 = vmatprep.subr.mxu0 0.0
    %1207 = vmatpush2.msra.mxu0 0.0
    %1208 = vmatprep.subr.mxu0 0.0
    %1209 = vmatpush2.msra.mxu0 0.0
    %1210 = vmatprep.subr.mxu0 0.0
    %1211 = vmatpush2.msra.mxu0 0.0
    %1212 = vmatprep.subr.mxu0 0.0
    %1213 = vmatpush2.msra.mxu0 0.0
    %1214 = vmatprep.subr.mxu0 0.0
    %1215 = vmatpush2.msra.mxu0 0.0
    %1216 = vmatprep.subr.mxu0 0.0
    %1217 = vmatpush2.msra.mxu0 0.0
    %1218 = vmatprep.subr.mxu0 0.0
    %1219 = vmatpush2.msra.mxu0 0.0
    %1220 = vmatprep.subr.mxu0 0.0
    %1221 = vmatpush2.msra.mxu0 0.0
    %1222 = vmatprep.subr.mxu0 0.0
    %1223 = vmatpush2.msra.mxu0 0.0
    %1224 = vmatprep.subr.mxu0 0.0
    %1225 = vmatpush2.msra.mxu0 0.0
    %1226 = vmatprep.subr.mxu0 0.0
    %1227 = vmatpush2.msra.mxu0 0.0
    %1228 = vmatprep.mubr.f32.mxu0 0.0
    %1229 = vmatmul.mubr.f32.gmra.mxu0 %v1159
    %v1230 = vpop.f32.mrf.mxu0
    %v1231 = vadd.f32 0.0, %v1230
    %v1232 = vpop.f32.mrf.mxu0
    %1233 = vmatprep.mubr.f32.mxu0 0.0
    %1234 = vmatmul.mubr.f32.gmra.mxu0 %v1162
    %v1235 = vpop.f32.mrf.mxu0
    %v1236 = vadd.f32 0.0, %v1235
    %v1237 = vpop.f32.mrf.mxu0
    %1238 = vdwg.mxu0
    %v1239 = vld [vmem:[#allocation11 + $0x30] sm:$0xff]
    %v1241 = vsel %vm481, %v1231, 0
    %v1244 = vsel %vm481, %v1236, 0
    %1246 = vmatprep.subr.mxu0 0.0
    %1247 = vmatpush1.msra.mxu0 0.0
    %1248 = vmatprep.subr.mxu0 0.0
    %1249 = vmatpush1.msra.mxu0 0.0
    %1250 = vmatprep.subr.mxu0 0.0
    %1251 = vmatpush1.msra.mxu0 0.0
    %1252 = vmatprep.subr.mxu0 0.0
    %1253 = vmatpush1.msra.mxu0 0.0
    %1254 = vmatprep.subr.mxu0 0.0
    %1255 = vmatpush1.msra.mxu0 0.0
    %1256 = vmatprep.subr.mxu0 0.0
    %1257 = vmatpush1.msra.mxu0 0.0
    %1258 = vmatprep.subr.mxu0 0.0
    %1259 = vmatpush1.msra.mxu0 0.0
    %1260 = vmatprep.subr.mxu0 0.0
    %1261 = vmatpush1.msra.mxu0 0.0
    %1262 = vmatprep.subr.mxu0 0.0
    %1263 = vmatpush1.msra.mxu0 0.0
    %1264 = vmatprep.subr.mxu0 0.0
    %1265 = vmatpush1.msra.mxu0 0.0
    %1266 = vmatprep.subr.mxu0 0.0
    %1267 = vmatpush1.msra.mxu0 0.0
    %1268 = vmatprep.subr.mxu0 0.0
    %1269 = vmatpush1.msra.mxu0 0.0
    %1270 = vmatprep.subr.mxu0 0.0
    %1271 = vmatpush1.msra.mxu0 0.0
    %1272 = vmatprep.subr.mxu0 0.0
    %1273 = vmatpush1.msra.mxu0 0.0
    %1274 = vmatprep.subr.mxu0 0.0
    %1275 = vmatpush1.msra.mxu0 0.0
    %1276 = vmatprep.subr.mxu0 0.0
    %1277 = vmatpush1.msra.mxu0 %v1239
    %1278 = vmatprep.subr.mxu0 0.0
    %1279 = vmatpush2.msra.mxu0 0.0
    %1280 = vmatprep.subr.mxu0 0.0
    %1281 = vmatpush2.msra.mxu0 0.0
    %1282 = vmatprep.subr.mxu0 0.0
    %1283 = vmatpush2.msra.mxu0 0.0
    %1284 = vmatprep.subr.mxu0 0.0
    %1285 = vmatpush2.msra.mxu0 0.0
    %1286 = vmatprep.subr.mxu0 0.0
    %1287 = vmatpush2.msra.mxu0 0.0
    %1288 = vmatprep.subr.mxu0 0.0
    %1289 = vmatpush2.msra.mxu0 0.0
    %1290 = vmatprep.subr.mxu0 0.0
    %1291 = vmatpush2.msra.mxu0 0.0
    %1292 = vmatprep.subr.mxu0 0.0
    %1293 = vmatpush2.msra.mxu0 0.0
    %1294 = vmatprep.subr.mxu0 0.0
    %1295 = vmatpush2.msra.mxu0 0.0
    %1296 = vmatprep.subr.mxu0 0.0
    %1297 = vmatpush2.msra.mxu0 0.0
    %1298 = vmatprep.subr.mxu0 0.0
    %1299 = vmatpush2.msra.mxu0 0.0
    %1300 = vmatprep.subr.mxu0 0.0
    %1301 = vmatpush2.msra.mxu0 0.0
    %1302 = vmatprep.subr.mxu0 0.0
    %1303 = vmatpush2.msra.mxu0 0.0
    %1304 = vmatprep.subr.mxu0 0.0
    %1305 = vmatpush2.msra.mxu0 0.0
    %1306 = vmatprep.subr.mxu0 0.0
    %1307 = vmatpush2.msra.mxu0 0.0
    %1308 = vmatprep.subr.mxu0 0.0
    %1309 = vmatpush2.msra.mxu0 0.0
    %1310 = vmatprep.mubr.f32.mxu0 0.0
    %1311 = vmatmul.mubr.f32.gmra.mxu0 %v1241
    %v1312 = vpop.f32.mrf.mxu0
    %v1313 = vadd.f32 0.0, %v1312
    %v1314 = vpop.f32.mrf.mxu0
    %1315 = vmatprep.mubr.f32.mxu0 0.0
    %1316 = vmatmul.mubr.f32.gmra.mxu0 %v1244
    %v1317 = vpop.f32.mrf.mxu0
    %v1318 = vadd.f32 0.0, %v1317
    %v1319 = vpop.f32.mrf.mxu0
    %1320 = vdwg.mxu0
    %v1321 = vadd.f32 %v1031, %v1313
    %v1322 = vadd.f32 %v1036, %v1318
    %1323 = vrot.lane.b32.xlu0 %v467, 104
    %v1324 = vpop.permute.xlu0 %1323
    %1325 = vrot.lane.b32.xlu0 %v472, 104
    %v1326 = vpop.permute.xlu0 %1325
    %1327 = vrot.lane.b32.xlu0 %v467, 72
    %v1328 = vpop.permute.xlu0 %1327
    %1329 = vrot.lane.b32.xlu0 %v472, 72
    %v1330 = vpop.permute.xlu0 %1329
    %v1331 = vsel %vm481, %v1324, 0
    %v1333 = vsel %vm481, %v1326, 0
    %v1335 = vsel %vm481, %v1328, 0
    %v1337 = vsel %vm481, %v1330, 0
    %1339 = vmatprep.subr.mxu0 0.0
    %1340 = vmatpush1.xpose.msra.mxu0 0.0
    %1341 = vmatprep.subr.mxu0 0.0
    %1342 = vmatpush1.xpose.msra.mxu0 0.0
    %1343 = vmatprep.subr.mxu0 0.0
    %1344 = vmatpush1.xpose.msra.mxu0 0.0
    %1345 = vmatprep.subr.mxu0 0.0
    %1346 = vmatpush1.xpose.msra.mxu0 0.0
    %1347 = vmatprep.subr.mxu0 0.0
    %1348 = vmatpush1.xpose.msra.mxu0 0.0
    %1349 = vmatprep.subr.mxu0 0.0
    %1350 = vmatpush1.xpose.msra.mxu0 0.0
    %1351 = vmatprep.subr.mxu0 0.0
    %1352 = vmatpush1.xpose.msra.mxu0 0.0
    %1353 = vmatprep.subr.mxu0 0.0
    %1354 = vmatpush1.xpose.msra.mxu0 0.0
    %1355 = vmatprep.subr.mxu0 0.0
    %1356 = vmatpush1.xpose.msra.mxu0 0.0
    %1357 = vmatprep.subr.mxu0 0.0
    %1358 = vmatpush1.xpose.msra.mxu0 0.0
    %1359 = vmatprep.subr.mxu0 0.0
    %1360 = vmatpush1.xpose.msra.mxu0 0.0
    %1361 = vmatprep.subr.mxu0 0.0
    %1362 = vmatpush1.xpose.msra.mxu0 0.0
    %1363 = vmatprep.subr.mxu0 0.0
    %1364 = vmatpush1.xpose.msra.mxu0 0.0
    %1365 = vmatprep.subr.mxu0 0.0
    %1366 = vmatpush1.xpose.msra.mxu0 0.0
    %1367 = vmatprep.subr.mxu0 0.0
    %1368 = vmatpush1.xpose.msra.mxu0 %v1337
    %1369 = vmatprep.subr.mxu0 0.0
    %1370 = vmatpush1.xpose.msra.mxu0 %v1335
    %1371 = vmatprep.subr.mxu0 0.0
    %1372 = vmatpush2.xpose.msra.mxu0 0.0
    %1373 = vmatprep.subr.mxu0 0.0
    %1374 = vmatpush2.xpose.msra.mxu0 0.0
    %1375 = vmatprep.subr.mxu0 0.0
    %1376 = vmatpush2.xpose.msra.mxu0 0.0
    %1377 = vmatprep.subr.mxu0 0.0
    %1378 = vmatpush2.xpose.msra.mxu0 0.0
    %1379 = vmatprep.subr.mxu0 0.0
    %1380 = vmatpush2.xpose.msra.mxu0 0.0
    %1381 = vmatprep.subr.mxu0 0.0
    %1382 = vmatpush2.xpose.msra.mxu0 0.0
    %1383 = vmatprep.subr.mxu0 0.0
    %1384 = vmatpush2.xpose.msra.mxu0 0.0
    %1385 = vmatprep.subr.mxu0 0.0
    %1386 = vmatpush2.xpose.msra.mxu0 0.0
    %1387 = vmatprep.subr.mxu0 0.0
    %1388 = vmatpush2.xpose.msra.mxu0 0.0
    %1389 = vmatprep.subr.mxu0 0.0
    %1390 = vmatpush2.xpose.msra.mxu0 0.0
    %1391 = vmatprep.subr.mxu0 0.0
    %1392 = vmatpush2.xpose.msra.mxu0 0.0
    %1393 = vmatprep.subr.mxu0 0.0
    %1394 = vmatpush2.xpose.msra.mxu0 0.0
    %1395 = vmatprep.subr.mxu0 0.0
    %1396 = vmatpush2.xpose.msra.mxu0 0.0
    %1397 = vmatprep.subr.mxu0 0.0
    %1398 = vmatpush2.xpose.msra.mxu0 0.0
    %1399 = vmatprep.subr.mxu0 0.0
    %1400 = vmatpush2.xpose.msra.mxu0 0.0
    %1401 = vmatprep.subr.mxu0 0.0
    %1402 = vmatpush2.xpose.msra.mxu0 0.0
    %1403 = vmatprep.mubr.f32.mxu0 0.0
    %1404 = vmatmul.mubr.f32.gmra.mxu0 %v1331
    %v1405 = vpop.f32.mrf.mxu0
    %v1406 = vadd.f32 %v383, %v1405
    %v1407 = vpop.f32.mrf.mxu0
    %1408 = vmatprep.mubr.f32.mxu0 0.0
    %1409 = vmatmul.mubr.f32.gmra.mxu0 %v1333
    %v1410 = vpop.f32.mrf.mxu0
    %v1411 = vadd.f32 %v384, %v1410
    %v1412 = vpop.f32.mrf.mxu0
    %1413 = vdwg.mxu0
    %v1414 = vsel %vm565, %v1406, -inf
    %1415 = vmax.xlane.f32.xlu0 %v1414
    %v1416 = vpop.xlane.xlu0 %1415
    %v1417 = vsel %vm565, %v1411, -inf
    %1418 = vmax.xlane.f32.xlu0 %v1417
    %v1419 = vpop.xlane.xlu0 %1418
    %v1420 = vsub.f32 %v1406, %v1416
    %v1421 = vsub.f32 %v1411, %v1419
    %v1422 = vmul.f32 %v1420, 1.442695
    %v1423 = vpow.pop %v1422
    %v1424 = vmul.f32 %v1421, 1.442695
    %v1425 = vpow.pop %v1424
    %v1426 = vsel %vm565, %v1423, 0.0
    %1427 = vadd.xlane.f32.xlu0 %v1426
    %v1428 = vpop.xlane.xlu0 %1427
    %v1429 = vsel %vm565, %v1425, 0.0
    %1430 = vadd.xlane.f32.xlu0 %v1429
    %v1431 = vpop.xlane.xlu0 %1430
    %v1432 = vrcp.pop %v1428
    %v1433 = vrcp.pop %v1431
    %v1434 = vmul.f32 %v1423, %v1432
    %v1435 = vmul.f32 %v1425, %v1433
    %1436 = vrot.lane.b32.xlu0 %v467, 40
    %v1437 = vpop.permute.xlu0 %1436
    %1438 = vrot.lane.b32.xlu0 %v472, 40
    %v1439 = vpop.permute.xlu0 %1438
    %v1443 = vsel %vm565, %v1434, 0
    %v1446 = vsel %vm565, %v1435, 0
    %1448 = vmatprep.subr.mxu0 0.0
    %1449 = vmatpush1.msra.mxu0 0.0
    %1450 = vmatprep.subr.mxu0 0.0
    %1451 = vmatpush1.msra.mxu0 0.0
    %1452 = vmatprep.subr.mxu0 0.0
    %1453 = vmatpush1.msra.mxu0 0.0
    %1454 = vmatprep.subr.mxu0 0.0
    %1455 = vmatpush1.msra.mxu0 0.0
    %1456 = vmatprep.subr.mxu0 0.0
    %1457 = vmatpush1.msra.mxu0 0.0
    %1458 = vmatprep.subr.mxu0 0.0
    %1459 = vmatpush1.msra.mxu0 0.0
    %1460 = vmatprep.subr.mxu0 0.0
    %1461 = vmatpush1.msra.mxu0 0.0
    %1462 = vmatprep.subr.mxu0 0.0
    %1463 = vmatpush1.msra.mxu0 0.0
    %1464 = vmatprep.subr.mxu0 0.0
    %1465 = vmatpush1.msra.mxu0 0.0
    %1466 = vmatprep.subr.mxu0 0.0
    %1467 = vmatpush1.msra.mxu0 0.0
    %1468 = vmatprep.subr.mxu0 0.0
    %1469 = vmatpush1.msra.mxu0 0.0
    %1470 = vmatprep.subr.mxu0 0.0
    %1471 = vmatpush1.msra.mxu0 0.0
    %1472 = vmatprep.subr.mxu0 0.0
    %1473 = vmatpush1.msra.mxu0 0.0
    %1474 = vmatprep.subr.mxu0 0.0
    %1475 = vmatpush1.msra.mxu0 0.0
    %1476 = vmatprep.subr.mxu0 0.0
    %1477 = vmatpush1.msra.mxu0 %v1439
    %1478 = vmatprep.subr.mxu0 0.0
    %1479 = vmatpush1.msra.mxu0 %v1437
    %1480 = vmatprep.subr.mxu0 0.0
    %1481 = vmatpush2.msra.mxu0 0.0
    %1482 = vmatprep.subr.mxu0 0.0
    %1483 = vmatpush2.msra.mxu0 0.0
    %1484 = vmatprep.subr.mxu0 0.0
    %1485 = vmatpush2.msra.mxu0 0.0
    %1486 = vmatprep.subr.mxu0 0.0
    %1487 = vmatpush2.msra.mxu0 0.0
    %1488 = vmatprep.subr.mxu0 0.0
    %1489 = vmatpush2.msra.mxu0 0.0
    %1490 = vmatprep.subr.mxu0 0.0
    %1491 = vmatpush2.msra.mxu0 0.0
    %1492 = vmatprep.subr.mxu0 0.0
    %1493 = vmatpush2.msra.mxu0 0.0
    %1494 = vmatprep.subr.mxu0 0.0
    %1495 = vmatpush2.msra.mxu0 0.0
    %1496 = vmatprep.subr.mxu0 0.0
    %1497 = vmatpush2.msra.mxu0 0.0
    %1498 = vmatprep.subr.mxu0 0.0
    %1499 = vmatpush2.msra.mxu0 0.0
    %1500 = vmatprep.subr.mxu0 0.0
    %1501 = vmatpush2.msra.mxu0 0.0
    %1502 = vmatprep.subr.mxu0 0.0
    %1503 = vmatpush2.msra.mxu0 0.0
    %1504 = vmatprep.subr.mxu0 0.0
    %1505 = vmatpush2.msra.mxu0 0.0
    %1506 = vmatprep.subr.mxu0 0.0
    %1507 = vmatpush2.msra.mxu0 0.0
    %1508 = vmatprep.subr.mxu0 0.0
    %1509 = vmatpush2.msra.mxu0 0.0
    %1510 = vmatprep.subr.mxu0 0.0
    %1511 = vmatpush2.msra.mxu0 0.0
    %1512 = vmatprep.mubr.f32.mxu0 0.0
    %1513 = vmatmul.mubr.f32.gmra.mxu0 %v1443
    %v1514 = vpop.f32.mrf.mxu0
    %v1515 = vadd.f32 0.0, %v1514
    %v1516 = vpop.f32.mrf.mxu0
    %1517 = vmatprep.mubr.f32.mxu0 0.0
    %1518 = vmatmul.mubr.f32.gmra.mxu0 %v1446
    %v1519 = vpop.f32.mrf.mxu0
    %v1520 = vadd.f32 0.0, %v1519
    %v1521 = vpop.f32.mrf.mxu0
    %1522 = vdwg.mxu0
    %v1523 = vld [vmem:[#allocation11 + $0x38] sm:$0xff]
    %v1525 = vsel %vm481, %v1515, 0
    %v1528 = vsel %vm481, %v1520, 0
    %1530 = vmatprep.subr.mxu0 0.0
    %1531 = vmatpush1.msra.mxu0 0.0
    %1532 = vmatprep.subr.mxu0 0.0
    %1533 = vmatpush1.msra.mxu0 0.0
    %1534 = vmatprep.subr.mxu0 0.0
    %1535 = vmatpush1.msra.mxu0 0.0
    %1536 = vmatprep.subr.mxu0 0.0
    %1537 = vmatpush1.msra.mxu0 0.0
    %1538 = vmatprep.subr.mxu0 0.0
    %1539 = vmatpush1.msra.mxu0 0.0
    %1540 = vmatprep.subr.mxu0 0.0
    %1541 = vmatpush1.msra.mxu0 0.0
    %1542 = vmatprep.subr.mxu0 0.0
    %1543 = vmatpush1.msra.mxu0 0.0
    %1544 = vmatprep.subr.mxu0 0.0
    %1545 = vmatpush1.msra.mxu0 0.0
    %1546 = vmatprep.subr.mxu0 0.0
    %1547 = vmatpush1.msra.mxu0 0.0
    %1548 = vmatprep.subr.mxu0 0.0
    %1549 = vmatpush1.msra.mxu0 0.0
    %1550 = vmatprep.subr.mxu0 0.0
    %1551 = vmatpush1.msra.mxu0 0.0
    %1552 = vmatprep.subr.mxu0 0.0
    %1553 = vmatpush1.msra.mxu0 0.0
    %1554 = vmatprep.subr.mxu0 0.0
    %1555 = vmatpush1.msra.mxu0 0.0
    %1556 = vmatprep.subr.mxu0 0.0
    %1557 = vmatpush1.msra.mxu0 0.0
    %1558 = vmatprep.subr.mxu0 0.0
    %1559 = vmatpush1.msra.mxu0 0.0
    %1560 = vmatprep.subr.mxu0 0.0
    %1561 = vmatpush1.msra.mxu0 %v1523
    %1562 = vmatprep.subr.mxu0 0.0
    %1563 = vmatpush2.msra.mxu0 0.0
    %1564 = vmatprep.subr.mxu0 0.0
    %1565 = vmatpush2.msra.mxu0 0.0
    %1566 = vmatprep.subr.mxu0 0.0
    %1567 = vmatpush2.msra.mxu0 0.0
    %1568 = vmatprep.subr.mxu0 0.0
    %1569 = vmatpush2.msra.mxu0 0.0
    %1570 = vmatprep.subr.mxu0 0.0
    %1571 = vmatpush2.msra.mxu0 0.0
    %1572 = vmatprep.subr.mxu0 0.0
    %1573 = vmatpush2.msra.mxu0 0.0
    %1574 = vmatprep.subr.mxu0 0.0
    %1575 = vmatpush2.msra.mxu0 0.0
    %1576 = vmatprep.subr.mxu0 0.0
    %1577 = vmatpush2.msra.mxu0 0.0
    %1578 = vmatprep.subr.mxu0 0.0
    %1579 = vmatpush2.msra.mxu0 0.0
    %1580 = vmatprep.subr.mxu0 0.0
    %1581 = vmatpush2.msra.mxu0 0.0
    %1582 = vmatprep.subr.mxu0 0.0
    %1583 = vmatpush2.msra.mxu0 0.0
    %1584 = vmatprep.subr.mxu0 0.0
    %1585 = vmatpush2.msra.mxu0 0.0
    %1586 = vmatprep.subr.mxu0 0.0
    %1587 = vmatpush2.msra.mxu0 0.0
    %1588 = vmatprep.subr.mxu0 0.0
    %1589 = vmatpush2.msra.mxu0 0.0
    %1590 = vmatprep.subr.mxu0 0.0
    %1591 = vmatpush2.msra.mxu0 0.0
    %1592 = vmatprep.subr.mxu0 0.0
    %1593 = vmatpush2.msra.mxu0 0.0
    %1594 = vmatprep.mubr.f32.mxu0 0.0
    %1595 = vmatmul.mubr.f32.gmra.mxu0 %v1525
    %v1596 = vpop.f32.mrf.mxu0
    %v1597 = vadd.f32 0.0, %v1596
    %v1598 = vpop.f32.mrf.mxu0
    %1599 = vmatprep.mubr.f32.mxu0 0.0
    %1600 = vmatmul.mubr.f32.gmra.mxu0 %v1528
    %v1601 = vpop.f32.mrf.mxu0
    %v1602 = vadd.f32 0.0, %v1601
    %v1603 = vpop.f32.mrf.mxu0
    %1604 = vdwg.mxu0
    %v1605 = vadd.f32 %v1321, %v1597
    %v1606 = vadd.f32 %v1322, %v1602
    %v1607 = vld [vmem:[%s6 + $0x3] sm:$0x1]
    %v1608 = vlaneseq
    %v1609 = vshrl.u32 %v1608, 7
    %v1610 = vsub.s32 0, %v1609
    %v1611 = vrot.slane %v1607, %v1610
    %v1612 = vadd.f32 %v1605, %v1611
    %v1613 = vadd.f32 %v1606, %v1611
    %v1614 = vadd.f32 %v1612, %v355
    %v1615 = vadd.f32 %v1613, %v356
    %v1616 = vld [vmem:[%s6 + $0x4] sm:$0x1]
    %v1617 = vld [vmem:[%s6 + $0x5] sm:$0x1]
    %v1618 = vsel %vm317, %v1614, 0.0
    %1619 = vadd.xlane.f32.xlu0 %v1618
    %v1620 = vpop.xlane.xlu0 %1619
    %v1621 = vsel %vm317, %v1615, 0.0
    %1622 = vadd.xlane.f32.xlu0 %v1621
    %v1623 = vpop.xlane.xlu0 %1622
    %v1624 = vmul.f32 %v1620, %v324
    %v1625 = vmul.f32 %v1623, %v324
    %v1626 = vsub.f32 %v1614, %v1624
    %v1627 = vsub.f32 %v1615, %v1625
    %v1628 = vmul.f32 %v1626, %v1626
    %v1629 = vmul.f32 %v1627, %v1627
    %v1630 = vsel %vm317, %v1628, 0.0
    %1631 = vadd.xlane.f32.xlu0 %v1630
    %v1632 = vpop.xlane.xlu0 %1631
    %v1633 = vsel %vm317, %v1629, 0.0
    %1634 = vadd.xlane.f32.xlu0 %v1633
    %v1635 = vpop.xlane.xlu0 %1634
    %v1636 = vmul.f32 %v1632, %v324
    %v1637 = vmul.f32 %v1635, %v324
    %v1638 = vadd.f32 %v1636, 1e-12
    %v1639 = vadd.f32 %v1637, 1e-12
    %v1640 = vrsqrt.pop %v1638
    %v1641 = vrsqrt.pop %v1639
    %v1642 = vmul.f32 %v1626, %v1640
    %v1643 = vmul.f32 %v1627, %v1641
    %v1644 = vlaneseq
    %v1645 = vshrl.u32 %v1644, 7
    %v1646 = vsub.s32 0, %v1645
    %v1647 = vrot.slane %v1616, %v1646
    %v1648 = vmul.f32 %v1642, %v1647
    %v1649 = vmul.f32 %v1643, %v1647
    %v1650 = vlaneseq
    %v1651 = vshrl.u32 %v1650, 7
    %v1652 = vsub.s32 0, %v1651
    %v1653 = vrot.slane %v1617, %v1652
    %v1654 = vadd.f32 %v1648, %v1653
    %v1655 = vadd.f32 %v1649, %v1653
    %v1656 = vld [vmem:[#allocation11 + $0x40] sm:$0xff]
    %v1657 = vld [vmem:[#allocation11 + $0x48] sm:$0xff]
    %v1658 = vld [vmem:[#allocation11 + $0x50] sm:$0xff]
    %v1659 = vld [vmem:[#allocation11 + $0x58] sm:$0xff]
    %v1660 = vld [vmem:[%s6 + $0x6] sm:$0x1]
    %v1661 = vlaneseq
    %v1662 = vshrl.u32 %v1661, 7
    %v1663 = vsub.s32 0, %v1662
    %v1664 = vrot.slane %v1660, %v1663
    %v1666 = vsel %vm317, %v1654, 0
    %v1669 = vsel %vm317, %v1655, 0
    %1671 = vmatprep.subr.mxu0 0.0
    %1672 = vmatpush1.msra.mxu0 0.0
    %1673 = vmatprep.subr.mxu0 0.0
    %1674 = vmatpush1.msra.mxu0 0.0
    %1675 = vmatprep.subr.mxu0 0.0
    %1676 = vmatpush1.msra.mxu0 0.0
    %1677 = vmatprep.subr.mxu0 0.0
    %1678 = vmatpush1.msra.mxu0 0.0
    %1679 = vmatprep.subr.mxu0 0.0
    %1680 = vmatpush1.msra.mxu0 0.0
    %1681 = vmatprep.subr.mxu0 0.0
    %1682 = vmatpush1.msra.mxu0 0.0
    %1683 = vmatprep.subr.mxu0 0.0
    %1684 = vmatpush1.msra.mxu0 0.0
    %1685 = vmatprep.subr.mxu0 0.0
    %1686 = vmatpush1.msra.mxu0 0.0
    %1687 = vmatprep.subr.mxu0 0.0
    %1688 = vmatpush1.msra.mxu0 0.0
    %1689 = vmatprep.subr.mxu0 0.0
    %1690 = vmatpush1.msra.mxu0 0.0
    %1691 = vmatprep.subr.mxu0 0.0
    %1692 = vmatpush1.msra.mxu0 0.0
    %1693 = vmatprep.subr.mxu0 0.0
    %1694 = vmatpush1.msra.mxu0 0.0
    %1695 = vmatprep.subr.mxu0 0.0
    %1696 = vmatpush1.msra.mxu0 %v1659
    %1697 = vmatprep.subr.mxu0 0.0
    %1698 = vmatpush1.msra.mxu0 %v1658
    %1699 = vmatprep.subr.mxu0 0.0
    %1700 = vmatpush1.msra.mxu0 %v1657
    %1701 = vmatprep.subr.mxu0 0.0
    %1702 = vmatpush1.msra.mxu0 %v1656
    %1703 = vmatprep.subr.mxu0 0.0
    %1704 = vmatpush2.msra.mxu0 0.0
    %1705 = vmatprep.subr.mxu0 0.0
    %1706 = vmatpush2.msra.mxu0 0.0
    %1707 = vmatprep.subr.mxu0 0.0
    %1708 = vmatpush2.msra.mxu0 0.0
    %1709 = vmatprep.subr.mxu0 0.0
    %1710 = vmatpush2.msra.mxu0 0.0
    %1711 = vmatprep.subr.mxu0 0.0
    %1712 = vmatpush2.msra.mxu0 0.0
    %1713 = vmatprep.subr.mxu0 0.0
    %1714 = vmatpush2.msra.mxu0 0.0
    %1715 = vmatprep.subr.mxu0 0.0
    %1716 = vmatpush2.msra.mxu0 0.0
    %1717 = vmatprep.subr.mxu0 0.0
    %1718 = vmatpush2.msra.mxu0 0.0
    %1719 = vmatprep.subr.mxu0 0.0
    %1720 = vmatpush2.msra.mxu0 0.0
    %1721 = vmatprep.subr.mxu0 0.0
    %1722 = vmatpush2.msra.mxu0 0.0
    %1723 = vmatprep.subr.mxu0 0.0
    %1724 = vmatpush2.msra.mxu0 0.0
    %1725 = vmatprep.subr.mxu0 0.0
    %1726 = vmatpush2.msra.mxu0 0.0
    %1727 = vmatprep.subr.mxu0 0.0
    %1728 = vmatpush2.msra.mxu0 0.0
    %1729 = vmatprep.subr.mxu0 0.0
    %1730 = vmatpush2.msra.mxu0 0.0
    %1731 = vmatprep.subr.mxu0 0.0
    %1732 = vmatpush2.msra.mxu0 0.0
    %1733 = vmatprep.subr.mxu0 0.0
    %1734 = vmatpush2.msra.mxu0 0.0
    %1735 = vmatprep.mubr.f32.mxu0 0.0
    %1736 = vmatmul.mubr.f32.gmra.mxu0 %v1666
    %v1737 = vpop.f32.mrf.mxu0
    %v1738 = vadd.f32 %v1664, %v1737
    %v1739 = vpop.f32.mrf.mxu0
    %1740 = vmatprep.mubr.f32.mxu0 0.0
    %1741 = vmatmul.mubr.f32.gmra.mxu0 %v1669
    %v1742 = vpop.f32.mrf.mxu0
    %v1743 = vadd.f32 %v1664, %v1742
    %v1744 = vpop.f32.mrf.mxu0
    %1745 = vdwg.mxu0
    %v1746 = vmul.f32 %v1738, %v1738
    %v1747 = vmul.f32 %v1743, %v1743
    %v1748 = vmul.f32 %v1738, %v1746
    %v1749 = vmul.f32 %v1743, %v1747
    %v1750 = vmul.f32 %v1748, 0.044715
    %v1751 = vmul.f32 %v1749, 0.044715
    %v1752 = vadd.f32 %v1738, %v1750
    %v1753 = vadd.f32 %v1743, %v1751
    %v1754 = vmul.f32 %v1752, 0.7978846
    %v1755 = vmul.f32 %v1753, 0.7978846
    %v1756 = vtanh.pop %v1754
    %v1757 = vtanh.pop %v1755
    %v1758 = vadd.f32 %v1756, 1.0
    %v1759 = vadd.f32 %v1757, 1.0
    %v1760 = vmul.f32 %v1758, 0.5
    %v1761 = vmul.f32 %v1759, 0.5
    %v1762 = vmul.f32 %v1738, %v1760
    %v1763 = vmul.f32 %v1743, %v1761
    %v1764 = vld [vmem:[#allocation11 + $0x60] sm:$0xff]
    %v1765 = vld [vmem:[#allocation11 + $0x68] sm:$0xff]
    %v1766 = vld [vmem:[#allocation11 + $0x70] sm:$0xff]
    %v1767 = vld [vmem:[#allocation11 + $0x78] sm:$0xff]
    %v1768 = vld [vmem:[#allocation11 + $0x80] sm:$0xff]
    %v1769 = vld [vmem:[#allocation11 + $0x88] sm:$0xff]
    %v1770 = vld [vmem:[#allocation11 + $0x90] sm:$0xff]
    %v1771 = vld [vmem:[#allocation11 + $0x98] sm:$0xff]
    %v1772 = vld [vmem:[%s6 + $0x7] sm:$0x1]
    %v1773 = vlaneseq
    %v1774 = vshrl.u32 %v1773, 7
    %v1775 = vsub.s32 0, %v1774
    %v1776 = vrot.slane %v1772, %v1775
    %vm1777 = vcmask 523264
    %v1779 = vsel %vm1777, %v1762, 0
    %v1782 = vsel %vm1777, %v1763, 0
    %1784 = vmatprep.subr.mxu0 0.0
    %1785 = vmatpush1.msra.mxu0 0.0
    %1786 = vmatprep.subr.mxu0 0.0
    %1787 = vmatpush1.msra.mxu0 0.0
    %1788 = vmatprep.subr.mxu0 0.0
    %1789 = vmatpush1.msra.mxu0 0.0
    %1790 = vmatprep.subr.mxu0 0.0
    %1791 = vmatpush1.msra.mxu0 0.0
    %1792 = vmatprep.subr.mxu0 0.0
    %1793 = vmatpush1.msra.mxu0 0.0
    %1794 = vmatprep.subr.mxu0 0.0
    %1795 = vmatpush1.msra.mxu0 0.0
    %1796 = vmatprep.subr.mxu0 0.0
    %1797 = vmatpush1.msra.mxu0 0.0
    %1798 = vmatprep.subr.mxu0 0.0
    %1799 = vmatpush1.msra.mxu0 0.0
    %1800 = vmatprep.subr.mxu0 0.0
    %1801 = vmatpush1.msra.mxu0 %v1771
    %1802 = vmatprep.subr.mxu0 0.0
    %1803 = vmatpush1.msra.mxu0 %v1770
    %1804 = vmatprep.subr.mxu0 0.0
    %1805 = vmatpush1.msra.mxu0 %v1769
    %1806 = vmatprep.subr.mxu0 0.0
    %1807 = vmatpush1.msra.mxu0 %v1768
    %1808 = vmatprep.subr.mxu0 0.0
    %1809 = vmatpush1.msra.mxu0 %v1767
    %1810 = vmatprep.subr.mxu0 0.0
    %1811 = vmatpush1.msra.mxu0 %v1766
    %1812 = vmatprep.subr.mxu0 0.0
    %1813 = vmatpush1.msra.mxu0 %v1765
    %1814 = vmatprep.subr.mxu0 0.0
    %1815 = vmatpush1.msra.mxu0 %v1764
    %1816 = vmatprep.subr.mxu0 0.0
    %1817 = vmatpush2.msra.mxu0 0.0
    %1818 = vmatprep.subr.mxu0 0.0
    %1819 = vmatpush2.msra.mxu0 0.0
    %1820 = vmatprep.subr.mxu0 0.0
    %1821 = vmatpush2.msra.mxu0 0.0
    %1822 = vmatprep.subr.mxu0 0.0
    %1823 = vmatpush2.msra.mxu0 0.0
    %1824 = vmatprep.subr.mxu0 0.0
    %1825 = vmatpush2.msra.mxu0 0.0
    %1826 = vmatprep.subr.mxu0 0.0
    %1827 = vmatpush2.msra.mxu0 0.0
    %1828 = vmatprep.subr.mxu0 0.0
    %1829 = vmatpush2.msra.mxu0 0.0
    %1830 = vmatprep.subr.mxu0 0.0
    %1831 = vmatpush2.msra.mxu0 0.0
    %1832 = vmatprep.subr.mxu0 0.0
    %1833 = vmatpush2.msra.mxu0 0.0
    %1834 = vmatprep.subr.mxu0 0.0
    %1835 = vmatpush2.msra.mxu0 0.0
    %1836 = vmatprep.subr.mxu0 0.0
    %1837 = vmatpush2.msra.mxu0 0.0
    %1838 = vmatprep.subr.mxu0 0.0
    %1839 = vmatpush2.msra.mxu0 0.0
    %1840 = vmatprep.subr.mxu0 0.0
    %1841 = vmatpush2.msra.mxu0 0.0
    %1842 = vmatprep.subr.mxu0 0.0
    %1843 = vmatpush2.msra.mxu0 0.0
    %1844 = vmatprep.subr.mxu0 0.0
    %1845 = vmatpush2.msra.mxu0 0.0
    %1846 = vmatprep.subr.mxu0 0.0
    %1847 = vmatpush2.msra.mxu0 0.0
    %1848 = vmatprep.mubr.f32.mxu0 0.0
    %1849 = vmatmul.mubr.f32.gmra.mxu0 %v1779
    %v1850 = vpop.f32.mrf.mxu0
    %v1851 = vadd.f32 %v1776, %v1850
    %v1852 = vpop.f32.mrf.mxu0
    %1853 = vmatprep.mubr.f32.mxu0 0.0
    %1854 = vmatmul.mubr.f32.gmra.mxu0 %v1782
    %v1855 = vpop.f32.mrf.mxu0
    %v1856 = vadd.f32 %v1776, %v1855
    %v1857 = vpop.f32.mrf.mxu0
    %1858 = vdwg.mxu0
    %v1859 = vadd.f32 %v1851, %v1654
    %v1860 = vadd.f32 %v1856, %v1655
    %v1861 = vld [vmem:[%s6 + $0x8] sm:$0x1]
    %v1862 = vld [vmem:[%s6 + $0x9] sm:$0x1]
    %v1863 = vsel %vm317, %v1859, 0.0
    %1864 = vadd.xlane.f32.xlu0 %v1863
    %v1865 = vpop.xlane.xlu0 %1864
    %v1866 = vsel %vm317, %v1860, 0.0
    %1867 = vadd.xlane.f32.xlu0 %v1866
    %v1868 = vpop.xlane.xlu0 %1867
    %v1869 = vmul.f32 %v1865, %v324
    %v1870 = vmul.f32 %v1868, %v324
    %v1871 = vsub.f32 %v1859, %v1869
    %v1872 = vsub.f32 %v1860, %v1870
    %v1873 = vmul.f32 %v1871, %v1871
    %v1874 = vmul.f32 %v1872, %v1872
    %v1875 = vsel %vm317, %v1873, 0.0
    %1876 = vadd.xlane.f32.xlu0 %v1875
    %v1877 = vpop.xlane.xlu0 %1876
    %v1878 = vsel %vm317, %v1874, 0.0
    %1879 = vadd.xlane.f32.xlu0 %v1878
    %v1880 = vpop.xlane.xlu0 %1879
    %v1881 = vmul.f32 %v1877, %v324
    %v1882 = vmul.f32 %v1880, %v324
    %v1883 = vadd.f32 %v1881, 1e-12
    %v1884 = vadd.f32 %v1882, 1e-12
    %v1885 = vrsqrt.pop %v1883
    %v1886 = vrsqrt.pop %v1884
    %v1887 = vmul.f32 %v1871, %v1885
    %v1888 = vmul.f32 %v1872, %v1886
    %v1889 = vlaneseq
    %v1890 = vshrl.u32 %v1889, 7
    %v1891 = vsub.s32 0, %v1890
    %v1892 = vrot.slane %v1861, %v1891
    %v1893 = vmul.f32 %v1887, %v1892
    %v1894 = vmul.f32 %v1888, %v1892
    %v1895 = vlaneseq
    %v1896 = vshrl.u32 %v1895, 7
    %v1897 = vsub.s32 0, %v1896
    %v1898 = vrot.slane %v1862, %v1897
    %v1899 = vadd.f32 %v1893, %v1898
    %v1900 = vadd.f32 %v1894, %v1898
    %v1901 = vld [vmem:[#allocation11 + $0xa0] sm:$0xff]
    %v1902 = vld [vmem:[#allocation11 + $0xa8] sm:$0xff]
    %v1903 = vld [vmem:[#allocation11 + $0xb0] sm:$0xff]
    %v1904 = vld [vmem:[#allocation11 + $0xb8] sm:$0xff]
    %v1905 = vld [vmem:[%s6 + $0xa] sm:$0x1]
    %v1906 = vlaneseq
    %v1907 = vshrl.u32 %v1906, 7
    %v1908 = vsub.s32 0, %v1907
    %v1909 = vrot.slane %v1905, %v1908
    %v1911 = vsel %vm317, %v1899, 0
    %v1914 = vsel %vm317, %v1900, 0
    %1916 = vmatprep.subr.mxu0 0.0
    %1917 = vmatpush1.msra.mxu0 0.0
    %1918 = vmatprep.subr.mxu0 0.0
    %1919 = vmatpush1.msra.mxu0 0.0
    %1920 = vmatprep.subr.mxu0 0.0
    %1921 = vmatpush1.msra.mxu0 0.0
    %1922 = vmatprep.subr.mxu0 0.0
    %1923 = vmatpush1.msra.mxu0 0.0
    %1924 = vmatprep.subr.mxu0 0.0
    %1925 = vmatpush1.msra.mxu0 0.0
    %1926 = vmatprep.subr.mxu0 0.0
    %1927 = vmatpush1.msra.mxu0 0.0
    %1928 = vmatprep.subr.mxu0 0.0
    %1929 = vmatpush1.msra.mxu0 0.0
    %1930 = vmatprep.subr.mxu0 0.0
    %1931 = vmatpush1.msra.mxu0 0.0
    %1932 = vmatprep.subr.mxu0 0.0
    %1933 = vmatpush1.msra.mxu0 0.0
    %1934 = vmatprep.subr.mxu0 0.0
    %1935 = vmatpush1.msra.mxu0 0.0
    %1936 = vmatprep.subr.mxu0 0.0
    %1937 = vmatpush1.msra.mxu0 0.0
    %1938 = vmatprep.subr.mxu0 0.0
    %1939 = vmatpush1.msra.mxu0 0.0
    %1940 = vmatprep.subr.mxu0 0.0
    %1941 = vmatpush1.msra.mxu0 %v1904
    %1942 = vmatprep.subr.mxu0 0.0
    %1943 = vmatpush1.msra.mxu0 %v1903
    %1944 = vmatprep.subr.mxu0 0.0
    %1945 = vmatpush1.msra.mxu0 %v1902
    %1946 = vmatprep.subr.mxu0 0.0
    %1947 = vmatpush1.msra.mxu0 %v1901
    %1948 = vmatprep.subr.mxu0 0.0
    %1949 = vmatpush2.msra.mxu0 0.0
    %1950 = vmatprep.subr.mxu0 0.0
    %1951 = vmatpush2.msra.mxu0 0.0
    %1952 = vmatprep.subr.mxu0 0.0
    %1953 = vmatpush2.msra.mxu0 0.0
    %1954 = vmatprep.subr.mxu0 0.0
    %1955 = vmatpush2.msra.mxu0 0.0
    %1956 = vmatprep.subr.mxu0 0.0
    %1957 = vmatpush2.msra.mxu0 0.0
    %1958 = vmatprep.subr.mxu0 0.0
    %1959 = vmatpush2.msra.mxu0 0.0
    %1960 = vmatprep.subr.mxu0 0.0
    %1961 = vmatpush2.msra.mxu0 0.0
    %1962 = vmatprep.subr.mxu0 0.0
    %1963 = vmatpush2.msra.mxu0 0.0
    %1964 = vmatprep.subr.mxu0 0.0
    %1965 = vmatpush2.msra.mxu0 0.0
    %1966 = vmatprep.subr.mxu0 0.0
    %1967 = vmatpush2.msra.mxu0 0.0
    %1968 = vmatprep.subr.mxu0 0.0
    %1969 = vmatpush2.msra.mxu0 0.0
    %1970 = vmatprep.subr.mxu0 0.0
    %1971 = vmatpush2.msra.mxu0 0.0
    %1972 = vmatprep.subr.mxu0 0.0
    %1973 = vmatpush2.msra.mxu0 0.0
    %1974 = vmatprep.subr.mxu0 0.0
    %1975 = vmatpush2.msra.mxu0 0.0
    %1976 = vmatprep.subr.mxu0 0.0
    %1977 = vmatpush2.msra.mxu0 0.0
    %1978 = vmatprep.subr.mxu0 0.0
    %1979 = vmatpush2.msra.mxu0 0.0
    %1980 = vmatprep.mubr.f32.mxu0 0.0
    %1981 = vmatmul.mubr.f32.gmra.mxu0 %v1911
    %v1982 = vpop.f32.mrf.mxu0
    %v1983 = vadd.f32 %v1909, %v1982
    %v1984 = vpop.f32.mrf.mxu0
    %1985 = vmatprep.mubr.f32.mxu0 0.0
    %1986 = vmatmul.mubr.f32.gmra.mxu0 %v1914
    %v1987 = vpop.f32.mrf.mxu0
    %v1988 = vadd.f32 %v1909, %v1987
    %v1989 = vpop.f32.mrf.mxu0
    %1990 = vdwg.mxu0
    %1993 = vrot.lane.b32.xlu0 %v1983, 96
    %v1994 = vpop.permute.xlu0 %1993
    %1995 = vrot.lane.b32.xlu0 %v1988, 96
    %v1996 = vpop.permute.xlu0 %1995
    %v1997 = vsel %vm481, %v1983, 0
    %v1999 = vsel %vm481, %v1988, 0
    %v2001 = vsel %vm481, %v1994, 0
    %v2003 = vsel %vm481, %v1996, 0
    %2005 = vmatprep.subr.mxu0 0.0
    %2006 = vmatpush1.xpose.msra.mxu0 0.0
    %2007 = vmatprep.subr.mxu0 0.0
    %2008 = vmatpush1.xpose.msra.mxu0 0.0
    %2009 = vmatprep.subr.mxu0 0.0
    %2010 = vmatpush1.xpose.msra.mxu0 0.0
    %2011 = vmatprep.subr.mxu0 0.0
    %2012 = vmatpush1.xpose.msra.mxu0 0.0
    %2013 = vmatprep.subr.mxu0 0.0
    %2014 = vmatpush1.xpose.msra.mxu0 0.0
    %2015 = vmatprep.subr.mxu0 0.0
    %2016 = vmatpush1.xpose.msra.mxu0 0.0
    %2017 = vmatprep.subr.mxu0 0.0
    %2018 = vmatpush1.xpose.msra.mxu0 0.0
    %2019 = vmatprep.subr.mxu0 0.0
    %2020 = vmatpush1.xpose.msra.mxu0 0.0
    %2021 = vmatprep.subr.mxu0 0.0
    %2022 = vmatpush1.xpose.msra.mxu0 0.0
    %2023 = vmatprep.subr.mxu0 0.0
    %2024 = vmatpush1.xpose.msra.mxu0 0.0
    %2025 = vmatprep.subr.mxu0 0.0
    %2026 = vmatpush1.xpose.msra.mxu0 0.0
    %2027 = vmatprep.subr.mxu0 0.0
    %2028 = vmatpush1.xpose.msra.mxu0 0.0
    %2029 = vmatprep.subr.mxu0 0.0
    %2030 = vmatpush1.xpose.msra.mxu0 0.0
    %2031 = vmatprep.subr.mxu0 0.0
    %2032 = vmatpush1.xpose.msra.mxu0 0.0
    %2033 = vmatprep.subr.mxu0 0.0
    %2034 = vmatpush1.xpose.msra.mxu0 %v2003
    %2035 = vmatprep.subr.mxu0 0.0
    %2036 = vmatpush1.xpose.msra.mxu0 %v2001
    %2037 = vmatprep.subr.mxu0 0.0
    %2038 = vmatpush2.xpose.msra.mxu0 0.0
    %2039 = vmatprep.subr.mxu0 0.0
    %2040 = vmatpush2.xpose.msra.mxu0 0.0
    %2041 = vmatprep.subr.mxu0 0.0
    %2042 = vmatpush2.xpose.msra.mxu0 0.0
    %2043 = vmatprep.subr.mxu0 0.0
    %2044 = vmatpush2.xpose.msra.mxu0 0.0
    %2045 = vmatprep.subr.mxu0 0.0
    %2046 = vmatpush2.xpose.msra.mxu0 0.0
    %2047 = vmatprep.subr.mxu0 0.0
    %2048 = vmatpush2.xpose.msra.mxu0 0.0
    %2049 = vmatprep.subr.mxu0 0.0
    %2050 = vmatpush2.xpose.msra.mxu0 0.0
    %2051 = vmatprep.subr.mxu0 0.0
    %2052 = vmatpush2.xpose.msra.mxu0 0.0
    %2053 = vmatprep.subr.mxu0 0.0
    %2054 = vmatpush2.xpose.msra.mxu0 0.0
    %2055 = vmatprep.subr.mxu0 0.0
    %2056 = vmatpush2.xpose.msra.mxu0 0.0
    %2057 = vmatprep.subr.mxu0 0.0
    %2058 = vmatpush2.xpose.msra.mxu0 0.0
    %2059 = vmatprep.subr.mxu0 0.0
    %2060 = vmatpush2.xpose.msra.mxu0 0.0
    %2061 = vmatprep.subr.mxu0 0.0
    %2062 = vmatpush2.xpose.msra.mxu0 0.0
    %2063 = vmatprep.subr.mxu0 0.0
    %2064 = vmatpush2.xpose.msra.mxu0 0.0
    %2065 = vmatprep.subr.mxu0 0.0
    %2066 = vmatpush2.xpose.msra.mxu0 0.0
    %2067 = vmatprep.subr.mxu0 0.0
    %2068 = vmatpush2.xpose.msra.mxu0 0.0
    %2069 = vmatprep.mubr.f32.mxu0 0.0
    %2070 = vmatmul.mubr.f32.gmra.mxu0 %v1997
    %v2071 = vpop.f32.mrf.mxu0
    %v2072 = vadd.f32 %v383, %v2071
    %v2073 = vpop.f32.mrf.mxu0
    %2074 = vmatprep.mubr.f32.mxu0 0.0
    %2075 = vmatmul.mubr.f32.gmra.mxu0 %v1999
    %v2076 = vpop.f32.mrf.mxu0
    %v2077 = vadd.f32 %v384, %v2076
    %v2078 = vpop.f32.mrf.mxu0
    %2079 = vdwg.mxu0
    %v2080 = vsel %vm565, %v2072, -inf
    %2081 = vmax.xlane.f32.xlu0 %v2080
    %v2082 = vpop.xlane.xlu0 %2081
    %v2083 = vsel %vm565, %v2077, -inf
    %2084 = vmax.xlane.f32.xlu0 %v2083
    %v2085 = vpop.xlane.xlu0 %2084
    %v2086 = vsub.f32 %v2072, %v2082
    %v2087 = vsub.f32 %v2077, %v2085
    %v2088 = vmul.f32 %v2086, 1.442695
    %v2089 = vpow.pop %v2088
    %v2090 = vmul.f32 %v2087, 1.442695
    %v2091 = vpow.pop %v2090
    %v2092 = vsel %vm565, %v2089, 0.0
    %2093 = vadd.xlane.f32.xlu0 %v2092
    %v2094 = vpop.xlane.xlu0 %2093
    %v2095 = vsel %vm565, %v2091, 0.0
    %2096 = vadd.xlane.f32.xlu0 %v2095
    %v2097 = vpop.xlane.xlu0 %2096
    %v2098 = vrcp.pop %v2094
    %v2099 = vrcp.pop %v2097
    %v2100 = vmul.f32 %v2089, %v2098
    %v2101 = vmul.f32 %v2091, %v2099
    %2102 = vrot.lane.b32.xlu0 %v1983, 64
    %v2103 = vpop.permute.xlu0 %2102
    %2104 = vrot.lane.b32.xlu0 %v1988, 64
    %v2105 = vpop.permute.xlu0 %2104
    %v2109 = vsel %vm565, %v2100, 0
    %v2112 = vsel %vm565, %v2101, 0
    %2114 = vmatprep.subr.mxu0 0.0
    %2115 = vmatpush1.msra.mxu0 0.0
    %2116 = vmatprep.subr.mxu0 0.0
    %2117 = vmatpush1.msra.mxu0 0.0
    %2118 = vmatprep.subr.mxu0 0.0
    %2119 = vmatpush1.msra.mxu0 0.0
    %2120 = vmatprep.subr.mxu0 0.0
    %2121 = vmatpush1.msra.mxu0 0.0
    %2122 = vmatprep.subr.mxu0 0.0
    %2123 = vmatpush1.msra.mxu0 0.0
    %2124 = vmatprep.subr.mxu0 0.0
    %2125 = vmatpush1.msra.mxu0 0.0
    %2126 = vmatprep.subr.mxu0 0.0
    %2127 = vmatpush1.msra.mxu0 0.0
    %2128 = vmatprep.subr.mxu0 0.0
    %2129 = vmatpush1.msra.mxu0 0.0
    %2130 = vmatprep.subr.mxu0 0.0
    %2131 = vmatpush1.msra.mxu0 0.0
    %2132 = vmatprep.subr.mxu0 0.0
    %2133 = vmatpush1.msra.mxu0 0.0
    %2134 = vmatprep.subr.mxu0 0.0
    %2135 = vmatpush1.msra.mxu0 0.0
    %2136 = vmatprep.subr.mxu0 0.0
    %2137 = vmatpush1.msra.mxu0 0.0
    %2138 = vmatprep.subr.mxu0 0.0
    %2139 = vmatpush1.msra.mxu0 0.0
    %2140 = vmatprep.subr.mxu0 0.0
    %2141 = vmatpush1.msra.mxu0 0.0
    %2142 = vmatprep.subr.mxu0 0.0
    %2143 = vmatpush1.msra.mxu0 %v2105
    %2144 = vmatprep.subr.mxu0 0.0
    %2145 = vmatpush1.msra.mxu0 %v2103
    %2146 = vmatprep.subr.mxu0 0.0
    %2147 = vmatpush2.msra.mxu0 0.0
    %2148 = vmatprep.subr.mxu0 0.0
    %2149 = vmatpush2.msra.mxu0 0.0
    %2150 = vmatprep.subr.mxu0 0.0
    %2151 = vmatpush2.msra.mxu0 0.0
    %2152 = vmatprep.subr.mxu0 0.0
    %2153 = vmatpush2.msra.mxu0 0.0
    %2154 = vmatprep.subr.mxu0 0.0
    %2155 = vmatpush2.msra.mxu0 0.0
    %2156 = vmatprep.subr.mxu0 0.0
    %2157 = vmatpush2.msra.mxu0 0.0
    %2158 = vmatprep.subr.mxu0 0.0
    %2159 = vmatpush2.msra.mxu0 0.0
    %2160 = vmatprep.subr.mxu0 0.0
    %2161 = vmatpush2.msra.mxu0 0.0
    %2162 = vmatprep.subr.mxu0 0.0
    %2163 = vmatpush2.msra.mxu0 0.0
    %2164 = vmatprep.subr.mxu0 0.0
    %2165 = vmatpush2.msra.mxu0 0.0
    %2166 = vmatprep.subr.mxu0 0.0
    %2167 = vmatpush2.msra.mxu0 0.0
    %2168 = vmatprep.subr.mxu0 0.0
    %2169 = vmatpush2.msra.mxu0 0.0
    %2170 = vmatprep.subr.mxu0 0.0
    %2171 = vmatpush2.msra.mxu0 0.0
    %2172 = vmatprep.subr.mxu0 0.0
    %2173 = vmatpush2.msra.mxu0 0.0
    %2174 = vmatprep.subr.mxu0 0.0
    %2175 = vmatpush2.msra.mxu0 0.0
    %2176 = vmatprep.subr.mxu0 0.0
    %2177 = vmatpush2.msra.mxu0 0.0
    %2178 = vmatprep.mubr.f32.mxu0 0.0
    %2179 = vmatmul.mubr.f32.gmra.mxu0 %v2109
    %v2180 = vpop.f32.mrf.mxu0
    %v2181 = vadd.f32 0.0, %v2180
    %v2182 = vpop.f32.mrf.mxu0
    %2183 = vmatprep.mubr.f32.mxu0 0.0
    %2184 = vmatmul.mubr.f32.gmra.mxu0 %v2112
    %v2185 = vpop.f32.mrf.mxu0
    %v2186 = vadd.f32 0.0, %v2185
    %v2187 = vpop.f32.mrf.mxu0
    %2188 = vdwg.mxu0
    %v2189 = vld [vmem:[#allocation11 + $0xc0] sm:$0xff]
    %2190 = vrot.lane.b32.xlu0 %v1983, 120
    %v2191 = vpop.permute.xlu0 %2190
    %2192 = vrot.lane.b32.xlu0 %v1988, 120
    %v2193 = vpop.permute.xlu0 %2192
    %2194 = vrot.lane.b32.xlu0 %v1983, 88
    %v2195 = vpop.permute.xlu0 %2194
    %2196 = vrot.lane.b32.xlu0 %v1988, 88
    %v2197 = vpop.permute.xlu0 %2196
    %v2198 = vsel %vm481, %v2191, 0
    %v2200 = vsel %vm481, %v2193, 0
    %v2202 = vsel %vm481, %v2195, 0
    %v2204 = vsel %vm481, %v2197, 0
    %2206 = vmatprep.subr.mxu0 0.0
    %2207 = vmatpush1.xpose.msra.mxu0 0.0
    %2208 = vmatprep.subr.mxu0 0.0
    %2209 = vmatpush1.xpose.msra.mxu0 0.0
    %2210 = vmatprep.subr.mxu0 0.0
    %2211 = vmatpush1.xpose.msra.mxu0 0.0
    %2212 = vmatprep.subr.mxu0 0.0
    %2213 = vmatpush1.xpose.msra.mxu0 0.0
    %2214 = vmatprep.subr.mxu0 0.0
    %2215 = vmatpush1.xpose.msra.mxu0 0.0
    %2216 = vmatprep.subr.mxu0 0.0
    %2217 = vmatpush1.xpose.msra.mxu0 0.0
    %2218 = vmatprep.subr.mxu0 0.0
    %2219 = vmatpush1.xpose.msra.mxu0 0.0
    %2220 = vmatprep.subr.mxu0 0.0
    %2221 = vmatpush1.xpose.msra.mxu0 0.0
    %2222 = vmatprep.subr.mxu0 0.0
    %2223 = vmatpush1.xpose.msra.mxu0 0.0
    %2224 = vmatprep.subr.mxu0 0.0
    %2225 = vmatpush1.xpose.msra.mxu0 0.0
    %2226 = vmatprep.subr.mxu0 0.0
    %2227 = vmatpush1.xpose.msra.mxu0 0.0
    %2228 = vmatprep.subr.mxu0 0.0
    %2229 = vmatpush1.xpose.msra.mxu0 0.0
    %2230 = vmatprep.subr.mxu0 0.0
    %2231 = vmatpush1.xpose.msra.mxu0 0.0
    %2232 = vmatprep.subr.mxu0 0.0
    %2233 = vmatpush1.xpose.msra.mxu0 0.0
    %2234 = vmatprep.subr.mxu0 0.0
    %2235 = vmatpush1.xpose.msra.mxu0 %v2204
    %2236 = vmatprep.subr.mxu0 0.0
    %2237 = vmatpush1.xpose.msra.mxu0 %v2202
    %2238 = vmatprep.subr.mxu0 0.0
    %2239 = vmatpush2.xpose.msra.mxu0 0.0
    %2240 = vmatprep.subr.mxu0 0.0
    %2241 = vmatpush2.xpose.msra.mxu0 0.0
    %2242 = vmatprep.subr.mxu0 0.0
    %2243 = vmatpush2.xpose.msra.mxu0 0.0
    %2244 = vmatprep.subr.mxu0 0.0
    %2245 = vmatpush2.xpose.msra.mxu0 0.0
    %2246 = vmatprep.subr.mxu0 0.0
    %2247 = vmatpush2.xpose.msra.mxu0 0.0
    %2248 = vmatprep.subr.mxu0 0.0
    %2249 = vmatpush2.xpose.msra.mxu0 0.0
    %2250 = vmatprep.subr.mxu0 0.0
    %2251 = vmatpush2.xpose.msra.mxu0 0.0
    %2252 = vmatprep.subr.mxu0 0.0
    %2253 = vmatpush2.xpose.msra.mxu0 0.0
    %2254 = vmatprep.subr.mxu0 0.0
    %2255 = vmatpush2.xpose.msra.mxu0 0.0
    %2256 = vmatprep.subr.mxu0 0.0
    %2257 = vmatpush2.xpose.msra.mxu0 0.0
    %2258 = vmatprep.subr.mxu0 0.0
    %2259 = vmatpush2.xpose.msra.mxu0 0.0
    %2260 = vmatprep.subr.mxu0 0.0
    %2261 = vmatpush2.xpose.msra.mxu0 0.0
    %2262 = vmatprep.subr.mxu0 0.0
    %2263 = vmatpush2.xpose.msra.mxu0 0.0
    %2264 = vmatprep.subr.mxu0 0.0
    %2265 = vmatpush2.xpose.msra.mxu0 0.0
    %2266 = vmatprep.subr.mxu0 0.0
    %2267 = vmatpush2.xpose.msra.mxu0 0.0
    %2268 = vmatprep.subr.mxu0 0.0
    %2269 = vmatpush2.xpose.msra.mxu0 0.0
    %2270 = vmatprep.mubr.f32.mxu0 0.0
    %2271 = vmatmul.mubr.f32.gmra.mxu0 %v2198
    %v2272 = vpop.f32.mrf.mxu0
    %v2273 = vadd.f32 %v383, %v2272
    %v2274 = vpop.f32.mrf.mxu0
    %2275 = vmatprep.mubr.f32.mxu0 0.0
    %2276 = vmatmul.mubr.f32.gmra.mxu0 %v2200
    %v2277 = vpop.f32.mrf.mxu0
    %v2278 = vadd.f32 %v384, %v2277
    %v2279 = vpop.f32.mrf.mxu0
    %2280 = vdwg.mxu0
    %v2281 = vsel %vm565, %v2273, -inf
    %2282 = vmax.xlane.f32.xlu0 %v2281
    %v2283 = vpop.xlane.xlu0 %2282
    %v2284 = vsel %vm565, %v2278, -inf
    %2285 = vmax.xlane.f32.xlu0 %v2284
    %v2286 = vpop.xlane.xlu0 %2285
    %v2287 = vsub.f32 %v2273, %v2283
    %v2288 = vsub.f32 %v2278, %v2286
    %v2289 = vmul.f32 %v2287, 1.442695
    %v2290 = vpow.pop %v2289
    %v2291 = vmul.f32 %v2288, 1.442695
    %v2292 = vpow.pop %v2291
    %v2293 = vsel %vm565, %v2290, 0.0
    %2294 = vadd.xlane.f32.xlu0 %v2293
    %v2295 = vpop.xlane.xlu0 %2294
    %v2296 = vsel %vm565, %v2292, 0.0
    %2297 = vadd.xlane.f32.xlu0 %v2296
    %v2298 = vpop.xlane.xlu0 %2297
    %v2299 = vrcp.pop %v2295
    %v2300 = vrcp.pop %v2298
    %v2301 = vmul.f32 %v2290, %v2299
    %v2302 = vmul.f32 %v2292, %v2300
    %2303 = vrot.lane.b32.xlu0 %v1983, 56
    %v2304 = vpop.permute.xlu0 %2303
    %2305 = vrot.lane.b32.xlu0 %v1988, 56
    %v2306 = vpop.permute.xlu0 %2305
    %v2310 = vsel %vm565, %v2301, 0
    %v2313 = vsel %vm565, %v2302, 0
    %2315 = vmatprep.subr.mxu0 0.0
    %2316 = vmatpush1.msra.mxu0 0.0
    %2317 = vmatprep.subr.mxu0 0.0
    %2318 = vmatpush1.msra.mxu0 0.0
    %2319 = vmatprep.subr.mxu0 0.0
    %2320 = vmatpush1.msra.mxu0 0.0
    %2321 = vmatprep.subr.mxu0 0.0
    %2322 = vmatpush1.msra.mxu0 0.0
    %2323 = vmatprep.subr.mxu0 0.0
    %2324 = vmatpush1.msra.mxu0 0.0
    %2325 = vmatprep.subr.mxu0 0.0
    %2326 = vmatpush1.msra.mxu0 0.0
    %2327 = vmatprep.subr.mxu0 0.0
    %2328 = vmatpush1.msra.mxu0 0.0
    %2329 = vmatprep.subr.mxu0 0.0
    %2330 = vmatpush1.msra.mxu0 0.0
    %2331 = vmatprep.subr.mxu0 0.0
    %2332 = vmatpush1.msra.mxu0 0.0
    %2333 = vmatprep.subr.mxu0 0.0
    %2334 = vmatpush1.msra.mxu0 0.0
    %2335 = vmatprep.subr.mxu0 0.0
    %2336 = vmatpush1.msra.mxu0 0.0
    %2337 = vmatprep.subr.mxu0 0.0
    %2338 = vmatpush1.msra.mxu0 0.0
    %2339 = vmatprep.subr.mxu0 0.0
    %2340 = vmatpush1.msra.mxu0 0.0
    %2341 = vmatprep.subr.mxu0 0.0
    %2342 = vmatpush1.msra.mxu0 0.0
    %2343 = vmatprep.subr.mxu0 0.0
    %2344 = vmatpush1.msra.mxu0 %v2306
    %2345 = vmatprep.subr.mxu0 0.0
    %2346 = vmatpush1.msra.mxu0 %v2304
    %2347 = vmatprep.subr.mxu0 0.0
    %2348 = vmatpush2.msra.mxu0 0.0
    %2349 = vmatprep.subr.mxu0 0.0
    %2350 = vmatpush2.msra.mxu0 0.0
    %2351 = vmatprep.subr.mxu0 0.0
    %2352 = vmatpush2.msra.mxu0 0.0
    %2353 = vmatprep.subr.mxu0 0.0
    %2354 = vmatpush2.msra.mxu0 0.0
    %2355 = vmatprep.subr.mxu0 0.0
    %2356 = vmatpush2.msra.mxu0 0.0
    %2357 = vmatprep.subr.mxu0 0.0
    %2358 = vmatpush2.msra.mxu0 0.0
    %2359 = vmatprep.subr.mxu0 0.0
    %2360 = vmatpush2.msra.mxu0 0.0
    %2361 = vmatprep.subr.mxu0 0.0
    %2362 = vmatpush2.msra.mxu0 0.0
    %2363 = vmatprep.subr.mxu0 0.0
    %2364 = vmatpush2.msra.mxu0 0.0
    %2365 = vmatprep.subr.mxu0 0.0
    %2366 = vmatpush2.msra.mxu0 0.0
    %2367 = vmatprep.subr.mxu0 0.0
    %2368 = vmatpush2.msra.mxu0 0.0
    %2369 = vmatprep.subr.mxu0 0.0
    %2370 = vmatpush2.msra.mxu0 0.0
    %2371 = vmatprep.subr.mxu0 0.0
    %2372 = vmatpush2.msra.mxu0 0.0
    %2373 = vmatprep.subr.mxu0 0.0
    %2374 = vmatpush2.msra.mxu0 0.0
    %2375 = vmatprep.subr.mxu0 0.0
    %2376 = vmatpush2.msra.mxu0 0.0
    %2377 = vmatprep.subr.mxu0 0.0
    %2378 = vmatpush2.msra.mxu0 0.0
    %2379 = vmatprep.mubr.f32.mxu0 0.0
    %2380 = vmatmul.mubr.f32.gmra.mxu0 %v2310
    %v2381 = vpop.f32.mrf.mxu0
    %v2382 = vadd.f32 0.0, %v2381
    %v2383 = vpop.f32.mrf.mxu0
    %2384 = vmatprep.mubr.f32.mxu0 0.0
    %2385 = vmatmul.mubr.f32.gmra.mxu0 %v2313
    %v2386 = vpop.f32.mrf.mxu0
    %v2387 = vadd.f32 0.0, %v2386
    %v2388 = vpop.f32.mrf.mxu0
    %2389 = vdwg.mxu0
    %v2390 = vld [vmem:[#allocation11 + $0xc8] sm:$0xff]
    %v2392 = vsel %vm481, %v2382, 0
    %v2395 = vsel %vm481, %v2387, 0
    %2397 = vmatprep.subr.mxu0 0.0
    %2398 = vmatpush1.msra.mxu0 0.0
    %2399 = vmatprep.subr.mxu0 0.0
    %2400 = vmatpush1.msra.mxu0 0.0
    %2401 = vmatprep.subr.mxu0 0.0
    %2402 = vmatpush1.msra.mxu0 0.0
    %2403 = vmatprep.subr.mxu0 0.0
    %2404 = vmatpush1.msra.mxu0 0.0
    %2405 = vmatprep.subr.mxu0 0.0
    %2406 = vmatpush1.msra.mxu0 0.0
    %2407 = vmatprep.subr.mxu0 0.0
    %2408 = vmatpush1.msra.mxu0 0.0
    %2409 = vmatprep.subr.mxu0 0.0
    %2410 = vmatpush1.msra.mxu0 0.0
    %2411 = vmatprep.subr.mxu0 0.0
    %2412 = vmatpush1.msra.mxu0 0.0
    %2413 = vmatprep.subr.mxu0 0.0
    %2414 = vmatpush1.msra.mxu0 0.0
    %2415 = vmatprep.subr.mxu0 0.0
    %2416 = vmatpush1.msra.mxu0 0.0
    %2417 = vmatprep.subr.mxu0 0.0
    %2418 = vmatpush1.msra.mxu0 0.0
    %2419 = vmatprep.subr.mxu0 0.0
    %2420 = vmatpush1.msra.mxu0 0.0
    %2421 = vmatprep.subr.mxu0 0.0
    %2422 = vmatpush1.msra.mxu0 0.0
    %2423 = vmatprep.subr.mxu0 0.0
    %2424 = vmatpush1.msra.mxu0 0.0
    %2425 = vmatprep.subr.mxu0 0.0
    %2426 = vmatpush1.msra.mxu0 0.0
    %2427 = vmatprep.subr.mxu0 0.0
    %2428 = vmatpush1.msra.mxu0 %v2390
    %2429 = vmatprep.subr.mxu0 0.0
    %2430 = vmatpush2.msra.mxu0 0.0
    %2431 = vmatprep.subr.mxu0 0.0
    %2432 = vmatpush2.msra.mxu0 0.0
    %2433 = vmatprep.subr.mxu0 0.0
    %2434 = vmatpush2.msra.mxu0 0.0
    %2435 = vmatprep.subr.mxu0 0.0
    %2436 = vmatpush2.msra.mxu0 0.0
    %2437 = vmatprep.subr.mxu0 0.0
    %2438 = vmatpush2.msra.mxu0 0.0
    %2439 = vmatprep.subr.mxu0 0.0
    %2440 = vmatpush2.msra.mxu0 0.0
    %2441 = vmatprep.subr.mxu0 0.0
    %2442 = vmatpush2.msra.mxu0 0.0
    %2443 = vmatprep.subr.mxu0 0.0
    %2444 = vmatpush2.msra.mxu0 0.0
    %2445 = vmatprep.subr.mxu0 0.0
    %2446 = vmatpush2.msra.mxu0 0.0
    %2447 = vmatprep.subr.mxu0 0.0
    %2448 = vmatpush2.msra.mxu0 0.0
    %2449 = vmatprep.subr.mxu0 0.0
    %2450 = vmatpush2.msra.mxu0 0.0
    %2451 = vmatprep.subr.mxu0 0.0
    %2452 = vmatpush2.msra.mxu0 0.0
    %2453 = vmatprep.subr.mxu0 0.0
    %2454 = vmatpush2.msra.mxu0 0.0
    %2455 = vmatprep.subr.mxu0 0.0
    %2456 = vmatpush2.msra.mxu0 0.0
    %2457 = vmatprep.subr.mxu0 0.0
    %2458 = vmatpush2.msra.mxu0 0.0
    %2459 = vmatprep.subr.mxu0 0.0
    %2460 = vmatpush2.msra.mxu0 0.0
    %2461 = vmatprep.mubr.f32.mxu0 0.0
    %2462 = vmatmul.mubr.f32.gmra.mxu0 %v2392
    %v2463 = vpop.f32.mrf.mxu0
    %v2464 = vadd.f32 0.0, %v2463
    %v2465 = vpop.f32.mrf.mxu0
    %2466 = vmatprep.mubr.f32.mxu0 0.0
    %2467 = vmatmul.mubr.f32.gmra.mxu0 %v2395
    %v2468 = vpop.f32.mrf.mxu0
    %v2469 = vadd.f32 0.0, %v2468
    %v2470 = vpop.f32.mrf.mxu0
    %2471 = vdwg.mxu0
    %v2473 = vsel %vm481, %v2181, 0
    %v2476 = vsel %vm481, %v2186, 0
    %2478 = vmatprep.subr.mxu0 0.0
    %2479 = vmatpush1.msra.mxu0 0.0
    %2480 = vmatprep.subr.mxu0 0.0
    %2481 = vmatpush1.msra.mxu0 0.0
    %2482 = vmatprep.subr.mxu0 0.0
    %2483 = vmatpush1.msra.mxu0 0.0
    %2484 = vmatprep.subr.mxu0 0.0
    %2485 = vmatpush1.msra.mxu0 0.0
    %2486 = vmatprep.subr.mxu0 0.0
    %2487 = vmatpush1.msra.mxu0 0.0
    %2488 = vmatprep.subr.mxu0 0.0
    %2489 = vmatpush1.msra.mxu0 0.0
    %2490 = vmatprep.subr.mxu0 0.0
    %2491 = vmatpush1.msra.mxu0 0.0
    %2492 = vmatprep.subr.mxu0 0.0
    %2493 = vmatpush1.msra.mxu0 0.0
    %2494 = vmatprep.subr.mxu0 0.0
    %2495 = vmatpush1.msra.mxu0 0.0
    %2496 = vmatprep.subr.mxu0 0.0
    %2497 = vmatpush1.msra.mxu0 0.0
    %2498 = vmatprep.subr.mxu0 0.0
    %2499 = vmatpush1.msra.mxu0 0.0
    %2500 = vmatprep.subr.mxu0 0.0
    %2501 = vmatpush1.msra.mxu0 0.0
    %2502 = vmatprep.subr.mxu0 0.0
    %2503 = vmatpush1.msra.mxu0 0.0
    %2504 = vmatprep.subr.mxu0 0.0
    %2505 = vmatpush1.msra.mxu0 0.0
    %2506 = vmatprep.subr.mxu0 0.0
    %2507 = vmatpush1.msra.mxu0 0.0
    %2508 = vmatprep.subr.mxu0 0.0
    %2509 = vmatpush1.msra.mxu0 %v2189
    %2510 = vmatprep.subr.mxu0 0.0
    %2511 = vmatpush2.msra.mxu0 0.0
    %2512 = vmatprep.subr.mxu0 0.0
    %2513 = vmatpush2.msra.mxu0 0.0
    %2514 = vmatprep.subr.mxu0 0.0
    %2515 = vmatpush2.msra.mxu0 0.0
    %2516 = vmatprep.subr.mxu0 0.0
    %2517 = vmatpush2.msra.mxu0 0.0
    %2518 = vmatprep.subr.mxu0 0.0
    %2519 = vmatpush2.msra.mxu0 0.0
    %2520 = vmatprep.subr.mxu0 0.0
    %2521 = vmatpush2.msra.mxu0 0.0
    %2522 = vmatprep.subr.mxu0 0.0
    %2523 = vmatpush2.msra.mxu0 0.0
    %2524 = vmatprep.subr.mxu0 0.0
    %2525 = vmatpush2.msra.mxu0 0.0
    %2526 = vmatprep.subr.mxu0 0.0
    %2527 = vmatpush2.msra.mxu0 0.0
    %2528 = vmatprep.subr.mxu0 0.0
    %2529 = vmatpush2.msra.mxu0 0.0
    %2530 = vmatprep.subr.mxu0 0.0
    %2531 = vmatpush2.msra.mxu0 0.0
    %2532 = vmatprep.subr.mxu0 0.0
    %2533 = vmatpush2.msra.mxu0 0.0
    %2534 = vmatprep.subr.mxu0 0.0
    %2535 = vmatpush2.msra.mxu0 0.0
    %2536 = vmatprep.subr.mxu0 0.0
    %2537 = vmatpush2.msra.mxu0 0.0
    %2538 = vmatprep.subr.mxu0 0.0
    %2539 = vmatpush2.msra.mxu0 0.0
    %2540 = vmatprep.subr.mxu0 0.0
    %2541 = vmatpush2.msra.mxu0 0.0
    %2542 = vmatprep.mubr.f32.mxu0 0.0
    %2543 = vmatmul.mubr.f32.gmra.mxu0 %v2473
    %v2544 = vpop.f32.mrf.mxu0
    %v2545 = vadd.f32 %v2464, %v2544
    %v2546 = vpop.f32.mrf.mxu0
    %2547 = vmatprep.mubr.f32.mxu0 0.0
    %2548 = vmatmul.mubr.f32.gmra.mxu0 %v2476
    %v2549 = vpop.f32.mrf.mxu0
    %v2550 = vadd.f32 %v2469, %v2549
    %v2551 = vpop.f32.mrf.mxu0
    %2552 = vdwg.mxu0
    %2553 = vrot.lane.b32.xlu0 %v1983, 112
    %v2554 = vpop.permute.xlu0 %2553
    %2555 = vrot.lane.b32.xlu0 %v1988, 112
    %v2556 = vpop.permute.xlu0 %2555
    %2557 = vrot.lane.b32.xlu0 %v1983, 80
    %v2558 = vpop.permute.xlu0 %2557
    %2559 = vrot.lane.b32.xlu0 %v1988, 80
    %v2560 = vpop.permute.xlu0 %2559
    %v2561 = vsel %vm481, %v2554, 0
    %v2563 = vsel %vm481, %v2556, 0
    %v2565 = vsel %vm481, %v2558, 0
    %v2567 = vsel %vm481, %v2560, 0
    %2569 = vmatprep.subr.mxu0 0.0
    %2570 = vmatpush1.xpose.msra.mxu0 0.0
    %2571 = vmatprep.subr.mxu0 0.0
    %2572 = vmatpush1.xpose.msra.mxu0 0.0
    %2573 = vmatprep.subr.mxu0 0.0
    %2574 = vmatpush1.xpose.msra.mxu0 0.0
    %2575 = vmatprep.subr.mxu0 0.0
    %2576 = vmatpush1.xpose.msra.mxu0 0.0
    %2577 = vmatprep.subr.mxu0 0.0
    %2578 = vmatpush1.xpose.msra.mxu0 0.0
    %2579 = vmatprep.subr.mxu0 0.0
    %2580 = vmatpush1.xpose.msra.mxu0 0.0
    %2581 = vmatprep.subr.mxu0 0.0
    %2582 = vmatpush1.xpose.msra.mxu0 0.0
    %2583 = vmatprep.subr.mxu0 0.0
    %2584 = vmatpush1.xpose.msra.mxu0 0.0
    %2585 = vmatprep.subr.mxu0 0.0
    %2586 = vmatpush1.xpose.msra.mxu0 0.0
    %2587 = vmatprep.subr.mxu0 0.0
    %2588 = vmatpush1.xpose.msra.mxu0 0.0
    %2589 = vmatprep.subr.mxu0 0.0
    %2590 = vmatpush1.xpose.msra.mxu0 0.0
    %2591 = vmatprep.subr.mxu0 0.0
    %2592 = vmatpush1.xpose.msra.mxu0 0.0
    %2593 = vmatprep.subr.mxu0 0.0
    %2594 = vmatpush1.xpose.msra.mxu0 0.0
    %2595 = vmatprep.subr.mxu0 0.0
    %2596 = vmatpush1.xpose.msra.mxu0 0.0
    %2597 = vmatprep.subr.mxu0 0.0
    %2598 = vmatpush1.xpose.msra.mxu0 %v2567
    %2599 = vmatprep.subr.mxu0 0.0
    %2600 = vmatpush1.xpose.msra.mxu0 %v2565
    %2601 = vmatprep.subr.mxu0 0.0
    %2602 = vmatpush2.xpose.msra.mxu0 0.0
    %2603 = vmatprep.subr.mxu0 0.0
    %2604 = vmatpush2.xpose.msra.mxu0 0.0
    %2605 = vmatprep.subr.mxu0 0.0
    %2606 = vmatpush2.xpose.msra.mxu0 0.0
    %2607 = vmatprep.subr.mxu0 0.0
    %2608 = vmatpush2.xpose.msra.mxu0 0.0
    %2609 = vmatprep.subr.mxu0 0.0
    %2610 = vmatpush2.xpose.msra.mxu0 0.0
    %2611 = vmatprep.subr.mxu0 0.0
    %2612 = vmatpush2.xpose.msra.mxu0 0.0
    %2613 = vmatprep.subr.mxu0 0.0
    %2614 = vmatpush2.xpose.msra.mxu0 0.0
    %2615 = vmatprep.subr.mxu0 0.0
    %2616 = vmatpush2.xpose.msra.mxu0 0.0
    %2617 = vmatprep.subr.mxu0 0.0
    %2618 = vmatpush2.xpose.msra.mxu0 0.0
    %2619 = vmatprep.subr.mxu0 0.0
    %2620 = vmatpush2.xpose.msra.mxu0 0.0
    %2621 = vmatprep.subr.mxu0 0.0
    %2622 = vmatpush2.xpose.msra.mxu0 0.0
    %2623 = vmatprep.subr.mxu0 0.0
    %2624 = vmatpush2.xpose.msra.mxu0 0.0
    %2625 = vmatprep.subr.mxu0 0.0
    %2626 = vmatpush2.xpose.msra.mxu0 0.0
    %2627 = vmatprep.subr.mxu0 0.0
    %2628 = vmatpush2.xpose.msra.mxu0 0.0
    %2629 = vmatprep.subr.mxu0 0.0
    %2630 = vmatpush2.xpose.msra.mxu0 0.0
    %2631 = vmatprep.subr.mxu0 0.0
    %2632 = vmatpush2.xpose.msra.mxu0 0.0
    %2633 = vmatprep.mubr.f32.mxu0 0.0
    %2634 = vmatmul.mubr.f32.gmra.mxu0 %v2561
    %v2635 = vpop.f32.mrf.mxu0
    %v2636 = vadd.f32 %v383, %v2635
    %v2637 = vpop.f32.mrf.mxu0
    %2638 = vmatprep.mubr.f32.mxu0 0.0
    %2639 = vmatmul.mubr.f32.gmra.mxu0 %v2563
    %v2640 = vpop.f32.mrf.mxu0
    %v2641 = vadd.f32 %v384, %v2640
    %v2642 = vpop.f32.mrf.mxu0
    %2643 = vdwg.mxu0
    %v2644 = vsel %vm565, %v2636, -inf
    %2645 = vmax.xlane.f32.xlu0 %v2644
    %v2646 = vpop.xlane.xlu0 %2645
    %v2647 = vsel %vm565, %v2641, -inf
    %2648 = vmax.xlane.f32.xlu0 %v2647
    %v2649 = vpop.xlane.xlu0 %2648
    %v2650 = vsub.f32 %v2636, %v2646
    %v2651 = vsub.f32 %v2641, %v2649
    %v2652 = vmul.f32 %v2650, 1.442695
    %v2653 = vpow.pop %v2652
    %v2654 = vmul.f32 %v2651, 1.442695
    %v2655 = vpow.pop %v2654
    %v2656 = vsel %vm565, %v2653, 0.0
    %2657 = vadd.xlane.f32.xlu0 %v2656
    %v2658 = vpop.xlane.xlu0 %2657
    %v2659 = vsel %vm565, %v2655, 0.0
    %2660 = vadd.xlane.f32.xlu0 %v2659
    %v2661 = vpop.xlane.xlu0 %2660
    %v2662 = vrcp.pop %v2658
    %v2663 = vrcp.pop %v2661
    %v2664 = vmul.f32 %v2653, %v2662
    %v2665 = vmul.f32 %v2655, %v2663
    %2666 = vrot.lane.b32.xlu0 %v1983, 48
    %v2667 = vpop.permute.xlu0 %2666
    %2668 = vrot.lane.b32.xlu0 %v1988, 48
    %v2669 = vpop.permute.xlu0 %2668
    %v2673 = vsel %vm565, %v2664, 0
    %v2676 = vsel %vm565, %v2665, 0
    %2678 = vmatprep.subr.mxu0 0.0
    %2679 = vmatpush1.msra.mxu0 0.0
    %2680 = vmatprep.subr.mxu0 0.0
    %2681 = vmatpush1.msra.mxu0 0.0
    %2682 = vmatprep.subr.mxu0 0.0
    %2683 = vmatpush1.msra.mxu0 0.0
    %2684 = vmatprep.subr.mxu0 0.0
    %2685 = vmatpush1.msra.mxu0 0.0
    %2686 = vmatprep.subr.mxu0 0.0
    %2687 = vmatpush1.msra.mxu0 0.0
    %2688 = vmatprep.subr.mxu0 0.0
    %2689 = vmatpush1.msra.mxu0 0.0
    %2690 = vmatprep.subr.mxu0 0.0
    %2691 = vmatpush1.msra.mxu0 0.0
    %2692 = vmatprep.subr.mxu0 0.0
    %2693 = vmatpush1.msra.mxu0 0.0
    %2694 = vmatprep.subr.mxu0 0.0
    %2695 = vmatpush1.msra.mxu0 0.0
    %2696 = vmatprep.subr.mxu0 0.0
    %2697 = vmatpush1.msra.mxu0 0.0
    %2698 = vmatprep.subr.mxu0 0.0
    %2699 = vmatpush1.msra.mxu0 0.0
    %2700 = vmatprep.subr.mxu0 0.0
    %2701 = vmatpush1.msra.mxu0 0.0
    %2702 = vmatprep.subr.mxu0 0.0
    %2703 = vmatpush1.msra.mxu0 0.0
    %2704 = vmatprep.subr.mxu0 0.0
    %2705 = vmatpush1.msra.mxu0 0.0
    %2706 = vmatprep.subr.mxu0 0.0
    %2707 = vmatpush1.msra.mxu0 %v2669
    %2708 = vmatprep.subr.mxu0 0.0
    %2709 = vmatpush1.msra.mxu0 %v2667
    %2710 = vmatprep.subr.mxu0 0.0
    %2711 = vmatpush2.msra.mxu0 0.0
    %2712 = vmatprep.subr.mxu0 0.0
    %2713 = vmatpush2.msra.mxu0 0.0
    %2714 = vmatprep.subr.mxu0 0.0
    %2715 = vmatpush2.msra.mxu0 0.0
    %2716 = vmatprep.subr.mxu0 0.0
    %2717 = vmatpush2.msra.mxu0 0.0
    %2718 = vmatprep.subr.mxu0 0.0
    %2719 = vmatpush2.msra.mxu0 0.0
    %2720 = vmatprep.subr.mxu0 0.0
    %2721 = vmatpush2.msra.mxu0 0.0
    %2722 = vmatprep.subr.mxu0 0.0
    %2723 = vmatpush2.msra.mxu0 0.0
    %2724 = vmatprep.subr.mxu0 0.0
    %2725 = vmatpush2.msra.mxu0 0.0
    %2726 = vmatprep.subr.mxu0 0.0
    %2727 = vmatpush2.msra.mxu0 0.0
    %2728 = vmatprep.subr.mxu0 0.0
    %2729 = vmatpush2.msra.mxu0 0.0
    %2730 = vmatprep.subr.mxu0 0.0
    %2731 = vmatpush2.msra.mxu0 0.0
    %2732 = vmatprep.subr.mxu0 0.0
    %2733 = vmatpush2.msra.mxu0 0.0
    %2734 = vmatprep.subr.mxu0 0.0
    %2735 = vmatpush2.msra.mxu0 0.0
    %2736 = vmatprep.subr.mxu0 0.0
    %2737 = vmatpush2.msra.mxu0 0.0
    %2738 = vmatprep.subr.mxu0 0.0
    %2739 = vmatpush2.msra.mxu0 0.0
    %2740 = vmatprep.subr.mxu0 0.0
    %2741 = vmatpush2.msra.mxu0 0.0
    %2742 = vmatprep.mubr.f32.mxu0 0.0
    %2743 = vmatmul.mubr.f32.gmra.mxu0 %v2673
    %v2744 = vpop.f32.mrf.mxu0
    %v2745 = vadd.f32 0.0, %v2744
    %v2746 = vpop.f32.mrf.mxu0
    %2747 = vmatprep.mubr.f32.mxu0 0.0
    %2748 = vmatmul.mubr.f32.gmra.mxu0 %v2676
    %v2749 = vpop.f32.mrf.mxu0
    %v2750 = vadd.f32 0.0, %v2749
    %v2751 = vpop.f32.mrf.mxu0
    %2752 = vdwg.mxu0
    %v2753 = vld [vmem:[#allocation11 + $0xd0] sm:$0xff]
    %v2755 = vsel %vm481, %v2745, 0
    %v2758 = vsel %vm481, %v2750, 0
    %2760 = vmatprep.subr.mxu0 0.0
    %2761 = vmatpush1.msra.mxu0 0.0
    %2762 = vmatprep.subr.mxu0 0.0
    %2763 = vmatpush1.msra.mxu0 0.0
    %2764 = vmatprep.subr.mxu0 0.0
    %2765 = vmatpush1.msra.mxu0 0.0
    %2766 = vmatprep.subr.mxu0 0.0
    %2767 = vmatpush1.msra.mxu0 0.0
    %2768 = vmatprep.subr.mxu0 0.0
    %2769 = vmatpush1.msra.mxu0 0.0
    %2770 = vmatprep.subr.mxu0 0.0
    %2771 = vmatpush1.msra.mxu0 0.0
    %2772 = vmatprep.subr.mxu0 0.0
    %2773 = vmatpush1.msra.mxu0 0.0
    %2774 = vmatprep.subr.mxu0 0.0
    %2775 = vmatpush1.msra.mxu0 0.0
    %2776 = vmatprep.subr.mxu0 0.0
    %2777 = vmatpush1.msra.mxu0 0.0
    %2778 = vmatprep.subr.mxu0 0.0
    %2779 = vmatpush1.msra.mxu0 0.0
    %2780 = vmatprep.subr.mxu0 0.0
    %2781 = vmatpush1.msra.mxu0 0.0
    %2782 = vmatprep.subr.mxu0 0.0
    %2783 = vmatpush1.msra.mxu0 0.0
    %2784 = vmatprep.subr.mxu0 0.0
    %2785 = vmatpush1.msra.mxu0 0.0
    %2786 = vmatprep.subr.mxu0 0.0
    %2787 = vmatpush1.msra.mxu0 0.0
    %2788 = vmatprep.subr.mxu0 0.0
    %2789 = vmatpush1.msra.mxu0 0.0
    %2790 = vmatprep.subr.mxu0 0.0
    %2791 = vmatpush1.msra.mxu0 %v2753
    %2792 = vmatprep.subr.mxu0 0.0
    %2793 = vmatpush2.msra.mxu0 0.0
    %2794 = vmatprep.subr.mxu0 0.0
    %2795 = vmatpush2.msra.mxu0 0.0
    %2796 = vmatprep.subr.mxu0 0.0
    %2797 = vmatpush2.msra.mxu0 0.0
    %2798 = vmatprep.subr.mxu0 0.0
    %2799 = vmatpush2.msra.mxu0 0.0
    %2800 = vmatprep.subr.mxu0 0.0
    %2801 = vmatpush2.msra.mxu0 0.0
    %2802 = vmatprep.subr.mxu0 0.0
    %2803 = vmatpush2.msra.mxu0 0.0
    %2804 = vmatprep.subr.mxu0 0.0
    %2805 = vmatpush2.msra.mxu0 0.0
    %2806 = vmatprep.subr.mxu0 0.0
    %2807 = vmatpush2.msra.mxu0 0.0
    %2808 = vmatprep.subr.mxu0 0.0
    %2809 = vmatpush2.msra.mxu0 0.0
    %2810 = vmatprep.subr.mxu0 0.0
    %2811 = vmatpush2.msra.mxu0 0.0
    %2812 = vmatprep.subr.mxu0 0.0
    %2813 = vmatpush2.msra.mxu0 0.0
    %2814 = vmatprep.subr.mxu0 0.0
    %2815 = vmatpush2.msra.mxu0 0.0
    %2816 = vmatprep.subr.mxu0 0.0
    %2817 = vmatpush2.msra.mxu0 0.0
    %2818 = vmatprep.subr.mxu0 0.0
    %2819 = vmatpush2.msra.mxu0 0.0
    %2820 = vmatprep.subr.mxu0 0.0
    %2821 = vmatpush2.msra.mxu0 0.0
    %2822 = vmatprep.subr.mxu0 0.0
    %2823 = vmatpush2.msra.mxu0 0.0
    %2824 = vmatprep.mubr.f32.mxu0 0.0
    %2825 = vmatmul.mubr.f32.gmra.mxu0 %v2755
    %v2826 = vpop.f32.mrf.mxu0
    %v2827 = vadd.f32 0.0, %v2826
    %v2828 = vpop.f32.mrf.mxu0
    %2829 = vmatprep.mubr.f32.mxu0 0.0
    %2830 = vmatmul.mubr.f32.gmra.mxu0 %v2758
    %v2831 = vpop.f32.mrf.mxu0
    %v2832 = vadd.f32 0.0, %v2831
    %v2833 = vpop.f32.mrf.mxu0
    %2834 = vdwg.mxu0
    %v2835 = vadd.f32 %v2545, %v2827
    %v2836 = vadd.f32 %v2550, %v2832
    %2837 = vrot.lane.b32.xlu0 %v1983, 104
    %v2838 = vpop.permute.xlu0 %2837
    %2839 = vrot.lane.b32.xlu0 %v1988, 104
    %v2840 = vpop.permute.xlu0 %2839
    %2841 = vrot.lane.b32.xlu0 %v1983, 72
    %v2842 = vpop.permute.xlu0 %2841
    %2843 = vrot.lane.b32.xlu0 %v1988, 72
    %v2844 = vpop.permute.xlu0 %2843
    %v2845 = vsel %vm481, %v2838, 0
    %v2847 = vsel %vm481, %v2840, 0
    %v2849 = vsel %vm481, %v2842, 0
    %v2851 = vsel %vm481, %v2844, 0
    %2853 = vmatprep.subr.mxu0 0.0
    %2854 = vmatpush1.xpose.msra.mxu0 0.0
    %2855 = vmatprep.subr.mxu0 0.0
    %2856 = vmatpush1.xpose.msra.mxu0 0.0
    %2857 = vmatprep.subr.mxu0 0.0
    %2858 = vmatpush1.xpose.msra.mxu0 0.0
    %2859 = vmatprep.subr.mxu0 0.0
    %2860 = vmatpush1.xpose.msra.mxu0 0.0
    %2861 = vmatprep.subr.mxu0 0.0
    %2862 = vmatpush1.xpose.msra.mxu0 0.0
    %2863 = vmatprep.subr.mxu0 0.0
    %2864 = vmatpush1.xpose.msra.mxu0 0.0
    %2865 = vmatprep.subr.mxu0 0.0
    %2866 = vmatpush1.xpose.msra.mxu0 0.0
    %2867 = vmatprep.subr.mxu0 0.0
    %2868 = vmatpush1.xpose.msra.mxu0 0.0
    %2869 = vmatprep.subr.mxu0 0.0
    %2870 = vmatpush1.xpose.msra.mxu0 0.0
    %2871 = vmatprep.subr.mxu0 0.0
    %2872 = vmatpush1.xpose.msra.mxu0 0.0
    %2873 = vmatprep.subr.mxu0 0.0
    %2874 = vmatpush1.xpose.msra.mxu0 0.0
    %2875 = vmatprep.subr.mxu0 0.0
    %2876 = vmatpush1.xpose.msra.mxu0 0.0
    %2877 = vmatprep.subr.mxu0 0.0
    %2878 = vmatpush1.xpose.msra.mxu0 0.0
    %2879 = vmatprep.subr.mxu0 0.0
    %2880 = vmatpush1.xpose.msra.mxu0 0.0
    %2881 = vmatprep.subr.mxu0 0.0
    %2882 = vmatpush1.xpose.msra.mxu0 %v2851
    %2883 = vmatprep.subr.mxu0 0.0
    %2884 = vmatpush1.xpose.msra.mxu0 %v2849
    %2885 = vmatprep.subr.mxu0 0.0
    %2886 = vmatpush2.xpose.msra.mxu0 0.0
    %2887 = vmatprep.subr.mxu0 0.0
    %2888 = vmatpush2.xpose.msra.mxu0 0.0
    %2889 = vmatprep.subr.mxu0 0.0
    %2890 = vmatpush2.xpose.msra.mxu0 0.0
    %2891 = vmatprep.subr.mxu0 0.0
    %2892 = vmatpush2.xpose.msra.mxu0 0.0
    %2893 = vmatprep.subr.mxu0 0.0
    %2894 = vmatpush2.xpose.msra.mxu0 0.0
    %2895 = vmatprep.subr.mxu0 0.0
    %2896 = vmatpush2.xpose.msra.mxu0 0.0
    %2897 = vmatprep.subr.mxu0 0.0
    %2898 = vmatpush2.xpose.msra.mxu0 0.0
    %2899 = vmatprep.subr.mxu0 0.0
    %2900 = vmatpush2.xpose.msra.mxu0 0.0
    %2901 = vmatprep.subr.mxu0 0.0
    %2902 = vmatpush2.xpose.msra.mxu0 0.0
    %2903 = vmatprep.subr.mxu0 0.0
    %2904 = vmatpush2.xpose.msra.mxu0 0.0
    %2905 = vmatprep.subr.mxu0 0.0
    %2906 = vmatpush2.xpose.msra.mxu0 0.0
    %2907 = vmatprep.subr.mxu0 0.0
    %2908 = vmatpush2.xpose.msra.mxu0 0.0
    %2909 = vmatprep.subr.mxu0 0.0
    %2910 = vmatpush2.xpose.msra.mxu0 0.0
    %2911 = vmatprep.subr.mxu0 0.0
    %2912 = vmatpush2.xpose.msra.mxu0 0.0
    %2913 = vmatprep.subr.mxu0 0.0
    %2914 = vmatpush2.xpose.msra.mxu0 0.0
    %2915 = vmatprep.subr.mxu0 0.0
    %2916 = vmatpush2.xpose.msra.mxu0 0.0
    %2917 = vmatprep.mubr.f32.mxu0 0.0
    %2918 = vmatmul.mubr.f32.gmra.mxu0 %v2845
    %v2919 = vpop.f32.mrf.mxu0
    %v2920 = vadd.f32 %v383, %v2919
    %v2921 = vpop.f32.mrf.mxu0
    %2922 = vmatprep.mubr.f32.mxu0 0.0
    %2923 = vmatmul.mubr.f32.gmra.mxu0 %v2847
    %v2924 = vpop.f32.mrf.mxu0
    %v2925 = vadd.f32 %v384, %v2924
    %v2926 = vpop.f32.mrf.mxu0
    %2927 = vdwg.mxu0
    %v2928 = vsel %vm565, %v2920, -inf
    %2929 = vmax.xlane.f32.xlu0 %v2928
    %v2930 = vpop.xlane.xlu0 %2929
    %v2931 = vsel %vm565, %v2925, -inf
    %2932 = vmax.xlane.f32.xlu0 %v2931
    %v2933 = vpop.xlane.xlu0 %2932
    %v2934 = vsub.f32 %v2920, %v2930
    %v2935 = vsub.f32 %v2925, %v2933
    %v2936 = vmul.f32 %v2934, 1.442695
    %v2937 = vpow.pop %v2936
    %v2938 = vmul.f32 %v2935, 1.442695
    %v2939 = vpow.pop %v2938
    %v2940 = vsel %vm565, %v2937, 0.0
    %2941 = vadd.xlane.f32.xlu0 %v2940
    %v2942 = vpop.xlane.xlu0 %2941
    %v2943 = vsel %vm565, %v2939, 0.0
    %2944 = vadd.xlane.f32.xlu0 %v2943
    %v2945 = vpop.xlane.xlu0 %2944
    %v2946 = vrcp.pop %v2942
    %v2947 = vrcp.pop %v2945
    %v2948 = vmul.f32 %v2937, %v2946
    %v2949 = vmul.f32 %v2939, %v2947
    %2950 = vrot.lane.b32.xlu0 %v1983, 40
    %v2951 = vpop.permute.xlu0 %2950
    %2952 = vrot.lane.b32.xlu0 %v1988, 40
    %v2953 = vpop.permute.xlu0 %2952
    %v2957 = vsel %vm565, %v2948, 0
    %v2960 = vsel %vm565, %v2949, 0
    %2962 = vmatprep.subr.mxu0 0.0
    %2963 = vmatpush1.msra.mxu0 0.0
    %2964 = vmatprep.subr.mxu0 0.0
    %2965 = vmatpush1.msra.mxu0 0.0
    %2966 = vmatprep.subr.mxu0 0.0
    %2967 = vmatpush1.msra.mxu0 0.0
    %2968 = vmatprep.subr.mxu0 0.0
    %2969 = vmatpush1.msra.mxu0 0.0
    %2970 = vmatprep.subr.mxu0 0.0
    %2971 = vmatpush1.msra.mxu0 0.0
    %2972 = vmatprep.subr.mxu0 0.0
    %2973 = vmatpush1.msra.mxu0 0.0
    %2974 = vmatprep.subr.mxu0 0.0
    %2975 = vmatpush1.msra.mxu0 0.0
    %2976 = vmatprep.subr.mxu0 0.0
    %2977 = vmatpush1.msra.mxu0 0.0
    %2978 = vmatprep.subr.mxu0 0.0
    %2979 = vmatpush1.msra.mxu0 0.0
    %2980 = vmatprep.subr.mxu0 0.0
    %2981 = vmatpush1.msra.mxu0 0.0
    %2982 = vmatprep.subr.mxu0 0.0
    %2983 = vmatpush1.msra.mxu0 0.0
    %2984 = vmatprep.subr.mxu0 0.0
    %2985 = vmatpush1.msra.mxu0 0.0
    %2986 = vmatprep.subr.mxu0 0.0
    %2987 = vmatpush1.msra.mxu0 0.0
    %2988 = vmatprep.subr.mxu0 0.0
    %2989 = vmatpush1.msra.mxu0 0.0
    %2990 = vmatprep.subr.mxu0 0.0
    %2991 = vmatpush1.msra.mxu0 %v2953
    %2992 = vmatprep.subr.mxu0 0.0
    %2993 = vmatpush1.msra.mxu0 %v2951
    %2994 = vmatprep.subr.mxu0 0.0
    %2995 = vmatpush2.msra.mxu0 0.0
    %2996 = vmatprep.subr.mxu0 0.0
    %2997 = vmatpush2.msra.mxu0 0.0
    %2998 = vmatprep.subr.mxu0 0.0
    %2999 = vmatpush2.msra.mxu0 0.0
    %3000 = vmatprep.subr.mxu0 0.0
    %3001 = vmatpush2.msra.mxu0 0.0
    %3002 = vmatprep.subr.mxu0 0.0
    %3003 = vmatpush2.msra.mxu0 0.0
    %3004 = vmatprep.subr.mxu0 0.0
    %3005 = vmatpush2.msra.mxu0 0.0
    %3006 = vmatprep.subr.mxu0 0.0
    %3007 = vmatpush2.msra.mxu0 0.0
    %3008 = vmatprep.subr.mxu0 0.0
    %3009 = vmatpush2.msra.mxu0 0.0
    %3010 = vmatprep.subr.mxu0 0.0
    %3011 = vmatpush2.msra.mxu0 0.0
    %3012 = vmatprep.subr.mxu0 0.0
    %3013 = vmatpush2.msra.mxu0 0.0
    %3014 = vmatprep.subr.mxu0 0.0
    %3015 = vmatpush2.msra.mxu0 0.0
    %3016 = vmatprep.subr.mxu0 0.0
    %3017 = vmatpush2.msra.mxu0 0.0
    %3018 = vmatprep.subr.mxu0 0.0
    %3019 = vmatpush2.msra.mxu0 0.0
    %3020 = vmatprep.subr.mxu0 0.0
    %3021 = vmatpush2.msra.mxu0 0.0
    %3022 = vmatprep.subr.mxu0 0.0
    %3023 = vmatpush2.msra.mxu0 0.0
    %3024 = vmatprep.subr.mxu0 0.0
    %3025 = vmatpush2.msra.mxu0 0.0
    %3026 = vmatprep.mubr.f32.mxu0 0.0
    %3027 = vmatmul.mubr.f32.gmra.mxu0 %v2957
    %v3028 = vpop.f32.mrf.mxu0
    %v3029 = vadd.f32 0.0, %v3028
    %v3030 = vpop.f32.mrf.mxu0
    %3031 = vmatprep.mubr.f32.mxu0 0.0
    %3032 = vmatmul.mubr.f32.gmra.mxu0 %v2960
    %v3033 = vpop.f32.mrf.mxu0
    %v3034 = vadd.f32 0.0, %v3033
    %v3035 = vpop.f32.mrf.mxu0
    %3036 = vdwg.mxu0
    %v3037 = vld [vmem:[#allocation11 + $0xd8] sm:$0xff]
    %v3039 = vsel %vm481, %v3029, 0
    %v3042 = vsel %vm481, %v3034, 0
    %3044 = vmatprep.subr.mxu0 0.0
    %3045 = vmatpush1.msra.mxu0 0.0
    %3046 = vmatprep.subr.mxu0 0.0
    %3047 = vmatpush1.msra.mxu0 0.0
    %3048 = vmatprep.subr.mxu0 0.0
    %3049 = vmatpush1.msra.mxu0 0.0
    %3050 = vmatprep.subr.mxu0 0.0
    %3051 = vmatpush1.msra.mxu0 0.0
    %3052 = vmatprep.subr.mxu0 0.0
    %3053 = vmatpush1.msra.mxu0 0.0
    %3054 = vmatprep.subr.mxu0 0.0
    %3055 = vmatpush1.msra.mxu0 0.0
    %3056 = vmatprep.subr.mxu0 0.0
    %3057 = vmatpush1.msra.mxu0 0.0
    %3058 = vmatprep.subr.mxu0 0.0
    %3059 = vmatpush1.msra.mxu0 0.0
    %3060 = vmatprep.subr.mxu0 0.0
    %3061 = vmatpush1.msra.mxu0 0.0
    %3062 = vmatprep.subr.mxu0 0.0
    %3063 = vmatpush1.msra.mxu0 0.0
    %3064 = vmatprep.subr.mxu0 0.0
    %3065 = vmatpush1.msra.mxu0 0.0
    %3066 = vmatprep.subr.mxu0 0.0
    %3067 = vmatpush1.msra.mxu0 0.0
    %3068 = vmatprep.subr.mxu0 0.0
    %3069 = vmatpush1.msra.mxu0 0.0
    %3070 = vmatprep.subr.mxu0 0.0
    %3071 = vmatpush1.msra.mxu0 0.0
    %3072 = vmatprep.subr.mxu0 0.0
    %3073 = vmatpush1.msra.mxu0 0.0
    %3074 = vmatprep.subr.mxu0 0.0
    %3075 = vmatpush1.msra.mxu0 %v3037
    %3076 = vmatprep.subr.mxu0 0.0
    %3077 = vmatpush2.msra.mxu0 0.0
    %3078 = vmatprep.subr.mxu0 0.0
    %3079 = vmatpush2.msra.mxu0 0.0
    %3080 = vmatprep.subr.mxu0 0.0
    %3081 = vmatpush2.msra.mxu0 0.0
    %3082 = vmatprep.subr.mxu0 0.0
    %3083 = vmatpush2.msra.mxu0 0.0
    %3084 = vmatprep.subr.mxu0 0.0
    %3085 = vmatpush2.msra.mxu0 0.0
    %3086 = vmatprep.subr.mxu0 0.0
    %3087 = vmatpush2.msra.mxu0 0.0
    %3088 = vmatprep.subr.mxu0 0.0
    %3089 = vmatpush2.msra.mxu0 0.0
    %3090 = vmatprep.subr.mxu0 0.0
    %3091 = vmatpush2.msra.mxu0 0.0
    %3092 = vmatprep.subr.mxu0 0.0
    %3093 = vmatpush2.msra.mxu0 0.0
    %3094 = vmatprep.subr.mxu0 0.0
    %3095 = vmatpush2.msra.mxu0 0.0
    %3096 = vmatprep.subr.mxu0 0.0
    %3097 = vmatpush2.msra.mxu0 0.0
    %3098 = vmatprep.subr.mxu0 0.0
    %3099 = vmatpush2.msra.mxu0 0.0
    %3100 = vmatprep.subr.mxu0 0.0
    %3101 = vmatpush2.msra.mxu0 0.0
    %3102 = vmatprep.subr.mxu0 0.0
    %3103 = vmatpush2.msra.mxu0 0.0
    %3104 = vmatprep.subr.mxu0 0.0
    %3105 = vmatpush2.msra.mxu0 0.0
    %3106 = vmatprep.subr.mxu0 0.0
    %3107 = vmatpush2.msra.mxu0 0.0
    %3108 = vmatprep.mubr.f32.mxu0 0.0
    %3109 = vmatmul.mubr.f32.gmra.mxu0 %v3039
    %v3110 = vpop.f32.mrf.mxu0
    %v3111 = vadd.f32 0.0, %v3110
    %v3112 = vpop.f32.mrf.mxu0
    %3113 = vmatprep.mubr.f32.mxu0 0.0
    %3114 = vmatmul.mubr.f32.gmra.mxu0 %v3042
    %v3115 = vpop.f32.mrf.mxu0
    %v3116 = vadd.f32 0.0, %v3115
    %v3117 = vpop.f32.mrf.mxu0
    %3118 = vdwg.mxu0
    %v3119 = vadd.f32 %v2835, %v3111
    %v3120 = vadd.f32 %v2836, %v3116
    %v3121 = vld [vmem:[%s6 + $0xb] sm:$0x1]
    %v3122 = vlaneseq
    %v3123 = vshrl.u32 %v3122, 7
    %v3124 = vsub.s32 0, %v3123
    %v3125 = vrot.slane %v3121, %v3124
    %v3126 = vadd.f32 %v3119, %v3125
    %v3127 = vadd.f32 %v3120, %v3125
    %v3128 = vadd.f32 %v3126, %v1899
    %v3129 = vadd.f32 %v3127, %v1900
    %v3130 = vld [vmem:[%s6 + $0xc] sm:$0x1]
    %v3131 = vld [vmem:[%s6 + $0xd] sm:$0x1]
    %v3132 = vsel %vm317, %v3128, 0.0
    %3133 = vadd.xlane.f32.xlu0 %v3132
    %v3134 = vpop.xlane.xlu0 %3133
    %v3135 = vsel %vm317, %v3129, 0.0
    %3136 = vadd.xlane.f32.xlu0 %v3135
    %v3137 = vpop.xlane.xlu0 %3136
    %v3138 = vmul.f32 %v3134, %v324
    %v3139 = vmul.f32 %v3137, %v324
    %v3140 = vsub.f32 %v3128, %v3138
    %v3141 = vsub.f32 %v3129, %v3139
    %v3142 = vmul.f32 %v3140, %v3140
    %v3143 = vmul.f32 %v3141, %v3141
    %v3144 = vsel %vm317, %v3142, 0.0
    %3145 = vadd.xlane.f32.xlu0 %v3144
    %v3146 = vpop.xlane.xlu0 %3145
    %v3147 = vsel %vm317, %v3143, 0.0
    %3148 = vadd.xlane.f32.xlu0 %v3147
    %v3149 = vpop.xlane.xlu0 %3148
    %v3150 = vmul.f32 %v3146, %v324
    %v3151 = vmul.f32 %v3149, %v324
    %v3152 = vadd.f32 %v3150, 1e-12
    %v3153 = vadd.f32 %v3151, 1e-12
    %v3154 = vrsqrt.pop %v3152
    %v3155 = vrsqrt.pop %v3153
    %v3156 = vmul.f32 %v3140, %v3154
    %v3157 = vmul.f32 %v3141, %v3155
    %v3158 = vlaneseq
    %v3159 = vshrl.u32 %v3158, 7
    %v3160 = vsub.s32 0, %v3159
    %v3161 = vrot.slane %v3130, %v3160
    %v3162 = vmul.f32 %v3156, %v3161
    %v3163 = vmul.f32 %v3157, %v3161
    %v3164 = vlaneseq
    %v3165 = vshrl.u32 %v3164, 7
    %v3166 = vsub.s32 0, %v3165
    %v3167 = vrot.slane %v3131, %v3166
    %v3168 = vadd.f32 %v3162, %v3167
    %v3169 = vadd.f32 %v3163, %v3167
    %v3170 = vld [vmem:[#allocation11 + $0xe0] sm:$0xff]
    %v3171 = vld [vmem:[#allocation11 + $0xe8] sm:$0xff]
    %v3172 = vld [vmem:[#allocation11 + $0xf0] sm:$0xff]
    %v3173 = vld [vmem:[#allocation11 + $0xf8] sm:$0xff]
    %v3174 = vld [vmem:[%s6 + $0xe] sm:$0x1]
    %v3175 = vlaneseq
    %v3176 = vshrl.u32 %v3175, 7
    %v3177 = vsub.s32 0, %v3176
    %v3178 = vrot.slane %v3174, %v3177
    %v3180 = vsel %vm317, %v3168, 0
    %v3183 = vsel %vm317, %v3169, 0
    %3185 = vmatprep.subr.mxu0 0.0
    %3186 = vmatpush1.msra.mxu0 0.0
    %3187 = vmatprep.subr.mxu0 0.0
    %3188 = vmatpush1.msra.mxu0 0.0
    %3189 = vmatprep.subr.mxu0 0.0
    %3190 = vmatpush1.msra.mxu0 0.0
    %3191 = vmatprep.subr.mxu0 0.0
    %3192 = vmatpush1.msra.mxu0 0.0
    %3193 = vmatprep.subr.mxu0 0.0
    %3194 = vmatpush1.msra.mxu0 0.0
    %3195 = vmatprep.subr.mxu0 0.0
    %3196 = vmatpush1.msra.mxu0 0.0
    %3197 = vmatprep.subr.mxu0 0.0
    %3198 = vmatpush1.msra.mxu0 0.0
    %3199 = vmatprep.subr.mxu0 0.0
    %3200 = vmatpush1.msra.mxu0 0.0
    %3201 = vmatprep.subr.mxu0 0.0
    %3202 = vmatpush1.msra.mxu0 0.0
    %3203 = vmatprep.subr.mxu0 0.0
    %3204 = vmatpush1.msra.mxu0 0.0
    %3205 = vmatprep.subr.mxu0 0.0
    %3206 = vmatpush1.msra.mxu0 0.0
    %3207 = vmatprep.subr.mxu0 0.0
    %3208 = vmatpush1.msra.mxu0 0.0
    %3209 = vmatprep.subr.mxu0 0.0
    %3210 = vmatpush1.msra.mxu0 %v3173
    %3211 = vmatprep.subr.mxu0 0.0
    %3212 = vmatpush1.msra.mxu0 %v3172
    %3213 = vmatprep.subr.mxu0 0.0
    %3214 = vmatpush1.msra.mxu0 %v3171
    %3215 = vmatprep.subr.mxu0 0.0
    %3216 = vmatpush1.msra.mxu0 %v3170
    %3217 = vmatprep.subr.mxu0 0.0
    %3218 = vmatpush2.msra.mxu0 0.0
    %3219 = vmatprep.subr.mxu0 0.0
    %3220 = vmatpush2.msra.mxu0 0.0
    %3221 = vmatprep.subr.mxu0 0.0
    %3222 = vmatpush2.msra.mxu0 0.0
    %3223 = vmatprep.subr.mxu0 0.0
    %3224 = vmatpush2.msra.mxu0 0.0
    %3225 = vmatprep.subr.mxu0 0.0
    %3226 = vmatpush2.msra.mxu0 0.0
    %3227 = vmatprep.subr.mxu0 0.0
    %3228 = vmatpush2.msra.mxu0 0.0
    %3229 = vmatprep.subr.mxu0 0.0
    %3230 = vmatpush2.msra.mxu0 0.0
    %3231 = vmatprep.subr.mxu0 0.0
    %3232 = vmatpush2.msra.mxu0 0.0
    %3233 = vmatprep.subr.mxu0 0.0
    %3234 = vmatpush2.msra.mxu0 0.0
    %3235 = vmatprep.subr.mxu0 0.0
    %3236 = vmatpush2.msra.mxu0 0.0
    %3237 = vmatprep.subr.mxu0 0.0
    %3238 = vmatpush2.msra.mxu0 0.0
    %3239 = vmatprep.subr.mxu0 0.0
    %3240 = vmatpush2.msra.mxu0 0.0
    %3241 = vmatprep.subr.mxu0 0.0
    %3242 = vmatpush2.msra.mxu0 0.0
    %3243 = vmatprep.subr.mxu0 0.0
    %3244 = vmatpush2.msra.mxu0 0.0
    %3245 = vmatprep.subr.mxu0 0.0
    %3246 = vmatpush2.msra.mxu0 0.0
    %3247 = vmatprep.subr.mxu0 0.0
    %3248 = vmatpush2.msra.mxu0 0.0
    %3249 = vmatprep.mubr.f32.mxu0 0.0
    %3250 = vmatmul.mubr.f32.gmra.mxu0 %v3180
    %v3251 = vpop.f32.mrf.mxu0
    %v3252 = vadd.f32 %v3178, %v3251
    %v3253 = vpop.f32.mrf.mxu0
    %3254 = vmatprep.mubr.f32.mxu0 0.0
    %3255 = vmatmul.mubr.f32.gmra.mxu0 %v3183
    %v3256 = vpop.f32.mrf.mxu0
    %v3257 = vadd.f32 %v3178, %v3256
    %v3258 = vpop.f32.mrf.mxu0
    %3259 = vdwg.mxu0
    %v3260 = vmul.f32 %v3252, %v3252
    %v3261 = vmul.f32 %v3257, %v3257
    %v3262 = vmul.f32 %v3252, %v3260
    %v3263 = vmul.f32 %v3257, %v3261
    %v3264 = vmul.f32 %v3262, 0.044715
    %v3265 = vmul.f32 %v3263, 0.044715
    %v3266 = vadd.f32 %v3252, %v3264
    %v3267 = vadd.f32 %v3257, %v3265
    %v3268 = vmul.f32 %v3266, 0.7978846
    %v3269 = vmul.f32 %v3267, 0.7978846
    %v3270 = vtanh.pop %v3268
    %v3271 = vtanh.pop %v3269
    %v3272 = vadd.f32 %v3270, 1.0
    %v3273 = vadd.f32 %v3271, 1.0
    %v3274 = vmul.f32 %v3272, 0.5
    %v3275 = vmul.f32 %v3273, 0.5
    %v3276 = vmul.f32 %v3252, %v3274
    %v3277 = vmul.f32 %v3257, %v3275
    %v3278 = vld [vmem:[#allocation11 + $0x100] sm:$0xff]
    %v3279 = vld [vmem:[#allocation11 + $0x108] sm:$0xff]
    %v3280 = vld [vmem:[#allocation11 + $0x110] sm:$0xff]
    %v3281 = vld [vmem:[#allocation11 + $0x118] sm:$0xff]
    %v3282 = vld [vmem:[#allocation11 + $0x120] sm:$0xff]
    %v3283 = vld [vmem:[#allocation11 + $0x128] sm:$0xff]
    %v3284 = vld [vmem:[#allocation11 + $0x130] sm:$0xff]
    %v3285 = vld [vmem:[#allocation11 + $0x138] sm:$0xff]
    %v3286 = vld [vmem:[%s6 + $0xf] sm:$0x1]
    %v3287 = vlaneseq
    %v3288 = vshrl.u32 %v3287, 7
    %v3289 = vsub.s32 0, %v3288
    %v3290 = vrot.slane %v3286, %v3289
    %v3292 = vsel %vm1777, %v3276, 0
    %v3295 = vsel %vm1777, %v3277, 0
    %3297 = vmatprep.subr.mxu0 0.0
    %3298 = vmatpush1.msra.mxu0 0.0
    %3299 = vmatprep.subr.mxu0 0.0
    %3300 = vmatpush1.msra.mxu0 0.0
    %3301 = vmatprep.subr.mxu0 0.0
    %3302 = vmatpush1.msra.mxu0 0.0
    %3303 = vmatprep.subr.mxu0 0.0
    %3304 = vmatpush1.msra.mxu0 0.0
    %3305 = vmatprep.subr.mxu0 0.0
    %3306 = vmatpush1.msra.mxu0 0.0
    %3307 = vmatprep.subr.mxu0 0.0
    %3308 = vmatpush1.msra.mxu0 0.0
    %3309 = vmatprep.subr.mxu0 0.0
    %3310 = vmatpush1.msra.mxu0 0.0
    %3311 = vmatprep.subr.mxu0 0.0
    %3312 = vmatpush1.msra.mxu0 0.0
    %3313 = vmatprep.subr.mxu0 0.0
    %3314 = vmatpush1.msra.mxu0 %v3285
    %3315 = vmatprep.subr.mxu0 0.0
    %3316 = vmatpush1.msra.mxu0 %v3284
    %3317 = vmatprep.subr.mxu0 0.0
    %3318 = vmatpush1.msra.mxu0 %v3283
    %3319 = vmatprep.subr.mxu0 0.0
    %3320 = vmatpush1.msra.mxu0 %v3282
    %3321 = vmatprep.subr.mxu0 0.0
    %3322 = vmatpush1.msra.mxu0 %v3281
    %3323 = vmatprep.subr.mxu0 0.0
    %3324 = vmatpush1.msra.mxu0 %v3280
    %3325 = vmatprep.subr.mxu0 0.0
    %3326 = vmatpush1.msra.mxu0 %v3279
    %3327 = vmatprep.subr.mxu0 0.0
    %3328 = vmatpush1.msra.mxu0 %v3278
    %3329 = vmatprep.subr.mxu0 0.0
    %3330 = vmatpush2.msra.mxu0 0.0
    %3331 = vmatprep.subr.mxu0 0.0
    %3332 = vmatpush2.msra.mxu0 0.0
    %3333 = vmatprep.subr.mxu0 0.0
    %3334 = vmatpush2.msra.mxu0 0.0
    %3335 = vmatprep.subr.mxu0 0.0
    %3336 = vmatpush2.msra.mxu0 0.0
    %3337 = vmatprep.subr.mxu0 0.0
    %3338 = vmatpush2.msra.mxu0 0.0
    %3339 = vmatprep.subr.mxu0 0.0
    %3340 = vmatpush2.msra.mxu0 0.0
    %3341 = vmatprep.subr.mxu0 0.0
    %3342 = vmatpush2.msra.mxu0 0.0
    %3343 = vmatprep.subr.mxu0 0.0
    %3344 = vmatpush2.msra.mxu0 0.0
    %3345 = vmatprep.subr.mxu0 0.0
    %3346 = vmatpush2.msra.mxu0 0.0
    %3347 = vmatprep.subr.mxu0 0.0
    %3348 = vmatpush2.msra.mxu0 0.0
    %3349 = vmatprep.subr.mxu0 0.0
    %3350 = vmatpush2.msra.mxu0 0.0
    %3351 = vmatprep.subr.mxu0 0.0
    %3352 = vmatpush2.msra.mxu0 0.0
    %3353 = vmatprep.subr.mxu0 0.0
    %3354 = vmatpush2.msra.mxu0 0.0
    %3355 = vmatprep.subr.mxu0 0.0
    %3356 = vmatpush2.msra.mxu0 0.0
    %3357 = vmatprep.subr.mxu0 0.0
    %3358 = vmatpush2.msra.mxu0 0.0
    %3359 = vmatprep.subr.mxu0 0.0
    %3360 = vmatpush2.msra.mxu0 0.0
    %3361 = vmatprep.mubr.f32.mxu0 0.0
    %3362 = vmatmul.mubr.f32.gmra.mxu0 %v3292
    %v3363 = vpop.f32.mrf.mxu0
    %v3364 = vadd.f32 %v3290, %v3363
    %v3365 = vpop.f32.mrf.mxu0
    %3366 = vmatprep.mubr.f32.mxu0 0.0
    %3367 = vmatmul.mubr.f32.gmra.mxu0 %v3295
    %v3368 = vpop.f32.mrf.mxu0
    %v3369 = vadd.f32 %v3290, %v3368
    %v3370 = vpop.f32.mrf.mxu0
    %3371 = vdwg.mxu0
    %v3372 = vadd.f32 %v3364, %v3168
    %v3373 = vadd.f32 %v3369, %v3169
    %v3374 = vld [vmem:[%s6 + $0x10] sm:$0x1]
    %v3375 = vld [vmem:[%s6 + $0x11] sm:$0x1]
    %v3376 = vsel %vm317, %v3372, 0.0
    %3377 = vadd.xlane.f32.xlu0 %v3376
    %v3378 = vpop.xlane.xlu0 %3377
    %v3379 = vsel %vm317, %v3373, 0.0
    %3380 = vadd.xlane.f32.xlu0 %v3379
    %v3381 = vpop.xlane.xlu0 %3380
    %v3382 = vmul.f32 %v3378, %v324
    %v3383 = vmul.f32 %v3381, %v324
    %v3384 = vsub.f32 %v3372, %v3382
    %v3385 = vsub.f32 %v3373, %v3383
    %v3386 = vmul.f32 %v3384, %v3384
    %v3387 = vmul.f32 %v3385, %v3385
    %v3388 = vsel %vm317, %v3386, 0.0
    %3389 = vadd.xlane.f32.xlu0 %v3388
    %v3390 = vpop.xlane.xlu0 %3389
    %v3391 = vsel %vm317, %v3387, 0.0
    %3392 = vadd.xlane.f32.xlu0 %v3391
    %v3393 = vpop.xlane.xlu0 %3392
    %v3394 = vmul.f32 %v3390, %v324
    %v3395 = vmul.f32 %v3393, %v324
    %v3396 = vadd.f32 %v3394, 1e-12
    %v3397 = vadd.f32 %v3395, 1e-12
    %v3398 = vrsqrt.pop %v3396
    %v3399 = vrsqrt.pop %v3397
    %v3400 = vmul.f32 %v3384, %v3398
    %v3401 = vmul.f32 %v3385, %v3399
    %v3402 = vlaneseq
    %v3403 = vshrl.u32 %v3402, 7
    %v3404 = vsub.s32 0, %v3403
    %v3405 = vrot.slane %v3374, %v3404
    %v3406 = vmul.f32 %v3400, %v3405
    %v3407 = vmul.f32 %v3401, %v3405
    %v3408 = vlaneseq
    %v3409 = vshrl.u32 %v3408, 7
    %v3410 = vsub.s32 0, %v3409
    %v3411 = vrot.slane %v3375, %v3410
    %v3412 = vadd.f32 %v3406, %v3411
    %v3413 = vadd.f32 %v3407, %v3411
    %v3414 = vld [vmem:[#allocation11 + $0x140] sm:$0xff]
    %v3415 = vld [vmem:[#allocation11 + $0x148] sm:$0xff]
    %v3416 = vld [vmem:[#allocation11 + $0x150] sm:$0xff]
    %v3417 = vld [vmem:[#allocation11 + $0x158] sm:$0xff]
    %v3418 = vld [vmem:[%s6 + $0x12] sm:$0x1]
    %v3419 = vlaneseq
    %v3420 = vshrl.u32 %v3419, 7
    %v3421 = vsub.s32 0, %v3420
    %v3422 = vrot.slane %v3418, %v3421
    %v3424 = vsel %vm317, %v3412, 0
    %v3427 = vsel %vm317, %v3413, 0
    %3429 = vmatprep.subr.mxu0 0.0
    %3430 = vmatpush1.msra.mxu0 0.0
    %3431 = vmatprep.subr.mxu0 0.0
    %3432 = vmatpush1.msra.mxu0 0.0
    %3433 = vmatprep.subr.mxu0 0.0
    %3434 = vmatpush1.msra.mxu0 0.0
    %3435 = vmatprep.subr.mxu0 0.0
    %3436 = vmatpush1.msra.mxu0 0.0
    %3437 = vmatprep.subr.mxu0 0.0
    %3438 = vmatpush1.msra.mxu0 0.0
    %3439 = vmatprep.subr.mxu0 0.0
    %3440 = vmatpush1.msra.mxu0 0.0
    %3441 = vmatprep.subr.mxu0 0.0
    %3442 = vmatpush1.msra.mxu0 0.0
    %3443 = vmatprep.subr.mxu0 0.0
    %3444 = vmatpush1.msra.mxu0 0.0
    %3445 = vmatprep.subr.mxu0 0.0
    %3446 = vmatpush1.msra.mxu0 0.0
    %3447 = vmatprep.subr.mxu0 0.0
    %3448 = vmatpush1.msra.mxu0 0.0
    %3449 = vmatprep.subr.mxu0 0.0
    %3450 = vmatpush1.msra.mxu0 0.0
    %3451 = vmatprep.subr.mxu0 0.0
    %3452 = vmatpush1.msra.mxu0 0.0
    %3453 = vmatprep.subr.mxu0 0.0
    %3454 = vmatpush1.msra.mxu0 %v3417
    %3455 = vmatprep.subr.mxu0 0.0
    %3456 = vmatpush1.msra.mxu0 %v3416
    %3457 = vmatprep.subr.mxu0 0.0
    %3458 = vmatpush1.msra.mxu0 %v3415
    %3459 = vmatprep.subr.mxu0 0.0
    %3460 = vmatpush1.msra.mxu0 %v3414
    %3461 = vmatprep.subr.mxu0 0.0
    %3462 = vmatpush2.msra.mxu0 0.0
    %3463 = vmatprep.subr.mxu0 0.0
    %3464 = vmatpush2.msra.mxu0 0.0
    %3465 = vmatprep.subr.mxu0 0.0
    %3466 = vmatpush2.msra.mxu0 0.0
    %3467 = vmatprep.subr.mxu0 0.0
    %3468 = vmatpush2.msra.mxu0 0.0
    %3469 = vmatprep.subr.mxu0 0.0
    %3470 = vmatpush2.msra.mxu0 0.0
    %3471 = vmatprep.subr.mxu0 0.0
    %3472 = vmatpush2.msra.mxu0 0.0
    %3473 = vmatprep.subr.mxu0 0.0
    %3474 = vmatpush2.msra.mxu0 0.0
    %3475 = vmatprep.subr.mxu0 0.0
    %3476 = vmatpush2.msra.mxu0 0.0
    %3477 = vmatprep.subr.mxu0 0.0
    %3478 = vmatpush2.msra.mxu0 0.0
    %3479 = vmatprep.subr.mxu0 0.0
    %3480 = vmatpush2.msra.mxu0 0.0
    %3481 = vmatprep.subr.mxu0 0.0
    %3482 = vmatpush2.msra.mxu0 0.0
    %3483 = vmatprep.subr.mxu0 0.0
    %3484 = vmatpush2.msra.mxu0 0.0
    %3485 = vmatprep.subr.mxu0 0.0
    %3486 = vmatpush2.msra.mxu0 0.0
    %3487 = vmatprep.subr.mxu0 0.0
    %3488 = vmatpush2.msra.mxu0 0.0
    %3489 = vmatprep.subr.mxu0 0.0
    %3490 = vmatpush2.msra.mxu0 0.0
    %3491 = vmatprep.subr.mxu0 0.0
    %3492 = vmatpush2.msra.mxu0 0.0
    %3493 = vmatprep.mubr.f32.mxu0 0.0
    %3494 = vmatmul.mubr.f32.gmra.mxu0 %v3424
    %v3495 = vpop.f32.mrf.mxu0
    %v3496 = vadd.f32 %v3422, %v3495
    %v3497 = vpop.f32.mrf.mxu0
    %3498 = vmatprep.mubr.f32.mxu0 0.0
    %3499 = vmatmul.mubr.f32.gmra.mxu0 %v3427
    %v3500 = vpop.f32.mrf.mxu0
    %v3501 = vadd.f32 %v3422, %v3500
    %v3502 = vpop.f32.mrf.mxu0
    %3503 = vdwg.mxu0
    %3504 = vst [vmem:[%s7] sm:$0xff] %v3496
    %3505 = vst [vmem:[%s7 + $0x8] sm:$0xff] %v3501
    // Predicated region
    $region50: #{flash_bert_classification_forward.1} parent=1 // pred_check
      _
    $region51: #{flash_bert_classification_forward.1} parent=1 // pred_check_branch
      %3507 = sbr.rel (0) target = $region53
    $region52: #{flash_bert_classification_forward.1} parent=1 // pred_region
      _
    $region53: #{flash_bert_classification_forward.1} parent=1 // pred_fallthru
      _
    // Predicated region
    $region54: #{flash_bert_classification_forward.1} parent=1 // pred_check
      _
    $region55: #{flash_bert_classification_forward.1} parent=1 // pred_check_branch
      %3509 = sbr.rel (0) target = $region57
    $region56: #{flash_bert_classification_forward.1} parent=1 // pred_region
      _
    $region57: #{flash_bert_classification_forward.1} parent=1 // pred_fallthru
      _
    %3510 = vsyncpa [#allocation4], 1
    %3511 = vsyncpa [#allocation5], 1
    %3512 = vsyncpa [#allocation7], 1
    %3513 = vsyncpa [#allocation10], 1

</llo_original>
